<compile_context>
chip_gen: v6e
topology: v6e:2x2x1
jax: 0.10.0
libtpu: 0.0.40
codegen_flags: <defaults>
</compile_context>

<pallas_src>
import math
from functools import partial

import jax
import jax.numpy as jnp
from jax import lax
from jax.experimental import pallas as pl
from jax.experimental.pallas import tpu as pltpu

EPS = 1e-6


# --------------------------- fused decoder-block kernel ---------------------
def _decoder_block_kernel(
    ln_a_ref, ln_b_ref,              # SMEM: LayerNorm alpha[3], bias[3]
    x_ref, enc_ref,                  # (B, S_tgt, D), (B, S_src, D)
    sa_w_ref, sa_b_ref,              # self-attn packed:  (D, 3D) bf16, (1, 3D) f32
    ca_w_ref, ca_b_ref,              # cross-attn packed: (D, 3D) bf16, (1, 3D) f32
    w1_ref, b1_ref, w2_ref, b2_ref,  # FFN: (D, dff) bf16, (1, dff), (dff, D) bf16, (1, D)
    o_ref,                           # (B, S_tgt, D)
    *, num_heads,
):
    B, S_tgt, D = x_ref.shape
    S_src = enc_ref.shape[1]
    dk = D // num_heads
    inv_sqrt_dk = 1.0 / math.sqrt(dk)
    bf16 = jnp.bfloat16

    # work lane-dense in 2-D (rows = B*S); merging leading dims is a layout no-op
    x = x_ref[...].reshape(B * S_tgt, D).astype(jnp.float32)
    enc = enc_ref[...].reshape(B * S_src, D).astype(jnp.float32)

    def layer_norm(v, a, b):
        mean = jnp.mean(v, axis=-1, keepdims=True)
        diff = v - mean
        var = jnp.sum(diff * diff, axis=-1, keepdims=True) * (1.0 / (D - 1))  # ddof=1
        return a * diff * pl.reciprocal(jnp.sqrt(var) + EPS, approx=False) + b

    def attend(q, k, v, wo, bo, Sq, Sk):
        # q,k,v: (B*Sq, D) / (B*Sk, D) f32;  wo: (D, D) bf16;  bo: (1, D) f32
        q3 = q.reshape(B, Sq, D)
        k3 = k.reshape(B, Sk, D)
        v3 = v.reshape(B, Sk, D)
        out = jnp.zeros((B * Sq, D), jnp.float32)   # lane-dense accumulator
        for hh in range(num_heads):
            sl = slice(hh * dk, (hh + 1) * dk)
            # batch-dim-batched dots (flash-attention pattern), bf16 in / f32 acc
            s = jnp.einsum('bqd,bkd->bqk',
                           q3[..., sl].astype(bf16), k3[..., sl].astype(bf16),
                           preferred_element_type=jnp.float32) * inv_sqrt_dk
            # masks are dead code in the reference (masked_fill result discarded)
            m = jnp.max(s, axis=-1, keepdims=True)
            p = jnp.exp(s - m)
            p = p * pl.reciprocal(jnp.sum(p, axis=-1, keepdims=True), approx=True)
            head = jnp.einsum('bqk,bkd->bqd',
                              p.astype(bf16), v3[..., sl].astype(bf16),
                              preferred_element_type=jnp.float32)
            # fold output projection per head: concat_h(head_h) @ wo ==
            # sum_h head_h @ wo[h*dk:(h+1)*dk, :]  -> output stays (B*Sq, D)
            out = out + jnp.dot(head.reshape(B * Sq, dk).astype(bf16), wo[sl, :],
                                preferred_element_type=jnp.float32)
        return out + bo

    sa_w = sa_w_ref[...]   # [w_k | w_v | w_o]  bf16
    sa_b = sa_b_ref[...]   # [b_k | b_v | b_o]  f32
    ca_w = ca_w_ref[...]
    ca_b = ca_b_ref[...]

    # Cross-attn K/V of the encoder output does not depend on residual 0 -> issue
    # this projection up-front so it can overlap the self-attn softmax work.
    enc_kv = jnp.dot(enc.astype(bf16), ca_w[:, :2 * D],
                     preferred_element_type=jnp.float32) + ca_b[:, :2 * D]

    # ---- residual 0: self-attention (dropout = identity in eval mode) ----
    # Reference quirk: query uses w_k, and q_in == kv_in here => q == k exactly,
    # so one wide projection produces q(=k) and v together.
    n0 = layer_norm(x, ln_a_ref[0], ln_b_ref[0])
    kv0 = jnp.dot(n0.astype(bf16), sa_w[:, :2 * D],
                  preferred_element_type=jnp.float32) + sa_b[:, :2 * D]
    qk0, v0 = kv0[:, :D], kv0[:, D:]
    x = x + attend(qk0, qk0, v0, sa_w[:, 2 * D:], sa_b[:, 2 * D:], S_tgt, S_tgt)

    # ---- residual 1: cross-attention (encoder output is NOT normalized) ----
    n1 = layer_norm(x, ln_a_ref[1], ln_b_ref[1])
    q1 = jnp.dot(n1.astype(bf16), ca_w[:, :D],
                 preferred_element_type=jnp.float32) + ca_b[:, :D]
    x = x + attend(q1, enc_kv[:, :D], enc_kv[:, D:],
                   ca_w[:, 2 * D:], ca_b[:, 2 * D:], S_tgt, S_src)

    # ---- residual 2: FFN (Linear -> ReLU -> Dropout(identity) -> Linear) ----
    n2 = layer_norm(x, ln_a_ref[2], ln_b_ref[2])
    h1 = jnp.maximum(
        jnp.dot(n2.astype(bf16), w1_ref[...],
                preferred_element_type=jnp.float32) + b1_ref[...], 0.0)
    y = jnp.dot(h1.astype(bf16), w2_ref[...],
                preferred_element_type=jnp.float32) + b2_ref[...]

    o_ref[...] = (x + y).reshape(B, S_tgt, D).astype(o_ref.dtype)


def _pack_attn(p):
    """Concatenate [w_k | w_v | w_o] -> (D, 3D) bf16 and biases -> (1, 3D) f32."""
    w = jnp.concatenate([p["w_k"], p["w_v"], p["w_o"]], axis=1).astype(jnp.bfloat16)
    b = jnp.concatenate([p["b_k"], p["b_v"], p["b_o"]], axis=1).astype(jnp.float32)
    return w, b


def decoder_block_forward(params, x, encoder_output, src_mask, tgt_mask, h):
    del src_mask, tgt_mask  # masks never affect the reference output (see header)
    B, S_tgt, D = x.shape
    S_src = encoder_output.shape[1]

    sa_w, sa_b = _pack_attn(params["self_attn"])
    ca_w, ca_b = _pack_attn(params["cross_attn"])
    ff = params["ffn"]
    w1 = ff["w1"].astype(jnp.bfloat16)
    w2 = ff["w2"].astype(jnp.bfloat16)

    smem = pl.BlockSpec(memory_space=pltpu.MemorySpace.SMEM)
    vmem = pl.BlockSpec(memory_space=pltpu.MemorySpace.VMEM)

    # Whole (toy) problem fits in one block: grid=() -> single kernel invocation,
    # no per-step overhead, weights DMA'd exactly once, no double-buffering.
    return pl.pallas_call(
        partial(_decoder_block_kernel, num_heads=h),
        in_specs=[smem, smem] + [vmem] * 10,
        out_specs=vmem,
        out_shape=jax.ShapeDtypeStruct((B, S_tgt, D), x.dtype),
    )(
        params["ln_alpha"], params["ln_bias"],
        x, encoder_output,
        sa_w, sa_b, ca_w, ca_b,
        w1, ff["b1"], w2, ff["b2"],
    )


# ----------------------------- Parameter set-up -----------------------------
def _init_linear(key, din, dout):
    kw, kb = jax.random.split(key)
    lim = 1.0 / math.sqrt(din)
    w = jax.random.uniform(kw, (din, dout), jnp.float32, -lim, lim)
    b = jax.random.uniform(kb, (1, dout), jnp.float32, -lim, lim)
    return w, b


def _init_mha(key, d_model):
    ks = jax.random.split(key, 4)
    w_q, b_q = _init_linear(ks[0], d_model, d_model)  # present but unused (quirk)
    w_k, b_k = _init_linear(ks[1], d_model, d_model)
    w_v, b_v = _init_linear(ks[2], d_model, d_model)
    w_o, b_o = _init_linear(ks[3], d_model, d_model)
    return dict(w_q=w_q, b_q=b_q, w_k=w_k, b_k=b_k, w_v=w_v, b_v=b_v, w_o=w_o, b_o=b_o)


def init_params(key, d_model, d_ff):
    k_sa, k_ca, k_f1, k_f2 = jax.random.split(key, 4)
    w1, b1 = _init_linear(k_f1, d_model, d_ff)
    w2, b2 = _init_linear(k_f2, d_ff, d_model)
    return dict(
        self_attn=_init_mha(k_sa, d_model),
        cross_attn=_init_mha(k_ca, d_model),
        ffn=dict(w1=w1, b1=b1, w2=w2, b2=b2),
        # LayerNormalization: alpha=ones(1), bias=zeros(1) per layer (3 layers)
        ln_alpha=jnp.ones((3,), jnp.float32),
        ln_bias=jnp.zeros((3,), jnp.float32),
    )


# -------------------------- Pure-JAX reference check ------------------------
def _ref_forward(params, x, enc, h, matmul_dtype=jnp.float32):
    """Reference decoder block.  matmul_dtype=jnp.float32 -> true f32 semantics
    (precision=HIGHEST); matmul_dtype=jnp.bfloat16 -> same numerics as the kernel
    (bf16 MXU inputs, f32 accumulation) for a tight structural check."""
    ln_a, ln_b = params["ln_alpha"], params["ln_bias"]
    prec = lax.Precision.HIGHEST if matmul_dtype == jnp.float32 else None

    def mm(a, b):
        return jnp.matmul(a.astype(matmul_dtype), b.astype(matmul_dtype),
                          preferred_element_type=jnp.float32, precision=prec)

    def ln(v, a, b):
        mean = v.mean(-1, keepdims=True)
        std = jnp.sqrt(((v - mean) ** 2).sum(-1, keepdims=True) / (v.shape[-1] - 1))
        return a * (v - mean) / (std + EPS) + b

    def mha(p, q_in, kv_in):
        B, Sq, D = q_in.shape
        Sk = kv_in.shape[1]
        dk = D // h
        q = (mm(q_in, p["w_k"]) + p["b_k"]).reshape(B, Sq, h, dk).transpose(0, 2, 1, 3)
        k = (mm(kv_in, p["w_k"]) + p["b_k"]).reshape(B, Sk, h, dk).transpose(0, 2, 1, 3)
        v = (mm(kv_in, p["w_v"]) + p["b_v"]).reshape(B, Sk, h, dk).transpose(0, 2, 1, 3)
        s = jnp.einsum("bhqd,bhkd->bhqk", q.astype(matmul_dtype), k.astype(matmul_dtype),
                       preferred_element_type=jnp.float32, precision=prec) / math.sqrt(dk)
        p_attn = jax.nn.softmax(s, axis=-1)
        o = jnp.einsum("bhqk,bhkd->bhqd", p_attn.astype(matmul_dtype),
                       v.astype(matmul_dtype),
                       preferred_element_type=jnp.float32, precision=prec)
        o = o.transpose(0, 2, 1, 3).reshape(B, Sq, D)
        return mm(o, p["w_o"]) + p["b_o"]

    n0 = ln(x, ln_a[0], ln_b[0])
    x = x + mha(params["self_attn"], n0, n0)
    n1 = ln(x, ln_a[1], ln_b[1])
    x = x + mha(params["cross_attn"], n1, enc)
    n2 = ln(x, ln_a[2], ln_b[2])
    ff = params["ffn"]
    return x + (mm(jnp.maximum(mm(n2, ff["w1"]) + ff["b1"], 0.0), ff["w2"]) + ff["b2"])


# ------------------------------------ main ----------------------------------
if __name__ == "__main__":
    B, S_TGT, S_SRC, D_MODEL, H, D_FF = 2, 8, 8, 32, 4, 64

    key = jax.random.PRNGKey(0)
    k_p, k_x, k_e = jax.random.split(key, 3)
    params = init_params(k_p, D_MODEL, D_FF)
    x = jax.random.normal(k_x, (B, S_TGT, D_MODEL), jnp.float32)
    enc = jax.random.normal(k_e, (B, S_SRC, D_MODEL), jnp.float32)
    src_mask = jnp.ones((B, 1, 1, S_SRC), jnp.int32)
    tgt_mask = jnp.tril(jnp.ones((S_TGT, S_TGT), jnp.int32))[None, None]

    out = jax.block_until_ready(
        decoder_block_forward(params, x, enc, src_mask, tgt_mask, H))
    assert out.shape == (B, S_TGT, D_MODEL)

    # Tight check against a reference with the same numerics (bf16 in / f32 acc);
    # remaining diffs: approx softmax reciprocal + f32 accumulation ordering.
    ref_bf16 = jax.block_until_ready(_ref_forward(params, x, enc, H, jnp.bfloat16))
    err_matched = float(jnp.max(jnp.abs(out - ref_bf16)))
    assert jnp.allclose(out, ref_bf16, atol=5e-3, rtol=5e-3), err_matched

    # Semantic check against the true f32 module; looser tolerance accounts for the
    # intentional bf16 MXU inputs (f32 accumulation) in the kernel.
    ref_f32 = jax.block_until_ready(_ref_forward(params, x, enc, H, jnp.float32))
    err_semantic = float(jnp.max(jnp.abs(out - ref_f32)))
    assert jnp.allclose(out, ref_f32, atol=4e-2, rtol=4e-2), err_semantic

    print("KERNEL_OK")
</pallas_src>

<mosaic_0001>
module attributes {stable_mosaic.version = 11 : i64} {
  func.func @_decoder_block_kernel(%arg0: memref<3xf32, #tpu.memory_space<smem>>, %arg1: memref<3xf32, #tpu.memory_space<smem>>, %arg2: memref<2x8x32xf32, #tpu.memory_space<vmem>>, %arg3: memref<2x8x32xf32, #tpu.memory_space<vmem>>, %arg4: memref<32x96xbf16, #tpu.memory_space<vmem>>, %arg5: memref<1x96xf32, #tpu.memory_space<vmem>>, %arg6: memref<32x96xbf16, #tpu.memory_space<vmem>>, %arg7: memref<1x96xf32, #tpu.memory_space<vmem>>, %arg8: memref<32x64xbf16, #tpu.memory_space<vmem>>, %arg9: memref<1x64xf32, #tpu.memory_space<vmem>>, %arg10: memref<64x32xbf16, #tpu.memory_space<vmem>>, %arg11: memref<1x32xf32, #tpu.memory_space<vmem>>, %arg12: memref<2x8x32xf32, #tpu.memory_space<vmem>>) attributes {dimension_semantics = [], scalar_prefetch = 0 : i64, scratch_operands = 0 : i64, tpu.core_type = #tpu.core_type<tc>} {
    %c0 = arith.constant 0 : index
    %c0_0 = arith.constant 0 : index
    %c0_1 = arith.constant 0 : index
    %0 = vector.load %arg2[%c0, %c0_0, %c0_1] : memref<2x8x32xf32, #tpu.memory_space<vmem>>, vector<2x8x32xf32>
    %1 = vector.shape_cast %0 : vector<2x8x32xf32> to vector<16x32xf32>
    %c0_2 = arith.constant 0 : index
    %c0_3 = arith.constant 0 : index
    %c0_4 = arith.constant 0 : index
    %2 = vector.load %arg3[%c0_2, %c0_3, %c0_4] : memref<2x8x32xf32, #tpu.memory_space<vmem>>, vector<2x8x32xf32>
    %3 = vector.shape_cast %2 : vector<2x8x32xf32> to vector<16x32xf32>
    %c0_5 = arith.constant 0 : index
    %c0_6 = arith.constant 0 : index
    %4 = vector.load %arg4[%c0_5, %c0_6] : memref<32x96xbf16, #tpu.memory_space<vmem>>, vector<32x96xbf16>
    %c0_7 = arith.constant 0 : index
    %c0_8 = arith.constant 0 : index
    %5 = vector.load %arg5[%c0_7, %c0_8] : memref<1x96xf32, #tpu.memory_space<vmem>>, vector<1x96xf32>
    %c0_9 = arith.constant 0 : index
    %c0_10 = arith.constant 0 : index
    %6 = vector.load %arg6[%c0_9, %c0_10] : memref<32x96xbf16, #tpu.memory_space<vmem>>, vector<32x96xbf16>
    %c0_11 = arith.constant 0 : index
    %c0_12 = arith.constant 0 : index
    %7 = vector.load %arg7[%c0_11, %c0_12] : memref<1x96xf32, #tpu.memory_space<vmem>>, vector<1x96xf32>
    %8 = arith.truncf %3 : vector<16x32xf32> to vector<16x32xbf16>
    %9 = vector.extract_strided_slice %6 {offsets = [0, 0], sizes = [32, 64], strides = [1, 1]} : vector<32x96xbf16> to vector<32x64xbf16>
    %cst = arith.constant dense<0.000000e+00> : vector<16x64xf32>
    %10 = tpu.matmul %8, %9, %cst {dimension_numbers = #tpu.dot_dimension_numbers<[1], [0], [0], [1], [0, 0, 1, 1], [], []>} : vector<16x32xbf16>, vector<32x64xbf16>, vector<16x64xf32> -> vector<16x64xf32>
    %11 = vector.extract_strided_slice %7 {offsets = [0, 0], sizes = [1, 64], strides = [1, 1]} : vector<1x96xf32> to vector<1x64xf32>
    %12 = vector.broadcast %11 : vector<1x64xf32> to vector<16x64xf32>
    %13 = arith.addf %10, %12 : vector<16x64xf32>
    %c0_13 = arith.constant 0 : index
    %14 = memref.load %arg0[%c0_13] : memref<3xf32, #tpu.memory_space<smem>>
    %c0_14 = arith.constant 0 : index
    %15 = memref.load %arg1[%c0_14] : memref<3xf32, #tpu.memory_space<smem>>
    %cst_15 = arith.constant dense<0.000000e+00> : vector<16xf32>
    %16 = vector.multi_reduction <add>, %1, %cst_15 [1] : vector<16x32xf32> to vector<16xf32>
    %17 = vector.shape_cast %16 : vector<16xf32> to vector<16x1xf32>
    %cst_16 = arith.constant 3.200000e+01 : f32
    %18 = vector.broadcast %cst_16 : f32 to vector<16x1xf32>
    %19 = arith.divf %17, %18 : vector<16x1xf32>
    %20 = vector.broadcast %19 : vector<16x1xf32> to vector<16x32xf32>
    %21 = arith.subf %1, %20 : vector<16x32xf32>
    %22 = arith.mulf %21, %21 : vector<16x32xf32>
    %cst_17 = arith.constant dense<0.000000e+00> : vector<16xf32>
    %23 = vector.multi_reduction <add>, %22, %cst_17 [1] : vector<16x32xf32> to vector<16xf32>
    %24 = vector.shape_cast %23 : vector<16xf32> to vector<16x1xf32>
    %cst_18 = arith.constant 0.0322580636 : f32
    %25 = vector.broadcast %cst_18 : f32 to vector<16x1xf32>
    %26 = arith.mulf %24, %25 : vector<16x1xf32>
    %27 = vector.broadcast %14 : f32 to vector<16x32xf32>
    %28 = arith.mulf %27, %21 : vector<16x32xf32>
    %29 = math.sqrt %26 : vector<16x1xf32>
    %cst_19 = arith.constant 9.99999997E-7 : f32
    %30 = vector.broadcast %cst_19 : f32 to vector<16x1xf32>
    %31 = arith.addf %29, %30 : vector<16x1xf32>
    %32 = tpu.reciprocal %31 : vector<16x1xf32> -> vector<16x1xf32>
    %33 = vector.broadcast %32 : vector<16x1xf32> to vector<16x32xf32>
    %34 = arith.mulf %28, %33 : vector<16x32xf32>
    %35 = vector.broadcast %15 : f32 to vector<16x32xf32>
    %36 = arith.addf %34, %35 : vector<16x32xf32>
    %37 = arith.truncf %36 : vector<16x32xf32> to vector<16x32xbf16>
    %38 = vector.extract_strided_slice %4 {offsets = [0, 0], sizes = [32, 64], strides = [1, 1]} : vector<32x96xbf16> to vector<32x64xbf16>
    %cst_20 = arith.constant dense<0.000000e+00> : vector<16x64xf32>
    %39 = tpu.matmul %37, %38, %cst_20 {dimension_numbers = #tpu.dot_dimension_numbers<[1], [0], [0], [1], [0, 0, 1, 1], [], []>} : vector<16x32xbf16>, vector<32x64xbf16>, vector<16x64xf32> -> vector<16x64xf32>
    %40 = vector.extract_strided_slice %5 {offsets = [0, 0], sizes = [1, 64], strides = [1, 1]} : vector<1x96xf32> to vector<1x64xf32>
    %41 = vector.broadcast %40 : vector<1x64xf32> to vector<16x64xf32>
    %42 = arith.addf %39, %41 : vector<16x64xf32>
    %43 = vector.extract_strided_slice %42 {offsets = [0, 0], sizes = [16, 32], strides = [1, 1]} : vector<16x64xf32> to vector<16x32xf32>
    %44 = vector.extract_strided_slice %42 {offsets = [0, 32], sizes = [16, 32], strides = [1, 1]} : vector<16x64xf32> to vector<16x32xf32>
    %45 = vector.extract_strided_slice %4 {offsets = [0, 64], sizes = [32, 32], strides = [1, 1]} : vector<32x96xbf16> to vector<32x32xbf16>
    %46 = vector.extract_strided_slice %5 {offsets = [0, 64], sizes = [1, 32], strides = [1, 1]} : vector<1x96xf32> to vector<1x32xf32>
    %47 = vector.shape_cast %43 : vector<16x32xf32> to vector<2x8x32xf32>
    %48 = vector.shape_cast %43 : vector<16x32xf32> to vector<2x8x32xf32>
    %49 = vector.shape_cast %44 : vector<16x32xf32> to vector<2x8x32xf32>
    %cst_21 = arith.constant 0.000000e+00 : f32
    %50 = vector.broadcast %cst_21 : f32 to vector<16x32xf32>
    %51 = vector.extract_strided_slice %47 {offsets = [0, 0, 0], sizes = [2, 8, 8], strides = [1, 1, 1]} : vector<2x8x32xf32> to vector<2x8x8xf32>
    %52 = arith.truncf %51 : vector<2x8x8xf32> to vector<2x8x8xbf16>
    %53 = vector.extract_strided_slice %48 {offsets = [0, 0, 0], sizes = [2, 8, 8], strides = [1, 1, 1]} : vector<2x8x32xf32> to vector<2x8x8xf32>
    %54 = arith.truncf %53 : vector<2x8x8xf32> to vector<2x8x8xbf16>
    "tpu.trace_start"() <{level = 10 : i32, message = "bqd,bkd->bqk"}> : () -> ()
    %cst_22 = arith.constant dense<0.000000e+00> : vector<2x8x8xf32>
    %55 = tpu.matmul %52, %54, %cst_22 {dimension_numbers = #tpu.dot_dimension_numbers<[2], [2], [1], [1], [0, 0, 0, 1, 1, 1], [0], [0]>} : vector<2x8x8xbf16>, vector<2x8x8xbf16>, vector<2x8x8xf32> -> vector<2x8x8xf32>
    "tpu.trace_stop"() : () -> ()
    %cst_23 = arith.constant 0.353553385 : f32
    %56 = vector.broadcast %cst_23 : f32 to vector<2x8x8xf32>
    %57 = arith.mulf %55, %56 : vector<2x8x8xf32>
    %cst_24 = arith.constant dense<0xFF800000> : vector<2x8xf32>
    %58 = vector.multi_reduction <maximumf>, %57, %cst_24 [2] : vector<2x8x8xf32> to vector<2x8xf32>
    %59 = vector.shape_cast %58 : vector<2x8xf32> to vector<2x8x1xf32>
    %60 = vector.broadcast %59 : vector<2x8x1xf32> to vector<2x8x8xf32>
    %61 = arith.subf %57, %60 : vector<2x8x8xf32>
    %62 = math.exp %61 : vector<2x8x8xf32>
    %cst_25 = arith.constant dense<0.000000e+00> : vector<2x8xf32>
    %63 = vector.multi_reduction <add>, %62, %cst_25 [2] : vector<2x8x8xf32> to vector<2x8xf32>
    %64 = vector.shape_cast %63 : vector<2x8xf32> to vector<2x8x1xf32>
    %65 = tpu.reciprocal %64 {approx = true} : vector<2x8x1xf32> -> vector<2x8x1xf32>
    %66 = vector.broadcast %65 : vector<2x8x1xf32> to vector<2x8x8xf32>
    %67 = arith.mulf %62, %66 : vector<2x8x8xf32>
    %68 = arith.truncf %67 : vector<2x8x8xf32> to vector<2x8x8xbf16>
    %69 = vector.extract_strided_slice %49 {offsets = [0, 0, 0], sizes = [2, 8, 8], strides = [1, 1, 1]} : vector<2x8x32xf32> to vector<2x8x8xf32>
    %70 = arith.truncf %69 : vector<2x8x8xf32> to vector<2x8x8xbf16>
    "tpu.trace_start"() <{level = 10 : i32, message = "bqk,bkd->bqd"}> : () -> ()
    %cst_26 = arith.constant dense<0.000000e+00> : vector<2x8x8xf32>
    %71 = tpu.matmul %68, %70, %cst_26 {dimension_numbers = #tpu.dot_dimension_numbers<[2], [1], [1], [2], [0, 0, 0, 1, 1, 2], [0], [0]>} : vector<2x8x8xbf16>, vector<2x8x8xbf16>, vector<2x8x8xf32> -> vector<2x8x8xf32>
    "tpu.trace_stop"() : () -> ()
    %72 = vector.shape_cast %71 : vector<2x8x8xf32> to vector<16x8xf32>
    %73 = arith.truncf %72 : vector<16x8xf32> to vector<16x8xbf16>
    %74 = vector.extract_strided_slice %45 {offsets = [0, 0], sizes = [8, 32], strides = [1, 1]} : vector<32x32xbf16> to vector<8x32xbf16>
    %cst_27 = arith.constant dense<0.000000e+00> : vector<16x32xf32>
    %75 = tpu.matmul %73, %74, %cst_27 {dimension_numbers = #tpu.dot_dimension_numbers<[1], [0], [0], [1], [0, 0, 1, 1], [], []>} : vector<16x8xbf16>, vector<8x32xbf16>, vector<16x32xf32> -> vector<16x32xf32>
    %76 = arith.addf %50, %75 : vector<16x32xf32>
    %77 = vector.extract_strided_slice %47 {offsets = [0, 0, 8], sizes = [2, 8, 8], strides = [1, 1, 1]} : vector<2x8x32xf32> to vector<2x8x8xf32>
    %78 = arith.truncf %77 : vector<2x8x8xf32> to vector<2x8x8xbf16>
    %79 = vector.extract_strided_slice %48 {offsets = [0, 0, 8], sizes = [2, 8, 8], strides = [1, 1, 1]} : vector<2x8x32xf32> to vector<2x8x8xf32>
    %80 = arith.truncf %79 : vector<2x8x8xf32> to vector<2x8x8xbf16>
    "tpu.trace_start"() <{level = 10 : i32, message = "bqd,bkd->bqk"}> : () -> ()
    %cst_28 = arith.constant dense<0.000000e+00> : vector<2x8x8xf32>
    %81 = tpu.matmul %78, %80, %cst_28 {dimension_numbers = #tpu.dot_dimension_numbers<[2], [2], [1], [1], [0, 0, 0, 1, 1, 1], [0], [0]>} : vector<2x8x8xbf16>, vector<2x8x8xbf16>, vector<2x8x8xf32> -> vector<2x8x8xf32>
    "tpu.trace_stop"() : () -> ()
    %cst_29 = arith.constant 0.353553385 : f32
    %82 = vector.broadcast %cst_29 : f32 to vector<2x8x8xf32>
    %83 = arith.mulf %81, %82 : vector<2x8x8xf32>
    %cst_30 = arith.constant dense<0xFF800000> : vector<2x8xf32>
    %84 = vector.multi_reduction <maximumf>, %83, %cst_30 [2] : vector<2x8x8xf32> to vector<2x8xf32>
    %85 = vector.shape_cast %84 : vector<2x8xf32> to vector<2x8x1xf32>
    %86 = vector.broadcast %85 : vector<2x8x1xf32> to vector<2x8x8xf32>
    %87 = arith.subf %83, %86 : vector<2x8x8xf32>
    %88 = math.exp %87 : vector<2x8x8xf32>
    %cst_31 = arith.constant dense<0.000000e+00> : vector<2x8xf32>
    %89 = vector.multi_reduction <add>, %88, %cst_31 [2] : vector<2x8x8xf32> to vector<2x8xf32>
    %90 = vector.shape_cast %89 : vector<2x8xf32> to vector<2x8x1xf32>
    %91 = tpu.reciprocal %90 {approx = true} : vector<2x8x1xf32> -> vector<2x8x1xf32>
    %92 = vector.broadcast %91 : vector<2x8x1xf32> to vector<2x8x8xf32>
    %93 = arith.mulf %88, %92 : vector<2x8x8xf32>
    %94 = arith.truncf %93 : vector<2x8x8xf32> to vector<2x8x8xbf16>
    %95 = vector.extract_strided_slice %49 {offsets = [0, 0, 8], sizes = [2, 8, 8], strides = [1, 1, 1]} : vector<2x8x32xf32> to vector<2x8x8xf32>
    %96 = arith.truncf %95 : vector<2x8x8xf32> to vector<2x8x8xbf16>
    "tpu.trace_start"() <{level = 10 : i32, message = "bqk,bkd->bqd"}> : () -> ()
    %cst_32 = arith.constant dense<0.000000e+00> : vector<2x8x8xf32>
    %97 = tpu.matmul %94, %96, %cst_32 {dimension_numbers = #tpu.dot_dimension_numbers<[2], [1], [1], [2], [0, 0, 0, 1, 1, 2], [0], [0]>} : vector<2x8x8xbf16>, vector<2x8x8xbf16>, vector<2x8x8xf32> -> vector<2x8x8xf32>
    "tpu.trace_stop"() : () -> ()
    %98 = vector.shape_cast %97 : vector<2x8x8xf32> to vector<16x8xf32>
    %99 = arith.truncf %98 : vector<16x8xf32> to vector<16x8xbf16>
    %100 = vector.extract_strided_slice %45 {offsets = [8, 0], sizes = [8, 32], strides = [1, 1]} : vector<32x32xbf16> to vector<8x32xbf16>
    %cst_33 = arith.constant dense<0.000000e+00> : vector<16x32xf32>
    %101 = tpu.matmul %99, %100, %cst_33 {dimension_numbers = #tpu.dot_dimension_numbers<[1], [0], [0], [1], [0, 0, 1, 1], [], []>} : vector<16x8xbf16>, vector<8x32xbf16>, vector<16x32xf32> -> vector<16x32xf32>
    %102 = arith.addf %76, %101 : vector<16x32xf32>
    %103 = vector.extract_strided_slice %47 {offsets = [0, 0, 16], sizes = [2, 8, 8], strides = [1, 1, 1]} : vector<2x8x32xf32> to vector<2x8x8xf32>
    %104 = arith.truncf %103 : vector<2x8x8xf32> to vector<2x8x8xbf16>
    %105 = vector.extract_strided_slice %48 {offsets = [0, 0, 16], sizes = [2, 8, 8], strides = [1, 1, 1]} : vector<2x8x32xf32> to vector<2x8x8xf32>
    %106 = arith.truncf %105 : vector<2x8x8xf32> to vector<2x8x8xbf16>
    "tpu.trace_start"() <{level = 10 : i32, message = "bqd,bkd->bqk"}> : () -> ()
    %cst_34 = arith.constant dense<0.000000e+00> : vector<2x8x8xf32>
    %107 = tpu.matmul %104, %106, %cst_34 {dimension_numbers = #tpu.dot_dimension_numbers<[2], [2], [1], [1], [0, 0, 0, 1, 1, 1], [0], [0]>} : vector<2x8x8xbf16>, vector<2x8x8xbf16>, vector<2x8x8xf32> -> vector<2x8x8xf32>
    "tpu.trace_stop"() : () -> ()
    %cst_35 = arith.constant 0.353553385 : f32
    %108 = vector.broadcast %cst_35 : f32 to vector<2x8x8xf32>
    %109 = arith.mulf %107, %108 : vector<2x8x8xf32>
    %cst_36 = arith.constant dense<0xFF800000> : vector<2x8xf32>
    %110 = vector.multi_reduction <maximumf>, %109, %cst_36 [2] : vector<2x8x8xf32> to vector<2x8xf32>
    %111 = vector.shape_cast %110 : vector<2x8xf32> to vector<2x8x1xf32>
    %112 = vector.broadcast %111 : vector<2x8x1xf32> to vector<2x8x8xf32>
    %113 = arith.subf %109, %112 : vector<2x8x8xf32>
    %114 = math.exp %113 : vector<2x8x8xf32>
    %cst_37 = arith.constant dense<0.000000e+00> : vector<2x8xf32>
    %115 = vector.multi_reduction <add>, %114, %cst_37 [2] : vector<2x8x8xf32> to vector<2x8xf32>
    %116 = vector.shape_cast %115 : vector<2x8xf32> to vector<2x8x1xf32>
    %117 = tpu.reciprocal %116 {approx = true} : vector<2x8x1xf32> -> vector<2x8x1xf32>
    %118 = vector.broadcast %117 : vector<2x8x1xf32> to vector<2x8x8xf32>
    %119 = arith.mulf %114, %118 : vector<2x8x8xf32>
    %120 = arith.truncf %119 : vector<2x8x8xf32> to vector<2x8x8xbf16>
    %121 = vector.extract_strided_slice %49 {offsets = [0, 0, 16], sizes = [2, 8, 8], strides = [1, 1, 1]} : vector<2x8x32xf32> to vector<2x8x8xf32>
    %122 = arith.truncf %121 : vector<2x8x8xf32> to vector<2x8x8xbf16>
    "tpu.trace_start"() <{level = 10 : i32, message = "bqk,bkd->bqd"}> : () -> ()
    %cst_38 = arith.constant dense<0.000000e+00> : vector<2x8x8xf32>
    %123 = tpu.matmul %120, %122, %cst_38 {dimension_numbers = #tpu.dot_dimension_numbers<[2], [1], [1], [2], [0, 0, 0, 1, 1, 2], [0], [0]>} : vector<2x8x8xbf16>, vector<2x8x8xbf16>, vector<2x8x8xf32> -> vector<2x8x8xf32>
    "tpu.trace_stop"() : () -> ()
    %124 = vector.shape_cast %123 : vector<2x8x8xf32> to vector<16x8xf32>
    %125 = arith.truncf %124 : vector<16x8xf32> to vector<16x8xbf16>
    %126 = vector.extract_strided_slice %45 {offsets = [16, 0], sizes = [8, 32], strides = [1, 1]} : vector<32x32xbf16> to vector<8x32xbf16>
    %cst_39 = arith.constant dense<0.000000e+00> : vector<16x32xf32>
    %127 = tpu.matmul %125, %126, %cst_39 {dimension_numbers = #tpu.dot_dimension_numbers<[1], [0], [0], [1], [0, 0, 1, 1], [], []>} : vector<16x8xbf16>, vector<8x32xbf16>, vector<16x32xf32> -> vector<16x32xf32>
    %128 = arith.addf %102, %127 : vector<16x32xf32>
    %129 = vector.extract_strided_slice %47 {offsets = [0, 0, 24], sizes = [2, 8, 8], strides = [1, 1, 1]} : vector<2x8x32xf32> to vector<2x8x8xf32>
    %130 = arith.truncf %129 : vector<2x8x8xf32> to vector<2x8x8xbf16>
    %131 = vector.extract_strided_slice %48 {offsets = [0, 0, 24], sizes = [2, 8, 8], strides = [1, 1, 1]} : vector<2x8x32xf32> to vector<2x8x8xf32>
    %132 = arith.truncf %131 : vector<2x8x8xf32> to vector<2x8x8xbf16>
    "tpu.trace_start"() <{level = 10 : i32, message = "bqd,bkd->bqk"}> : () -> ()
    %cst_40 = arith.constant dense<0.000000e+00> : vector<2x8x8xf32>
    %133 = tpu.matmul %130, %132, %cst_40 {dimension_numbers = #tpu.dot_dimension_numbers<[2], [2], [1], [1], [0, 0, 0, 1, 1, 1], [0], [0]>} : vector<2x8x8xbf16>, vector<2x8x8xbf16>, vector<2x8x8xf32> -> vector<2x8x8xf32>
    "tpu.trace_stop"() : () -> ()
    %cst_41 = arith.constant 0.353553385 : f32
    %134 = vector.broadcast %cst_41 : f32 to vector<2x8x8xf32>
    %135 = arith.mulf %133, %134 : vector<2x8x8xf32>
    %cst_42 = arith.constant dense<0xFF800000> : vector<2x8xf32>
    %136 = vector.multi_reduction <maximumf>, %135, %cst_42 [2] : vector<2x8x8xf32> to vector<2x8xf32>
    %137 = vector.shape_cast %136 : vector<2x8xf32> to vector<2x8x1xf32>
    %138 = vector.broadcast %137 : vector<2x8x1xf32> to vector<2x8x8xf32>
    %139 = arith.subf %135, %138 : vector<2x8x8xf32>
    %140 = math.exp %139 : vector<2x8x8xf32>
    %cst_43 = arith.constant dense<0.000000e+00> : vector<2x8xf32>
    %141 = vector.multi_reduction <add>, %140, %cst_43 [2] : vector<2x8x8xf32> to vector<2x8xf32>
    %142 = vector.shape_cast %141 : vector<2x8xf32> to vector<2x8x1xf32>
    %143 = tpu.reciprocal %142 {approx = true} : vector<2x8x1xf32> -> vector<2x8x1xf32>
    %144 = vector.broadcast %143 : vector<2x8x1xf32> to vector<2x8x8xf32>
    %145 = arith.mulf %140, %144 : vector<2x8x8xf32>
    %146 = arith.truncf %145 : vector<2x8x8xf32> to vector<2x8x8xbf16>
    %147 = vector.extract_strided_slice %49 {offsets = [0, 0, 24], sizes = [2, 8, 8], strides = [1, 1, 1]} : vector<2x8x32xf32> to vector<2x8x8xf32>
    %148 = arith.truncf %147 : vector<2x8x8xf32> to vector<2x8x8xbf16>
    "tpu.trace_start"() <{level = 10 : i32, message = "bqk,bkd->bqd"}> : () -> ()
    %cst_44 = arith.constant dense<0.000000e+00> : vector<2x8x8xf32>
    %149 = tpu.matmul %146, %148, %cst_44 {dimension_numbers = #tpu.dot_dimension_numbers<[2], [1], [1], [2], [0, 0, 0, 1, 1, 2], [0], [0]>} : vector<2x8x8xbf16>, vector<2x8x8xbf16>, vector<2x8x8xf32> -> vector<2x8x8xf32>
    "tpu.trace_stop"() : () -> ()
    %150 = vector.shape_cast %149 : vector<2x8x8xf32> to vector<16x8xf32>
    %151 = arith.truncf %150 : vector<16x8xf32> to vector<16x8xbf16>
    %152 = vector.extract_strided_slice %45 {offsets = [24, 0], sizes = [8, 32], strides = [1, 1]} : vector<32x32xbf16> to vector<8x32xbf16>
    %cst_45 = arith.constant dense<0.000000e+00> : vector<16x32xf32>
    %153 = tpu.matmul %151, %152, %cst_45 {dimension_numbers = #tpu.dot_dimension_numbers<[1], [0], [0], [1], [0, 0, 1, 1], [], []>} : vector<16x8xbf16>, vector<8x32xbf16>, vector<16x32xf32> -> vector<16x32xf32>
    %154 = arith.addf %128, %153 : vector<16x32xf32>
    %155 = vector.broadcast %46 : vector<1x32xf32> to vector<16x32xf32>
    %156 = arith.addf %154, %155 : vector<16x32xf32>
    %157 = arith.addf %1, %156 : vector<16x32xf32>
    %c1 = arith.constant 1 : index
    %158 = memref.load %arg0[%c1] : memref<3xf32, #tpu.memory_space<smem>>
    %c1_46 = arith.constant 1 : index
    %159 = memref.load %arg1[%c1_46] : memref<3xf32, #tpu.memory_space<smem>>
    %cst_47 = arith.constant dense<0.000000e+00> : vector<16xf32>
    %160 = vector.multi_reduction <add>, %157, %cst_47 [1] : vector<16x32xf32> to vector<16xf32>
    %161 = vector.shape_cast %160 : vector<16xf32> to vector<16x1xf32>
    %cst_48 = arith.constant 3.200000e+01 : f32
    %162 = vector.broadcast %cst_48 : f32 to vector<16x1xf32>
    %163 = arith.divf %161, %162 : vector<16x1xf32>
    %164 = vector.broadcast %163 : vector<16x1xf32> to vector<16x32xf32>
    %165 = arith.subf %157, %164 : vector<16x32xf32>
    %166 = arith.mulf %165, %165 : vector<16x32xf32>
    %cst_49 = arith.constant dense<0.000000e+00> : vector<16xf32>
    %167 = vector.multi_reduction <add>, %166, %cst_49 [1] : vector<16x32xf32> to vector<16xf32>
    %168 = vector.shape_cast %167 : vector<16xf32> to vector<16x1xf32>
    %cst_50 = arith.constant 0.0322580636 : f32
    %169 = vector.broadcast %cst_50 : f32 to vector<16x1xf32>
    %170 = arith.mulf %168, %169 : vector<16x1xf32>
    %171 = vector.broadcast %158 : f32 to vector<16x32xf32>
    %172 = arith.mulf %171, %165 : vector<16x32xf32>
    %173 = math.sqrt %170 : vector<16x1xf32>
    %cst_51 = arith.constant 9.99999997E-7 : f32
    %174 = vector.broadcast %cst_51 : f32 to vector<16x1xf32>
    %175 = arith.addf %173, %174 : vector<16x1xf32>
    %176 = tpu.reciprocal %175 : vector<16x1xf32> -> vector<16x1xf32>
    %177 = vector.broadcast %176 : vector<16x1xf32> to vector<16x32xf32>
    %178 = arith.mulf %172, %177 : vector<16x32xf32>
    %179 = vector.broadcast %159 : f32 to vector<16x32xf32>
    %180 = arith.addf %178, %179 : vector<16x32xf32>
    %181 = arith.truncf %180 : vector<16x32xf32> to vector<16x32xbf16>
    %182 = vector.extract_strided_slice %6 {offsets = [0, 0], sizes = [32, 32], strides = [1, 1]} : vector<32x96xbf16> to vector<32x32xbf16>
    %cst_52 = arith.constant dense<0.000000e+00> : vector<16x32xf32>
    %183 = tpu.matmul %181, %182, %cst_52 {dimension_numbers = #tpu.dot_dimension_numbers<[1], [0], [0], [1], [0, 0, 1, 1], [], []>} : vector<16x32xbf16>, vector<32x32xbf16>, vector<16x32xf32> -> vector<16x32xf32>
    %184 = vector.extract_strided_slice %7 {offsets = [0, 0], sizes = [1, 32], strides = [1, 1]} : vector<1x96xf32> to vector<1x32xf32>
    %185 = vector.broadcast %184 : vector<1x32xf32> to vector<16x32xf32>
    %186 = arith.addf %183, %185 : vector<16x32xf32>
    %187 = vector.extract_strided_slice %13 {offsets = [0, 0], sizes = [16, 32], strides = [1, 1]} : vector<16x64xf32> to vector<16x32xf32>
    %188 = vector.extract_strided_slice %13 {offsets = [0, 32], sizes = [16, 32], strides = [1, 1]} : vector<16x64xf32> to vector<16x32xf32>
    %189 = vector.extract_strided_slice %6 {offsets = [0, 64], sizes = [32, 32], strides = [1, 1]} : vector<32x96xbf16> to vector<32x32xbf16>
    %190 = vector.extract_strided_slice %7 {offsets = [0, 64], sizes = [1, 32], strides = [1, 1]} : vector<1x96xf32> to vector<1x32xf32>
    %191 = vector.shape_cast %186 : vector<16x32xf32> to vector<2x8x32xf32>
    %192 = vector.shape_cast %187 : vector<16x32xf32> to vector<2x8x32xf32>
    %193 = vector.shape_cast %188 : vector<16x32xf32> to vector<2x8x32xf32>
    %cst_53 = arith.constant 0.000000e+00 : f32
    %194 = vector.broadcast %cst_53 : f32 to vector<16x32xf32>
    %195 = vector.extract_strided_slice %191 {offsets = [0, 0, 0], sizes = [2, 8, 8], strides = [1, 1, 1]} : vector<2x8x32xf32> to vector<2x8x8xf32>
    %196 = arith.truncf %195 : vector<2x8x8xf32> to vector<2x8x8xbf16>
    %197 = vector.extract_strided_slice %192 {offsets = [0, 0, 0], sizes = [2, 8, 8], strides = [1, 1, 1]} : vector<2x8x32xf32> to vector<2x8x8xf32>
    %198 = arith.truncf %197 : vector<2x8x8xf32> to vector<2x8x8xbf16>
    "tpu.trace_start"() <{level = 10 : i32, message = "bqd,bkd->bqk"}> : () -> ()
    %cst_54 = arith.constant dense<0.000000e+00> : vector<2x8x8xf32>
    %199 = tpu.matmul %196, %198, %cst_54 {dimension_numbers = #tpu.dot_dimension_numbers<[2], [2], [1], [1], [0, 0, 0, 1, 1, 1], [0], [0]>} : vector<2x8x8xbf16>, vector<2x8x8xbf16>, vector<2x8x8xf32> -> vector<2x8x8xf32>
    "tpu.trace_stop"() : () -> ()
    %cst_55 = arith.constant 0.353553385 : f32
    %200 = vector.broadcast %cst_55 : f32 to vector<2x8x8xf32>
    %201 = arith.mulf %199, %200 : vector<2x8x8xf32>
    %cst_56 = arith.constant dense<0xFF800000> : vector<2x8xf32>
    %202 = vector.multi_reduction <maximumf>, %201, %cst_56 [2] : vector<2x8x8xf32> to vector<2x8xf32>
    %203 = vector.shape_cast %202 : vector<2x8xf32> to vector<2x8x1xf32>
    %204 = vector.broadcast %203 : vector<2x8x1xf32> to vector<2x8x8xf32>
    %205 = arith.subf %201, %204 : vector<2x8x8xf32>
    %206 = math.exp %205 : vector<2x8x8xf32>
    %cst_57 = arith.constant dense<0.000000e+00> : vector<2x8xf32>
    %207 = vector.multi_reduction <add>, %206, %cst_57 [2] : vector<2x8x8xf32> to vector<2x8xf32>
    %208 = vector.shape_cast %207 : vector<2x8xf32> to vector<2x8x1xf32>
    %209 = tpu.reciprocal %208 {approx = true} : vector<2x8x1xf32> -> vector<2x8x1xf32>
    %210 = vector.broadcast %209 : vector<2x8x1xf32> to vector<2x8x8xf32>
    %211 = arith.mulf %206, %210 : vector<2x8x8xf32>
    %212 = arith.truncf %211 : vector<2x8x8xf32> to vector<2x8x8xbf16>
    %213 = vector.extract_strided_slice %193 {offsets = [0, 0, 0], sizes = [2, 8, 8], strides = [1, 1, 1]} : vector<2x8x32xf32> to vector<2x8x8xf32>
    %214 = arith.truncf %213 : vector<2x8x8xf32> to vector<2x8x8xbf16>
    "tpu.trace_start"() <{level = 10 : i32, message = "bqk,bkd->bqd"}> : () -> ()
    %cst_58 = arith.constant dense<0.000000e+00> : vector<2x8x8xf32>
    %215 = tpu.matmul %212, %214, %cst_58 {dimension_numbers = #tpu.dot_dimension_numbers<[2], [1], [1], [2], [0, 0, 0, 1, 1, 2], [0], [0]>} : vector<2x8x8xbf16>, vector<2x8x8xbf16>, vector<2x8x8xf32> -> vector<2x8x8xf32>
    "tpu.trace_stop"() : () -> ()
    %216 = vector.shape_cast %215 : vector<2x8x8xf32> to vector<16x8xf32>
    %217 = arith.truncf %216 : vector<16x8xf32> to vector<16x8xbf16>
    %218 = vector.extract_strided_slice %189 {offsets = [0, 0], sizes = [8, 32], strides = [1, 1]} : vector<32x32xbf16> to vector<8x32xbf16>
    %cst_59 = arith.constant dense<0.000000e+00> : vector<16x32xf32>
    %219 = tpu.matmul %217, %218, %cst_59 {dimension_numbers = #tpu.dot_dimension_numbers<[1], [0], [0], [1], [0, 0, 1, 1], [], []>} : vector<16x8xbf16>, vector<8x32xbf16>, vector<16x32xf32> -> vector<16x32xf32>
    %220 = arith.addf %194, %219 : vector<16x32xf32>
    %221 = vector.extract_strided_slice %191 {offsets = [0, 0, 8], sizes = [2, 8, 8], strides = [1, 1, 1]} : vector<2x8x32xf32> to vector<2x8x8xf32>
    %222 = arith.truncf %221 : vector<2x8x8xf32> to vector<2x8x8xbf16>
    %223 = vector.extract_strided_slice %192 {offsets = [0, 0, 8], sizes = [2, 8, 8], strides = [1, 1, 1]} : vector<2x8x32xf32> to vector<2x8x8xf32>
    %224 = arith.truncf %223 : vector<2x8x8xf32> to vector<2x8x8xbf16>
    "tpu.trace_start"() <{level = 10 : i32, message = "bqd,bkd->bqk"}> : () -> ()
    %cst_60 = arith.constant dense<0.000000e+00> : vector<2x8x8xf32>
    %225 = tpu.matmul %222, %224, %cst_60 {dimension_numbers = #tpu.dot_dimension_numbers<[2], [2], [1], [1], [0, 0, 0, 1, 1, 1], [0], [0]>} : vector<2x8x8xbf16>, vector<2x8x8xbf16>, vector<2x8x8xf32> -> vector<2x8x8xf32>
    "tpu.trace_stop"() : () -> ()
    %cst_61 = arith.constant 0.353553385 : f32
    %226 = vector.broadcast %cst_61 : f32 to vector<2x8x8xf32>
    %227 = arith.mulf %225, %226 : vector<2x8x8xf32>
    %cst_62 = arith.constant dense<0xFF800000> : vector<2x8xf32>
    %228 = vector.multi_reduction <maximumf>, %227, %cst_62 [2] : vector<2x8x8xf32> to vector<2x8xf32>
    %229 = vector.shape_cast %228 : vector<2x8xf32> to vector<2x8x1xf32>
    %230 = vector.broadcast %229 : vector<2x8x1xf32> to vector<2x8x8xf32>
    %231 = arith.subf %227, %230 : vector<2x8x8xf32>
    %232 = math.exp %231 : vector<2x8x8xf32>
    %cst_63 = arith.constant dense<0.000000e+00> : vector<2x8xf32>
    %233 = vector.multi_reduction <add>, %232, %cst_63 [2] : vector<2x8x8xf32> to vector<2x8xf32>
    %234 = vector.shape_cast %233 : vector<2x8xf32> to vector<2x8x1xf32>
    %235 = tpu.reciprocal %234 {approx = true} : vector<2x8x1xf32> -> vector<2x8x1xf32>
    %236 = vector.broadcast %235 : vector<2x8x1xf32> to vector<2x8x8xf32>
    %237 = arith.mulf %232, %236 : vector<2x8x8xf32>
    %238 = arith.truncf %237 : vector<2x8x8xf32> to vector<2x8x8xbf16>
    %239 = vector.extract_strided_slice %193 {offsets = [0, 0, 8], sizes = [2, 8, 8], strides = [1, 1, 1]} : vector<2x8x32xf32> to vector<2x8x8xf32>
    %240 = arith.truncf %239 : vector<2x8x8xf32> to vector<2x8x8xbf16>
    "tpu.trace_start"() <{level = 10 : i32, message = "bqk,bkd->bqd"}> : () -> ()
    %cst_64 = arith.constant dense<0.000000e+00> : vector<2x8x8xf32>
    %241 = tpu.matmul %238, %240, %cst_64 {dimension_numbers = #tpu.dot_dimension_numbers<[2], [1], [1], [2], [0, 0, 0, 1, 1, 2], [0], [0]>} : vector<2x8x8xbf16>, vector<2x8x8xbf16>, vector<2x8x8xf32> -> vector<2x8x8xf32>
    "tpu.trace_stop"() : () -> ()
    %242 = vector.shape_cast %241 : vector<2x8x8xf32> to vector<16x8xf32>
    %243 = arith.truncf %242 : vector<16x8xf32> to vector<16x8xbf16>
    %244 = vector.extract_strided_slice %189 {offsets = [8, 0], sizes = [8, 32], strides = [1, 1]} : vector<32x32xbf16> to vector<8x32xbf16>
    %cst_65 = arith.constant dense<0.000000e+00> : vector<16x32xf32>
    %245 = tpu.matmul %243, %244, %cst_65 {dimension_numbers = #tpu.dot_dimension_numbers<[1], [0], [0], [1], [0, 0, 1, 1], [], []>} : vector<16x8xbf16>, vector<8x32xbf16>, vector<16x32xf32> -> vector<16x32xf32>
    %246 = arith.addf %220, %245 : vector<16x32xf32>
    %247 = vector.extract_strided_slice %191 {offsets = [0, 0, 16], sizes = [2, 8, 8], strides = [1, 1, 1]} : vector<2x8x32xf32> to vector<2x8x8xf32>
    %248 = arith.truncf %247 : vector<2x8x8xf32> to vector<2x8x8xbf16>
    %249 = vector.extract_strided_slice %192 {offsets = [0, 0, 16], sizes = [2, 8, 8], strides = [1, 1, 1]} : vector<2x8x32xf32> to vector<2x8x8xf32>
    %250 = arith.truncf %249 : vector<2x8x8xf32> to vector<2x8x8xbf16>
    "tpu.trace_start"() <{level = 10 : i32, message = "bqd,bkd->bqk"}> : () -> ()
    %cst_66 = arith.constant dense<0.000000e+00> : vector<2x8x8xf32>
    %251 = tpu.matmul %248, %250, %cst_66 {dimension_numbers = #tpu.dot_dimension_numbers<[2], [2], [1], [1], [0, 0, 0, 1, 1, 1], [0], [0]>} : vector<2x8x8xbf16>, vector<2x8x8xbf16>, vector<2x8x8xf32> -> vector<2x8x8xf32>
    "tpu.trace_stop"() : () -> ()
    %cst_67 = arith.constant 0.353553385 : f32
    %252 = vector.broadcast %cst_67 : f32 to vector<2x8x8xf32>
    %253 = arith.mulf %251, %252 : vector<2x8x8xf32>
    %cst_68 = arith.constant dense<0xFF800000> : vector<2x8xf32>
    %254 = vector.multi_reduction <maximumf>, %253, %cst_68 [2] : vector<2x8x8xf32> to vector<2x8xf32>
    %255 = vector.shape_cast %254 : vector<2x8xf32> to vector<2x8x1xf32>
    %256 = vector.broadcast %255 : vector<2x8x1xf32> to vector<2x8x8xf32>
    %257 = arith.subf %253, %256 : vector<2x8x8xf32>
    %258 = math.exp %257 : vector<2x8x8xf32>
    %cst_69 = arith.constant dense<0.000000e+00> : vector<2x8xf32>
    %259 = vector.multi_reduction <add>, %258, %cst_69 [2] : vector<2x8x8xf32> to vector<2x8xf32>
    %260 = vector.shape_cast %259 : vector<2x8xf32> to vector<2x8x1xf32>
    %261 = tpu.reciprocal %260 {approx = true} : vector<2x8x1xf32> -> vector<2x8x1xf32>
    %262 = vector.broadcast %261 : vector<2x8x1xf32> to vector<2x8x8xf32>
    %263 = arith.mulf %258, %262 : vector<2x8x8xf32>
    %264 = arith.truncf %263 : vector<2x8x8xf32> to vector<2x8x8xbf16>
    %265 = vector.extract_strided_slice %193 {offsets = [0, 0, 16], sizes = [2, 8, 8], strides = [1, 1, 1]} : vector<2x8x32xf32> to vector<2x8x8xf32>
    %266 = arith.truncf %265 : vector<2x8x8xf32> to vector<2x8x8xbf16>
    "tpu.trace_start"() <{level = 10 : i32, message = "bqk,bkd->bqd"}> : () -> ()
    %cst_70 = arith.constant dense<0.000000e+00> : vector<2x8x8xf32>
    %267 = tpu.matmul %264, %266, %cst_70 {dimension_numbers = #tpu.dot_dimension_numbers<[2], [1], [1], [2], [0, 0, 0, 1, 1, 2], [0], [0]>} : vector<2x8x8xbf16>, vector<2x8x8xbf16>, vector<2x8x8xf32> -> vector<2x8x8xf32>
    "tpu.trace_stop"() : () -> ()
    %268 = vector.shape_cast %267 : vector<2x8x8xf32> to vector<16x8xf32>
    %269 = arith.truncf %268 : vector<16x8xf32> to vector<16x8xbf16>
    %270 = vector.extract_strided_slice %189 {offsets = [16, 0], sizes = [8, 32], strides = [1, 1]} : vector<32x32xbf16> to vector<8x32xbf16>
    %cst_71 = arith.constant dense<0.000000e+00> : vector<16x32xf32>
    %271 = tpu.matmul %269, %270, %cst_71 {dimension_numbers = #tpu.dot_dimension_numbers<[1], [0], [0], [1], [0, 0, 1, 1], [], []>} : vector<16x8xbf16>, vector<8x32xbf16>, vector<16x32xf32> -> vector<16x32xf32>
    %272 = arith.addf %246, %271 : vector<16x32xf32>
    %273 = vector.extract_strided_slice %191 {offsets = [0, 0, 24], sizes = [2, 8, 8], strides = [1, 1, 1]} : vector<2x8x32xf32> to vector<2x8x8xf32>
    %274 = arith.truncf %273 : vector<2x8x8xf32> to vector<2x8x8xbf16>
    %275 = vector.extract_strided_slice %192 {offsets = [0, 0, 24], sizes = [2, 8, 8], strides = [1, 1, 1]} : vector<2x8x32xf32> to vector<2x8x8xf32>
    %276 = arith.truncf %275 : vector<2x8x8xf32> to vector<2x8x8xbf16>
    "tpu.trace_start"() <{level = 10 : i32, message = "bqd,bkd->bqk"}> : () -> ()
    %cst_72 = arith.constant dense<0.000000e+00> : vector<2x8x8xf32>
    %277 = tpu.matmul %274, %276, %cst_72 {dimension_numbers = #tpu.dot_dimension_numbers<[2], [2], [1], [1], [0, 0, 0, 1, 1, 1], [0], [0]>} : vector<2x8x8xbf16>, vector<2x8x8xbf16>, vector<2x8x8xf32> -> vector<2x8x8xf32>
    "tpu.trace_stop"() : () -> ()
    %cst_73 = arith.constant 0.353553385 : f32
    %278 = vector.broadcast %cst_73 : f32 to vector<2x8x8xf32>
    %279 = arith.mulf %277, %278 : vector<2x8x8xf32>
    %cst_74 = arith.constant dense<0xFF800000> : vector<2x8xf32>
    %280 = vector.multi_reduction <maximumf>, %279, %cst_74 [2] : vector<2x8x8xf32> to vector<2x8xf32>
    %281 = vector.shape_cast %280 : vector<2x8xf32> to vector<2x8x1xf32>
    %282 = vector.broadcast %281 : vector<2x8x1xf32> to vector<2x8x8xf32>
    %283 = arith.subf %279, %282 : vector<2x8x8xf32>
    %284 = math.exp %283 : vector<2x8x8xf32>
    %cst_75 = arith.constant dense<0.000000e+00> : vector<2x8xf32>
    %285 = vector.multi_reduction <add>, %284, %cst_75 [2] : vector<2x8x8xf32> to vector<2x8xf32>
    %286 = vector.shape_cast %285 : vector<2x8xf32> to vector<2x8x1xf32>
    %287 = tpu.reciprocal %286 {approx = true} : vector<2x8x1xf32> -> vector<2x8x1xf32>
    %288 = vector.broadcast %287 : vector<2x8x1xf32> to vector<2x8x8xf32>
    %289 = arith.mulf %284, %288 : vector<2x8x8xf32>
    %290 = arith.truncf %289 : vector<2x8x8xf32> to vector<2x8x8xbf16>
    %291 = vector.extract_strided_slice %193 {offsets = [0, 0, 24], sizes = [2, 8, 8], strides = [1, 1, 1]} : vector<2x8x32xf32> to vector<2x8x8xf32>
    %292 = arith.truncf %291 : vector<2x8x8xf32> to vector<2x8x8xbf16>
    "tpu.trace_start"() <{level = 10 : i32, message = "bqk,bkd->bqd"}> : () -> ()
    %cst_76 = arith.constant dense<0.000000e+00> : vector<2x8x8xf32>
    %293 = tpu.matmul %290, %292, %cst_76 {dimension_numbers = #tpu.dot_dimension_numbers<[2], [1], [1], [2], [0, 0, 0, 1, 1, 2], [0], [0]>} : vector<2x8x8xbf16>, vector<2x8x8xbf16>, vector<2x8x8xf32> -> vector<2x8x8xf32>
    "tpu.trace_stop"() : () -> ()
    %294 = vector.shape_cast %293 : vector<2x8x8xf32> to vector<16x8xf32>
    %295 = arith.truncf %294 : vector<16x8xf32> to vector<16x8xbf16>
    %296 = vector.extract_strided_slice %189 {offsets = [24, 0], sizes = [8, 32], strides = [1, 1]} : vector<32x32xbf16> to vector<8x32xbf16>
    %cst_77 = arith.constant dense<0.000000e+00> : vector<16x32xf32>
    %297 = tpu.matmul %295, %296, %cst_77 {dimension_numbers = #tpu.dot_dimension_numbers<[1], [0], [0], [1], [0, 0, 1, 1], [], []>} : vector<16x8xbf16>, vector<8x32xbf16>, vector<16x32xf32> -> vector<16x32xf32>
    %298 = arith.addf %272, %297 : vector<16x32xf32>
    %299 = vector.broadcast %190 : vector<1x32xf32> to vector<16x32xf32>
    %300 = arith.addf %298, %299 : vector<16x32xf32>
    %301 = arith.addf %157, %300 : vector<16x32xf32>
    %c2 = arith.constant 2 : index
    %302 = memref.load %arg0[%c2] : memref<3xf32, #tpu.memory_space<smem>>
    %c2_78 = arith.constant 2 : index
    %303 = memref.load %arg1[%c2_78] : memref<3xf32, #tpu.memory_space<smem>>
    %cst_79 = arith.constant dense<0.000000e+00> : vector<16xf32>
    %304 = vector.multi_reduction <add>, %301, %cst_79 [1] : vector<16x32xf32> to vector<16xf32>
    %305 = vector.shape_cast %304 : vector<16xf32> to vector<16x1xf32>
    %cst_80 = arith.constant 3.200000e+01 : f32
    %306 = vector.broadcast %cst_80 : f32 to vector<16x1xf32>
    %307 = arith.divf %305, %306 : vector<16x1xf32>
    %308 = vector.broadcast %307 : vector<16x1xf32> to vector<16x32xf32>
    %309 = arith.subf %301, %308 : vector<16x32xf32>
    %310 = arith.mulf %309, %309 : vector<16x32xf32>
    %cst_81 = arith.constant dense<0.000000e+00> : vector<16xf32>
    %311 = vector.multi_reduction <add>, %310, %cst_81 [1] : vector<16x32xf32> to vector<16xf32>
    %312 = vector.shape_cast %311 : vector<16xf32> to vector<16x1xf32>
    %cst_82 = arith.constant 0.0322580636 : f32
    %313 = vector.broadcast %cst_82 : f32 to vector<16x1xf32>
    %314 = arith.mulf %312, %313 : vector<16x1xf32>
    %315 = vector.broadcast %302 : f32 to vector<16x32xf32>
    %316 = arith.mulf %315, %309 : vector<16x32xf32>
    %317 = math.sqrt %314 : vector<16x1xf32>
    %cst_83 = arith.constant 9.99999997E-7 : f32
    %318 = vector.broadcast %cst_83 : f32 to vector<16x1xf32>
    %319 = arith.addf %317, %318 : vector<16x1xf32>
    %320 = tpu.reciprocal %319 : vector<16x1xf32> -> vector<16x1xf32>
    %321 = vector.broadcast %320 : vector<16x1xf32> to vector<16x32xf32>
    %322 = arith.mulf %316, %321 : vector<16x32xf32>
    %323 = vector.broadcast %303 : f32 to vector<16x32xf32>
    %324 = arith.addf %322, %323 : vector<16x32xf32>
    %325 = arith.truncf %324 : vector<16x32xf32> to vector<16x32xbf16>
    %c0_84 = arith.constant 0 : index
    %c0_85 = arith.constant 0 : index
    %326 = vector.load %arg8[%c0_84, %c0_85] : memref<32x64xbf16, #tpu.memory_space<vmem>>, vector<32x64xbf16>
    %cst_86 = arith.constant dense<0.000000e+00> : vector<16x64xf32>
    %327 = tpu.matmul %325, %326, %cst_86 {dimension_numbers = #tpu.dot_dimension_numbers<[1], [0], [0], [1], [0, 0, 1, 1], [], []>} : vector<16x32xbf16>, vector<32x64xbf16>, vector<16x64xf32> -> vector<16x64xf32>
    %c0_87 = arith.constant 0 : index
    %c0_88 = arith.constant 0 : index
    %328 = vector.load %arg9[%c0_87, %c0_88] : memref<1x64xf32, #tpu.memory_space<vmem>>, vector<1x64xf32>
    %329 = vector.broadcast %328 : vector<1x64xf32> to vector<16x64xf32>
    %330 = arith.addf %327, %329 : vector<16x64xf32>
    %cst_89 = arith.constant 0.000000e+00 : f32
    %331 = vector.broadcast %cst_89 : f32 to vector<16x64xf32>
    %332 = arith.maximumf %330, %331 : vector<16x64xf32>
    %333 = arith.truncf %332 : vector<16x64xf32> to vector<16x64xbf16>
    %c0_90 = arith.constant 0 : index
    %c0_91 = arith.constant 0 : index
    %334 = vector.load %arg10[%c0_90, %c0_91] : memref<64x32xbf16, #tpu.memory_space<vmem>>, vector<64x32xbf16>
    %cst_92 = arith.constant dense<0.000000e+00> : vector<16x32xf32>
    %335 = tpu.matmul %333, %334, %cst_92 {dimension_numbers = #tpu.dot_dimension_numbers<[1], [0], [0], [1], [0, 0, 1, 1], [], []>} : vector<16x64xbf16>, vector<64x32xbf16>, vector<16x32xf32> -> vector<16x32xf32>
    %c0_93 = arith.constant 0 : index
    %c0_94 = arith.constant 0 : index
    %336 = vector.load %arg11[%c0_93, %c0_94] : memref<1x32xf32, #tpu.memory_space<vmem>>, vector<1x32xf32>
    %337 = vector.broadcast %336 : vector<1x32xf32> to vector<16x32xf32>
    %338 = arith.addf %335, %337 : vector<16x32xf32>
    %339 = arith.addf %301, %338 : vector<16x32xf32>
    %340 = vector.shape_cast %339 : vector<16x32xf32> to vector<2x8x32xf32>
    %c0_95 = arith.constant 0 : index
    %c0_96 = arith.constant 0 : index
    %c0_97 = arith.constant 0 : index
    %341 = vector.load %arg12[%c0_95, %c0_96, %c0_97] : memref<2x8x32xf32, #tpu.memory_space<vmem>>, vector<2x8x32xf32>
    tpu.vector_store %arg12[%c0_95, %c0_96, %c0_97], %340 {strides = array<i32>} : memref<2x8x32xf32, #tpu.memory_space<vmem>>, vector<2x8x32xf32>,
    return
  }
}

</mosaic_0001>

<llo_original>
// kernel: tpu_custom_call.1
$region0: #{tpu_custom_call.1}
  #allocation0 [shape = 'u32[]', space=smem, size = 0x4, offset = 0x4, fixed_abs, tag = 'smem constant byte address 0x4 - core index']
  #allocation1 [shape = 'u32[144,128]{1,0:T(1,128)}', space=vmem, size = 0x12000, scoped, tag = 'internal scratch']
  %s0 = inlined_call_operand.hbm [shape: f32[3], index: 0, kind: input, shape index: {}]
  %s1 = inlined_call_operand.vmem [shape: f32[3], index: 1, kind: input, shape index: {}]
  %s2 = inlined_call_operand.vmem [shape: f32[2,8,32], index: 2, kind: input, shape index: {}]
  %s3 = inlined_call_operand.vmem [shape: f32[2,8,32], index: 3, kind: input, shape index: {}]
  %s4 = inlined_call_operand.vmem [shape: bf16[32,96], index: 4, kind: input, shape index: {}]
  %s5 = inlined_call_operand.vmem [shape: f32[1,96], index: 5, kind: input, shape index: {}]
  %s6 = inlined_call_operand.hbm [shape: bf16[32,96], index: 6, kind: input, shape index: {}]
  %s7 = inlined_call_operand.hbm [shape: f32[1,96], index: 7, kind: input, shape index: {}]
  %s8 = inlined_call_operand.hbm [shape: bf16[32,64], index: 8, kind: input, shape index: {}]
  %s9 = inlined_call_operand.hbm [shape: f32[1,64], index: 9, kind: input, shape index: {}]
  %s10 = inlined_call_operand.vmem [shape: bf16[64,32], index: 10, kind: input, shape index: {}]
  %s11 = inlined_call_operand.vmem [shape: f32[1,32], index: 11, kind: input, shape index: {}]
  %s12 = inlined_call_operand.hbm [shape: f32[2,8,32], index: 12, kind: output, shape index: {}]
  %s13 = sld [smem:[#allocation0]]
  $region82: #{tpu_custom_call.1} parent=0
    _
  %s15 = ssub.s32 1, %s13
  %s16 = scalar_select 0, %s15, %s13
  $region1: #{tpu_custom_call.1} parent=0
    #allocation2 [shape = 'u8[512]{0}', space=smem, size = 0x200, scoped, tag = 'input window, operand 0, single buffered']
    #allocation3 [shape = 's32[1]{0}', space=sflag, size = 0x4, scoped, tag = 'scoped memory for tpu_custom_call.1']
    #allocation4 [shape = 's32[1]{0}', space=sflag, size = 0x4, scoped, tag = 'scoped memory for tpu_custom_call.1']
    #allocation5 [shape = 's32[1]{0}', space=sflag, size = 0x4, scoped, tag = 'scoped memory for tpu_custom_call.1']
    #allocation6 [shape = 's32[1]{0}', space=sflag, size = 0x4, scoped, tag = 'scoped memory for tpu_custom_call.1']
    #allocation7 [shape = 'u8[512]{0}', space=smem, size = 0x200, scoped, tag = 'input window, operand 1, single buffered']
    #allocation8 [shape = 'u8[8192]{0}', space=vmem, size = 0x2000, scoped, tag = 'input window, operand 6, single buffered']
    #allocation9 [shape = 'u8[512]{0}', space=vmem, size = 0x400, scoped, tag = 'input window, operand 7, single buffered']
    #allocation10 [shape = 's32[1]{0}', space=sflag, size = 0x4, scoped, tag = 'scoped memory for tpu_custom_call.1']
    #allocation11 [shape = 'u8[8192]{0}', space=vmem, size = 0x2000, scoped, tag = 'input window, operand 8, single buffered']
    #allocation12 [shape = 'u8[512]{0}', space=vmem, size = 0x400, scoped, tag = 'input window, operand 9, single buffered']
    #allocation13 [shape = 's32[1]{0}', space=sflag, size = 0x4, scoped, tag = 'scoped memory for tpu_custom_call.1']
    #allocation14 [shape = 'u8[8192]{0}', space=vmem, size = 0x2000, scoped, tag = 'output window, operand 0, single buffered']
    %17 = vsyncpa [#allocation5], 0
    %18 = vsyncpa [#allocation6], 0
    %19 = vsyncpa [#allocation3], 0
    %20 = vsyncpa [#allocation10], 0
    %21 = vsyncpa [#allocation13], 0
    %22 = vsyncpa [#allocation4], 0
    // Predicated region
    $region2: #{tpu_custom_call.1} parent=1 // pred_check
      _
    $region3: #{tpu_custom_call.1} parent=1 // pred_check_branch
      %24 = sbr.rel (0) target = $region5
    $region4: #{tpu_custom_call.1} parent=1 // pred_region
      %s26 = ssub.s32 16, 16
      %27 = vsyncadd [#allocation5], %s26
      %30 = dma.hbm_to_smem %s0, 16, [#allocation2], [#allocation5]
    $region5: #{tpu_custom_call.1} parent=1 // pred_fallthru
      _
    // Predicated region
    $region6: #{tpu_custom_call.1} parent=1 // pred_check
      _
    $region7: #{tpu_custom_call.1} parent=1 // pred_check_branch
      %32 = sbr.rel (0) target = $region9
    $region8: #{tpu_custom_call.1} parent=1 // pred_region
      %s34 = ssub.s32 16, 16
      %35 = vsyncadd [#allocation6], %s34
      %s37 = sshll.u32 %s1, 4
      %s38 = int_to_ptr.vmem [resolvable:$true] %s37
      %40 = dma.vmem_to_smem %s38, 16, [#allocation7], [#allocation6]
    $region9: #{tpu_custom_call.1} parent=1 // pred_fallthru
      _
    // Predicated region
    $region10: #{tpu_custom_call.1} parent=1 // pred_check
      _
    $region11: #{tpu_custom_call.1} parent=1 // pred_check_branch
      %42 = sbr.rel (0) target = $region13
    $region12: #{tpu_custom_call.1} parent=1 // pred_region
      _
    $region13: #{tpu_custom_call.1} parent=1 // pred_fallthru
      _
    // Predicated region
    $region14: #{tpu_custom_call.1} parent=1 // pred_check
      _
    $region15: #{tpu_custom_call.1} parent=1 // pred_check_branch
      %44 = sbr.rel (0) target = $region17
    $region16: #{tpu_custom_call.1} parent=1 // pred_region
      _
    $region17: #{tpu_custom_call.1} parent=1 // pred_fallthru
      _
    // Predicated region
    $region18: #{tpu_custom_call.1} parent=1 // pred_check
      _
    $region19: #{tpu_custom_call.1} parent=1 // pred_check_branch
      %46 = sbr.rel (0) target = $region21
    $region20: #{tpu_custom_call.1} parent=1 // pred_region
      _
    $region21: #{tpu_custom_call.1} parent=1 // pred_fallthru
      _
    // Predicated region
    $region22: #{tpu_custom_call.1} parent=1 // pred_check
      _
    $region23: #{tpu_custom_call.1} parent=1 // pred_check_branch
      %48 = sbr.rel (0) target = $region25
    $region24: #{tpu_custom_call.1} parent=1 // pred_region
      _
    $region25: #{tpu_custom_call.1} parent=1 // pred_fallthru
      _
    // Predicated region
    $region26: #{tpu_custom_call.1} parent=1 // pred_check
      _
    $region27: #{tpu_custom_call.1} parent=1 // pred_check_branch
      %50 = sbr.rel (0) target = $region29
    $region28: #{tpu_custom_call.1} parent=1 // pred_region
      %s52 = ssub.s32 256, 256
      %53 = vsyncadd [#allocation3], %s52
      %s54 = sshll.u32 [#allocation8], 4
      %s55 = int_to_ptr.vmem [resolvable:$true] %s54
      %60 = dma.hbm_to_vmem [thread:$0]  %s6, 256, %s55, [#allocation3], 64, 64, 4
    $region29: #{tpu_custom_call.1} parent=1 // pred_fallthru
      _
    // Predicated region
    $region30: #{tpu_custom_call.1} parent=1 // pred_check
      _
    $region31: #{tpu_custom_call.1} parent=1 // pred_check_branch
      %62 = sbr.rel (0) target = $region33
    $region32: #{tpu_custom_call.1} parent=1 // pred_region
      %s64 = ssub.s32 16, 16
      %65 = vsyncadd [#allocation10], %s64
      %s67 = sshll.u32 [#allocation9], 4
      %s68 = int_to_ptr.vmem [resolvable:$true] %s67
      %70 = dma.hbm_to_vmem [thread:$0]  %s7, 16, %s68, [#allocation10]
    $region33: #{tpu_custom_call.1} parent=1 // pred_fallthru
      _
    // Predicated region
    $region34: #{tpu_custom_call.1} parent=1 // pred_check
      _
    $region35: #{tpu_custom_call.1} parent=1 // pred_check_branch
      %72 = sbr.rel (0) target = $region37
    $region36: #{tpu_custom_call.1} parent=1 // pred_region
      %s74 = ssub.s32 256, 256
      %75 = vsyncadd [#allocation10], %s74
      %s76 = sshll.u32 [#allocation11], 4
      %s77 = int_to_ptr.vmem [resolvable:$true] %s76
      %82 = dma.hbm_to_vmem [thread:$0]  %s8, 256, %s77, [#allocation10], 64, 64, 4
    $region37: #{tpu_custom_call.1} parent=1 // pred_fallthru
      _
    // Predicated region
    $region38: #{tpu_custom_call.1} parent=1 // pred_check
      _
    $region39: #{tpu_custom_call.1} parent=1 // pred_check_branch
      %84 = sbr.rel (0) target = $region41
    $region40: #{tpu_custom_call.1} parent=1 // pred_region
      %s86 = ssub.s32 16, 16
      %87 = vsyncadd [#allocation13], %s86
      %s89 = sshll.u32 [#allocation12], 4
      %s90 = int_to_ptr.vmem [resolvable:$true] %s89
      %92 = dma.hbm_to_vmem [thread:$0]  %s9, 16, %s90, [#allocation13]
    $region41: #{tpu_custom_call.1} parent=1 // pred_fallthru
      _
    // Predicated region
    $region42: #{tpu_custom_call.1} parent=1 // pred_check
      _
    $region43: #{tpu_custom_call.1} parent=1 // pred_check_branch
      %94 = sbr.rel (0) target = $region45
    $region44: #{tpu_custom_call.1} parent=1 // pred_region
      _
    $region45: #{tpu_custom_call.1} parent=1 // pred_fallthru
      _
    // Predicated region
    $region46: #{tpu_custom_call.1} parent=1 // pred_check
      _
    $region47: #{tpu_custom_call.1} parent=1 // pred_check_branch
      %96 = sbr.rel (0) target = $region49
    $region48: #{tpu_custom_call.1} parent=1 // pred_region
      _
    $region49: #{tpu_custom_call.1} parent=1 // pred_fallthru
      _
    // Predicated region
    $region50: #{tpu_custom_call.1} parent=1 // pred_check
      _
    $region51: #{tpu_custom_call.1} parent=1 // pred_check_branch
      %98 = sbr.rel (0) target = $region53
    $region52: #{tpu_custom_call.1} parent=1 // pred_region
      %99 = dma.done [#allocation5], 16
    $region53: #{tpu_custom_call.1} parent=1 // pred_fallthru
      _
    // Predicated region
    $region54: #{tpu_custom_call.1} parent=1 // pred_check
      _
    $region55: #{tpu_custom_call.1} parent=1 // pred_check_branch
      %101 = sbr.rel (0) target = $region57
    $region56: #{tpu_custom_call.1} parent=1 // pred_region
      %102 = dma.done [#allocation6], 16
    $region57: #{tpu_custom_call.1} parent=1 // pred_fallthru
      _
    // Predicated region
    $region58: #{tpu_custom_call.1} parent=1 // pred_check
      _
    $region59: #{tpu_custom_call.1} parent=1 // pred_check_branch
      %104 = sbr.rel (0) target = $region61
    $region60: #{tpu_custom_call.1} parent=1 // pred_region
      %105 = dma.done [#allocation3], 256
    $region61: #{tpu_custom_call.1} parent=1 // pred_fallthru
      _
    // Predicated region
    $region62: #{tpu_custom_call.1} parent=1 // pred_check
      _
    $region63: #{tpu_custom_call.1} parent=1 // pred_check_branch
      %107 = sbr.rel (0) target = $region65
    $region64: #{tpu_custom_call.1} parent=1 // pred_region
      %108 = dma.done [#allocation10], 16
    $region65: #{tpu_custom_call.1} parent=1 // pred_fallthru
      _
    // Predicated region
    $region66: #{tpu_custom_call.1} parent=1 // pred_check
      _
    $region67: #{tpu_custom_call.1} parent=1 // pred_check_branch
      %110 = sbr.rel (0) target = $region69
    $region68: #{tpu_custom_call.1} parent=1 // pred_region
      %111 = dma.done [#allocation10], 256
    $region69: #{tpu_custom_call.1} parent=1 // pred_fallthru
      _
    // Predicated region
    $region70: #{tpu_custom_call.1} parent=1 // pred_check
      _
    $region71: #{tpu_custom_call.1} parent=1 // pred_check_branch
      %113 = sbr.rel (0) target = $region73
    $region72: #{tpu_custom_call.1} parent=1 // pred_region
      %114 = dma.done [#allocation13], 16
    $region73: #{tpu_custom_call.1} parent=1 // pred_fallthru
      _
    %115 = sfence
    %v117 = vld [vmem:[%s2] sm:$0xff]
    %v118 = vld [vmem:[%s2 + $0x8] sm:$0xff]
    %v119 = vld [vmem:[%s3] sm:$0xff]
    %v120 = vld [vmem:[%s3 + $0x8] sm:$0xff]
    %v121 = vld [vmem:[%s4] sm:$0xf]
    %v122 = vld [vmem:[%s4 + $0x4] sm:$0xf]
    %v123 = vld [vmem:[%s4 + $0x8] sm:$0xf]
    %v124 = vld [vmem:[%s4 + $0xc] sm:$0xf]
    %v125 = vld [vmem:[%s5] sm:$0x1]
    %v126 = vld [vmem:[#allocation8] sm:$0xf]
    %v127 = vld [vmem:[#allocation8 + $0x4] sm:$0xf]
    %v128 = vld [vmem:[#allocation8 + $0x8] sm:$0xf]
    %v129 = vld [vmem:[#allocation8 + $0xc] sm:$0xf]
    %v130 = vld [vmem:[#allocation9] sm:$0x1]
    %v131 = vpack.c.bf16 %v120, %v119
    %v133 = vlaneseq
    %v134 = vshrl.u32 %v133, 7
    %v135 = vsub.s32 0, %v134
    %v136 = vrot.slane %v130, %v135
    %v142 = vunpack.c.l.b16 %v126
    %v143 = vunpack.c.l.b16 %v127
    %v144 = vunpack.c.l.b16 %v128
    %v145 = vunpack.c.l.b16 %v129
    %v146 = vpack.c.b16 %v143, %v142
    %v147 = vpack.c.b16 %v145, %v144
    %vm150 = vcmask 261120
    %v152 = vsel %vm150, %v131, 0
    %154 = vmatprep.subr.bf16.mxu0 0
    %155 = vmatpush1.bf16.msra.mxu0 0
    %156 = vmatprep.subr.bf16.mxu0 0
    %157 = vmatpush1.bf16.msra.mxu0 0
    %158 = vmatprep.subr.bf16.mxu0 0
    %159 = vmatpush1.bf16.msra.mxu0 0
    %160 = vmatprep.subr.bf16.mxu0 0
    %161 = vmatpush1.bf16.msra.mxu0 0
    %162 = vmatprep.subr.bf16.mxu0 0
    %163 = vmatpush1.bf16.msra.mxu0 0
    %164 = vmatprep.subr.bf16.mxu0 0
    %165 = vmatpush1.bf16.msra.mxu0 0
    %166 = vmatprep.subr.bf16.mxu0 0
    %167 = vmatpush1.bf16.msra.mxu0 %v147
    %168 = vmatprep.subr.bf16.mxu0 0
    %169 = vmatpush1.bf16.msra.mxu0 %v146
    %170 = vmatprep.subr.bf16.mxu0 0
    %171 = vmatpush2.bf16.msra.mxu0 0
    %172 = vmatprep.subr.bf16.mxu0 0
    %173 = vmatpush2.bf16.msra.mxu0 0
    %174 = vmatprep.subr.bf16.mxu0 0
    %175 = vmatpush2.bf16.msra.mxu0 0
    %176 = vmatprep.subr.bf16.mxu0 0
    %177 = vmatpush2.bf16.msra.mxu0 0
    %178 = vmatprep.subr.bf16.mxu0 0
    %179 = vmatpush2.bf16.msra.mxu0 0
    %180 = vmatprep.subr.bf16.mxu0 0
    %181 = vmatpush2.bf16.msra.mxu0 0
    %182 = vmatprep.subr.bf16.mxu0 0
    %183 = vmatpush2.bf16.msra.mxu0 0
    %184 = vmatprep.subr.bf16.mxu0 0
    %185 = vmatpush2.bf16.msra.mxu0 0
    %186 = vmatprep.mubr.bf16.mxu0 0
    %187 = vmatmul.mubr.bf16.gmra.mxu0 %v152
    %v188 = vpop.f32.mrf.mxu0
    %v189 = vadd.f32 %v136, %v188
    %v190 = vpop.f32.mrf.mxu0
    %v191 = vpop.f32.mrf.mxu0
    %v192 = vadd.f32 %v136, %v191
    %v193 = vpop.f32.mrf.mxu0
    %194 = vdwg.mxu0
    %s195 = sld [smem:[#allocation2]]
    %s196 = sld [smem:[#allocation7]]
    %v197 = vsel %vm150, %v117, 0.0
    %198 = vadd.xlane.f32.xlu0 %v197
    %v199 = vpop.xlane.xlu0 %198
    %v200 = vsel %vm150, %v118, 0.0
    %201 = vadd.xlane.f32.xlu0 %v200
    %v202 = vpop.xlane.xlu0 %201
    %v203 = vrcp.pop 32.0
    %v204 = vmul.f32 %v199, %v203
    %v205 = vmul.f32 %v202, %v203
    %v206 = vsub.f32 %v117, %v204
    %v207 = vsub.f32 %v118, %v205
    %v208 = vmul.f32 %v206, %v206
    %v209 = vmul.f32 %v207, %v207
    %v210 = vsel %vm150, %v208, 0.0
    %211 = vadd.xlane.f32.xlu0 %v210
    %v212 = vpop.xlane.xlu0 %211
    %v213 = vsel %vm150, %v209, 0.0
    %214 = vadd.xlane.f32.xlu0 %v213
    %v215 = vpop.xlane.xlu0 %214
    %v216 = vmul.f32 %v212, 0.032258064
    %v217 = vmul.f32 %v215, 0.032258064
    %v218 = vstv %s195
    %v219 = vmul.f32 %v218, %v206
    %v220 = vmul.f32 %v218, %v207
    %v221 = vrsqrt.pop %v216
    %v222 = vmul.f32 %v216, %v221
    %vm223 = vcmp.eq.f32.partialorder %v216, inf
    %v224 = vsel %vm223, %v216, %v222
    %vm225 = vcmp.eq.f32.partialorder %v216, 0.0
    %v226 = vand.u32 %v216, 2147483648
    %v227 = vsel %vm225, %v226, %v224
    %v228 = vrsqrt.pop %v217
    %v229 = vmul.f32 %v217, %v228
    %vm230 = vcmp.eq.f32.partialorder %v217, inf
    %v231 = vsel %vm230, %v217, %v229
    %vm232 = vcmp.eq.f32.partialorder %v217, 0.0
    %v233 = vand.u32 %v217, 2147483648
    %v234 = vsel %vm232, %v233, %v231
    %v235 = vadd.f32 %v227, 1e-06
    %v236 = vadd.f32 %v234, 1e-06
    %v237 = vrcp.pop %v235
    %v238 = vrcp.pop %v236
    %v239 = vmul.f32 %v219, %v237
    %v240 = vmul.f32 %v220, %v238
    %v241 = vstv %s196
    %v242 = vadd.f32 %v239, %v241
    %v243 = vadd.f32 %v240, %v241
    %v244 = vpack.c.bf16 %v243, %v242
    %v246 = vlaneseq
    %v247 = vshrl.u32 %v246, 7
    %v248 = vsub.s32 0, %v247
    %v249 = vrot.slane %v125, %v248
    %v255 = vunpack.c.l.b16 %v121
    %v256 = vunpack.c.l.b16 %v122
    %v257 = vunpack.c.l.b16 %v123
    %v258 = vunpack.c.l.b16 %v124
    %v259 = vpack.c.b16 %v256, %v255
    %v260 = vpack.c.b16 %v258, %v257
    %v264 = vsel %vm150, %v244, 0
    %266 = vmatprep.subr.bf16.mxu0 0
    %267 = vmatpush1.bf16.msra.mxu0 0
    %268 = vmatprep.subr.bf16.mxu0 0
    %269 = vmatpush1.bf16.msra.mxu0 0
    %270 = vmatprep.subr.bf16.mxu0 0
    %271 = vmatpush1.bf16.msra.mxu0 0
    %272 = vmatprep.subr.bf16.mxu0 0
    %273 = vmatpush1.bf16.msra.mxu0 0
    %274 = vmatprep.subr.bf16.mxu0 0
    %275 = vmatpush1.bf16.msra.mxu0 0
    %276 = vmatprep.subr.bf16.mxu0 0
    %277 = vmatpush1.bf16.msra.mxu0 0
    %278 = vmatprep.subr.bf16.mxu0 0
    %279 = vmatpush1.bf16.msra.mxu0 %v260
    %280 = vmatprep.subr.bf16.mxu0 0
    %281 = vmatpush1.bf16.msra.mxu0 %v259
    %282 = vmatprep.subr.bf16.mxu0 0
    %283 = vmatpush2.bf16.msra.mxu0 0
    %284 = vmatprep.subr.bf16.mxu0 0
    %285 = vmatpush2.bf16.msra.mxu0 0
    %286 = vmatprep.subr.bf16.mxu0 0
    %287 = vmatpush2.bf16.msra.mxu0 0
    %288 = vmatprep.subr.bf16.mxu0 0
    %289 = vmatpush2.bf16.msra.mxu0 0
    %290 = vmatprep.subr.bf16.mxu0 0
    %291 = vmatpush2.bf16.msra.mxu0 0
    %292 = vmatprep.subr.bf16.mxu0 0
    %293 = vmatpush2.bf16.msra.mxu0 0
    %294 = vmatprep.subr.bf16.mxu0 0
    %295 = vmatpush2.bf16.msra.mxu0 0
    %296 = vmatprep.subr.bf16.mxu0 0
    %297 = vmatpush2.bf16.msra.mxu0 0
    %298 = vmatprep.mubr.bf16.mxu0 0
    %299 = vmatmul.mubr.bf16.gmra.mxu0 %v264
    %v300 = vpop.f32.mrf.mxu0
    %v301 = vadd.f32 %v249, %v300
    %v302 = vpop.f32.mrf.mxu0
    %v303 = vpop.f32.mrf.mxu0
    %v304 = vadd.f32 %v249, %v303
    %v305 = vpop.f32.mrf.mxu0
    %306 = vdwg.mxu0
    %v307 = vpack.c.bf16 %v301, %v301
    %v308 = vpack.c.bf16 %v304, %v304
    %vm309 = vcmask 64512
    %v311 = vsel %vm309, %v307, 0
    %313 = vmatprep.subr.bf16.mxu0 0
    %314 = vmatpush1.bf16.xpose.msra.mxu0 0
    %315 = vmatprep.subr.bf16.mxu0 0
    %316 = vmatpush1.bf16.xpose.msra.mxu0 0
    %317 = vmatprep.subr.bf16.mxu0 0
    %318 = vmatpush1.bf16.xpose.msra.mxu0 0
    %319 = vmatprep.subr.bf16.mxu0 0
    %320 = vmatpush1.bf16.xpose.msra.mxu0 0
    %321 = vmatprep.subr.bf16.mxu0 0
    %322 = vmatpush1.bf16.xpose.msra.mxu0 0
    %323 = vmatprep.subr.bf16.mxu0 0
    %324 = vmatpush1.bf16.xpose.msra.mxu0 0
    %325 = vmatprep.subr.bf16.mxu0 0
    %326 = vmatpush1.bf16.xpose.msra.mxu0 0
    %327 = vmatprep.subr.bf16.mxu0 0
    %328 = vmatpush1.bf16.xpose.msra.mxu0 %v311
    %329 = vmatprep.subr.bf16.mxu0 0
    %330 = vmatpush2.bf16.xpose.msra.mxu0 0
    %331 = vmatprep.subr.bf16.mxu0 0
    %332 = vmatpush2.bf16.xpose.msra.mxu0 0
    %333 = vmatprep.subr.bf16.mxu0 0
    %334 = vmatpush2.bf16.xpose.msra.mxu0 0
    %335 = vmatprep.subr.bf16.mxu0 0
    %336 = vmatpush2.bf16.xpose.msra.mxu0 0
    %337 = vmatprep.subr.bf16.mxu0 0
    %338 = vmatpush2.bf16.xpose.msra.mxu0 0
    %339 = vmatprep.subr.bf16.mxu0 0
    %340 = vmatpush2.bf16.xpose.msra.mxu0 0
    %341 = vmatprep.subr.bf16.mxu0 0
    %342 = vmatpush2.bf16.xpose.msra.mxu0 0
    %343 = vmatprep.subr.bf16.mxu0 0
    %344 = vmatpush2.bf16.xpose.msra.mxu0 0
    %345 = vmatprep.mubr.bf16.mxu0 0
    %346 = vmatmul.mubr.bf16.gmra.mxu0 %v311
    %v347 = vpop.f32.mrf.mxu0
    %v348 = vadd.f32 0.0, %v347
    %v349 = vpop.f32.mrf.mxu0
    %v350 = vpop.f32.mrf.mxu0
    %v351 = vpop.f32.mrf.mxu0
    %352 = vdwg.mxu0
    %v354 = vsel %vm309, %v308, 0
    %356 = vmatprep.subr.bf16.mxu0 0
    %357 = vmatpush1.bf16.xpose.msra.mxu0 0
    %358 = vmatprep.subr.bf16.mxu0 0
    %359 = vmatpush1.bf16.xpose.msra.mxu0 0
    %360 = vmatprep.subr.bf16.mxu0 0
    %361 = vmatpush1.bf16.xpose.msra.mxu0 0
    %362 = vmatprep.subr.bf16.mxu0 0
    %363 = vmatpush1.bf16.xpose.msra.mxu0 0
    %364 = vmatprep.subr.bf16.mxu0 0
    %365 = vmatpush1.bf16.xpose.msra.mxu0 0
    %366 = vmatprep.subr.bf16.mxu0 0
    %367 = vmatpush1.bf16.xpose.msra.mxu0 0
    %368 = vmatprep.subr.bf16.mxu0 0
    %369 = vmatpush1.bf16.xpose.msra.mxu0 0
    %370 = vmatprep.subr.bf16.mxu0 0
    %371 = vmatpush1.bf16.xpose.msra.mxu0 %v354
    %372 = vmatprep.subr.bf16.mxu0 0
    %373 = vmatpush2.bf16.xpose.msra.mxu0 0
    %374 = vmatprep.subr.bf16.mxu0 0
    %375 = vmatpush2.bf16.xpose.msra.mxu0 0
    %376 = vmatprep.subr.bf16.mxu0 0
    %377 = vmatpush2.bf16.xpose.msra.mxu0 0
    %378 = vmatprep.subr.bf16.mxu0 0
    %379 = vmatpush2.bf16.xpose.msra.mxu0 0
    %380 = vmatprep.subr.bf16.mxu0 0
    %381 = vmatpush2.bf16.xpose.msra.mxu0 0
    %382 = vmatprep.subr.bf16.mxu0 0
    %383 = vmatpush2.bf16.xpose.msra.mxu0 0
    %384 = vmatprep.subr.bf16.mxu0 0
    %385 = vmatpush2.bf16.xpose.msra.mxu0 0
    %386 = vmatprep.subr.bf16.mxu0 0
    %387 = vmatpush2.bf16.xpose.msra.mxu0 0
    %388 = vmatprep.mubr.bf16.mxu0 0
    %389 = vmatmul.mubr.bf16.gmra.mxu0 %v354
    %v390 = vpop.f32.mrf.mxu0
    %v391 = vadd.f32 0.0, %v390
    %v392 = vpop.f32.mrf.mxu0
    %v393 = vpop.f32.mrf.mxu0
    %v394 = vpop.f32.mrf.mxu0
    %395 = vdwg.mxu0
    %v396 = vmul.f32 %v348, 0.35355338
    %v397 = vmul.f32 %v391, 0.35355338
    %v398 = vsel %vm309, %v396, -inf
    %399 = vmax.xlane.f32.xlu0 %v398
    %v400 = vpop.xlane.xlu0 %399
    %v401 = vsel %vm309, %v397, -inf
    %402 = vmax.xlane.f32.xlu0 %v401
    %v403 = vpop.xlane.xlu0 %402
    %v404 = vsub.f32 %v396, %v400
    %v405 = vsub.f32 %v397, %v403
    %v406 = vmul.f32 %v404, 1.442695
    %v407 = vpow.pop %v406
    %v408 = vmul.f32 %v405, 1.442695
    %v409 = vpow.pop %v408
    %v410 = vsel %vm309, %v407, 0.0
    %411 = vadd.xlane.f32.xlu0 %v410
    %v412 = vpop.xlane.xlu0 %411
    %v413 = vsel %vm309, %v409, 0.0
    %414 = vadd.xlane.f32.xlu0 %v413
    %v415 = vpop.xlane.xlu0 %414
    %v416 = vrcp.pop %v412
    %v417 = vrcp.pop %v415
    %v418 = vmul.f32 %v407, %v416
    %v419 = vmul.f32 %v409, %v417
    %v420 = vpack.c.bf16 %v418, %v418
    %v421 = vpack.c.bf16 %v419, %v419
    %423 = vrot.lane.b32.xlu0 %v307, 96
    %v424 = vpop.permute.xlu0 %423
    %v426 = vsel %vm309, %v420, 0
    %vm428 = vcmask 1043456
    %v430 = vsel %vm428, %v424, 0
    %432 = vmatprep.subr.bf16.mxu0 0
    %433 = vmatpush1.bf16.msra.mxu0 0
    %434 = vmatprep.subr.bf16.mxu0 0
    %435 = vmatpush1.bf16.msra.mxu0 0
    %436 = vmatprep.subr.bf16.mxu0 0
    %437 = vmatpush1.bf16.msra.mxu0 0
    %438 = vmatprep.subr.bf16.mxu0 0
    %439 = vmatpush1.bf16.msra.mxu0 0
    %440 = vmatprep.subr.bf16.mxu0 0
    %441 = vmatpush1.bf16.msra.mxu0 0
    %442 = vmatprep.subr.bf16.mxu0 0
    %443 = vmatpush1.bf16.msra.mxu0 0
    %444 = vmatprep.subr.bf16.mxu0 0
    %445 = vmatpush1.bf16.msra.mxu0 0
    %446 = vmatprep.subr.bf16.mxu0 0
    %447 = vmatpush1.bf16.msra.mxu0 %v430
    %448 = vmatprep.subr.bf16.mxu0 0
    %449 = vmatpush2.bf16.msra.mxu0 0
    %450 = vmatprep.subr.bf16.mxu0 0
    %451 = vmatpush2.bf16.msra.mxu0 0
    %452 = vmatprep.subr.bf16.mxu0 0
    %453 = vmatpush2.bf16.msra.mxu0 0
    %454 = vmatprep.subr.bf16.mxu0 0
    %455 = vmatpush2.bf16.msra.mxu0 0
    %456 = vmatprep.subr.bf16.mxu0 0
    %457 = vmatpush2.bf16.msra.mxu0 0
    %458 = vmatprep.subr.bf16.mxu0 0
    %459 = vmatpush2.bf16.msra.mxu0 0
    %460 = vmatprep.subr.bf16.mxu0 0
    %461 = vmatpush2.bf16.msra.mxu0 0
    %462 = vmatprep.subr.bf16.mxu0 0
    %463 = vmatpush2.bf16.msra.mxu0 0
    %464 = vmatprep.mubr.bf16.mxu0 0
    %465 = vmatmul.mubr.bf16.gmra.mxu0 %v426
    %v466 = vpop.f32.mrf.mxu0
    %v467 = vadd.f32 0.0, %v466
    %v468 = vpop.f32.mrf.mxu0
    %v469 = vpop.f32.mrf.mxu0
    %v470 = vpop.f32.mrf.mxu0
    %471 = vdwg.mxu0
    %473 = vrot.lane.b32.xlu0 %v308, 96
    %v474 = vpop.permute.xlu0 %473
    %v476 = vsel %vm309, %v421, 0
    %v479 = vsel %vm428, %v474, 0
    %481 = vmatprep.subr.bf16.mxu0 0
    %482 = vmatpush1.bf16.msra.mxu0 0
    %483 = vmatprep.subr.bf16.mxu0 0
    %484 = vmatpush1.bf16.msra.mxu0 0
    %485 = vmatprep.subr.bf16.mxu0 0
    %486 = vmatpush1.bf16.msra.mxu0 0
    %487 = vmatprep.subr.bf16.mxu0 0
    %488 = vmatpush1.bf16.msra.mxu0 0
    %489 = vmatprep.subr.bf16.mxu0 0
    %490 = vmatpush1.bf16.msra.mxu0 0
    %491 = vmatprep.subr.bf16.mxu0 0
    %492 = vmatpush1.bf16.msra.mxu0 0
    %493 = vmatprep.subr.bf16.mxu0 0
    %494 = vmatpush1.bf16.msra.mxu0 0
    %495 = vmatprep.subr.bf16.mxu0 0
    %496 = vmatpush1.bf16.msra.mxu0 %v479
    %497 = vmatprep.subr.bf16.mxu0 0
    %498 = vmatpush2.bf16.msra.mxu0 0
    %499 = vmatprep.subr.bf16.mxu0 0
    %500 = vmatpush2.bf16.msra.mxu0 0
    %501 = vmatprep.subr.bf16.mxu0 0
    %502 = vmatpush2.bf16.msra.mxu0 0
    %503 = vmatprep.subr.bf16.mxu0 0
    %504 = vmatpush2.bf16.msra.mxu0 0
    %505 = vmatprep.subr.bf16.mxu0 0
    %506 = vmatpush2.bf16.msra.mxu0 0
    %507 = vmatprep.subr.bf16.mxu0 0
    %508 = vmatpush2.bf16.msra.mxu0 0
    %509 = vmatprep.subr.bf16.mxu0 0
    %510 = vmatpush2.bf16.msra.mxu0 0
    %511 = vmatprep.subr.bf16.mxu0 0
    %512 = vmatpush2.bf16.msra.mxu0 0
    %513 = vmatprep.mubr.bf16.mxu0 0
    %514 = vmatmul.mubr.bf16.gmra.mxu0 %v476
    %v515 = vpop.f32.mrf.mxu0
    %v516 = vadd.f32 0.0, %v515
    %v517 = vpop.f32.mrf.mxu0
    %v518 = vpop.f32.mrf.mxu0
    %v519 = vpop.f32.mrf.mxu0
    %520 = vdwg.mxu0
    %v521 = vpack.c.bf16 %v516, %v467
    %522 = vrot.lane.b32.xlu0 %v307, 120
    %v523 = vpop.permute.xlu0 %522
    %v525 = vsel %vm309, %v523, 0
    %527 = vmatprep.subr.bf16.mxu0 0
    %528 = vmatpush1.bf16.xpose.msra.mxu0 0
    %529 = vmatprep.subr.bf16.mxu0 0
    %530 = vmatpush1.bf16.xpose.msra.mxu0 0
    %531 = vmatprep.subr.bf16.mxu0 0
    %532 = vmatpush1.bf16.xpose.msra.mxu0 0
    %533 = vmatprep.subr.bf16.mxu0 0
    %534 = vmatpush1.bf16.xpose.msra.mxu0 0
    %535 = vmatprep.subr.bf16.mxu0 0
    %536 = vmatpush1.bf16.xpose.msra.mxu0 0
    %537 = vmatprep.subr.bf16.mxu0 0
    %538 = vmatpush1.bf16.xpose.msra.mxu0 0
    %539 = vmatprep.subr.bf16.mxu0 0
    %540 = vmatpush1.bf16.xpose.msra.mxu0 0
    %541 = vmatprep.subr.bf16.mxu0 0
    %542 = vmatpush1.bf16.xpose.msra.mxu0 %v525
    %543 = vmatprep.subr.bf16.mxu0 0
    %544 = vmatpush2.bf16.xpose.msra.mxu0 0
    %545 = vmatprep.subr.bf16.mxu0 0
    %546 = vmatpush2.bf16.xpose.msra.mxu0 0
    %547 = vmatprep.subr.bf16.mxu0 0
    %548 = vmatpush2.bf16.xpose.msra.mxu0 0
    %549 = vmatprep.subr.bf16.mxu0 0
    %550 = vmatpush2.bf16.xpose.msra.mxu0 0
    %551 = vmatprep.subr.bf16.mxu0 0
    %552 = vmatpush2.bf16.xpose.msra.mxu0 0
    %553 = vmatprep.subr.bf16.mxu0 0
    %554 = vmatpush2.bf16.xpose.msra.mxu0 0
    %555 = vmatprep.subr.bf16.mxu0 0
    %556 = vmatpush2.bf16.xpose.msra.mxu0 0
    %557 = vmatprep.subr.bf16.mxu0 0
    %558 = vmatpush2.bf16.xpose.msra.mxu0 0
    %559 = vmatprep.mubr.bf16.mxu0 0
    %560 = vmatmul.mubr.bf16.gmra.mxu0 %v525
    %v561 = vpop.f32.mrf.mxu0
    %v562 = vadd.f32 0.0, %v561
    %v563 = vpop.f32.mrf.mxu0
    %v564 = vpop.f32.mrf.mxu0
    %v565 = vpop.f32.mrf.mxu0
    %566 = vdwg.mxu0
    %567 = vrot.lane.b32.xlu0 %v308, 120
    %v568 = vpop.permute.xlu0 %567
    %v570 = vsel %vm309, %v568, 0
    %572 = vmatprep.subr.bf16.mxu0 0
    %573 = vmatpush1.bf16.xpose.msra.mxu0 0
    %574 = vmatprep.subr.bf16.mxu0 0
    %575 = vmatpush1.bf16.xpose.msra.mxu0 0
    %576 = vmatprep.subr.bf16.mxu0 0
    %577 = vmatpush1.bf16.xpose.msra.mxu0 0
    %578 = vmatprep.subr.bf16.mxu0 0
    %579 = vmatpush1.bf16.xpose.msra.mxu0 0
    %580 = vmatprep.subr.bf16.mxu0 0
    %581 = vmatpush1.bf16.xpose.msra.mxu0 0
    %582 = vmatprep.subr.bf16.mxu0 0
    %583 = vmatpush1.bf16.xpose.msra.mxu0 0
    %584 = vmatprep.subr.bf16.mxu0 0
    %585 = vmatpush1.bf16.xpose.msra.mxu0 0
    %586 = vmatprep.subr.bf16.mxu0 0
    %587 = vmatpush1.bf16.xpose.msra.mxu0 %v570
    %588 = vmatprep.subr.bf16.mxu0 0
    %589 = vmatpush2.bf16.xpose.msra.mxu0 0
    %590 = vmatprep.subr.bf16.mxu0 0
    %591 = vmatpush2.bf16.xpose.msra.mxu0 0
    %592 = vmatprep.subr.bf16.mxu0 0
    %593 = vmatpush2.bf16.xpose.msra.mxu0 0
    %594 = vmatprep.subr.bf16.mxu0 0
    %595 = vmatpush2.bf16.xpose.msra.mxu0 0
    %596 = vmatprep.subr.bf16.mxu0 0
    %597 = vmatpush2.bf16.xpose.msra.mxu0 0
    %598 = vmatprep.subr.bf16.mxu0 0
    %599 = vmatpush2.bf16.xpose.msra.mxu0 0
    %600 = vmatprep.subr.bf16.mxu0 0
    %601 = vmatpush2.bf16.xpose.msra.mxu0 0
    %602 = vmatprep.subr.bf16.mxu0 0
    %603 = vmatpush2.bf16.xpose.msra.mxu0 0
    %604 = vmatprep.mubr.bf16.mxu0 0
    %605 = vmatmul.mubr.bf16.gmra.mxu0 %v570
    %v606 = vpop.f32.mrf.mxu0
    %v607 = vadd.f32 0.0, %v606
    %v608 = vpop.f32.mrf.mxu0
    %v609 = vpop.f32.mrf.mxu0
    %v610 = vpop.f32.mrf.mxu0
    %611 = vdwg.mxu0
    %v612 = vmul.f32 %v562, 0.35355338
    %v613 = vmul.f32 %v607, 0.35355338
    %v614 = vsel %vm309, %v612, -inf
    %615 = vmax.xlane.f32.xlu0 %v614
    %v616 = vpop.xlane.xlu0 %615
    %v617 = vsel %vm309, %v613, -inf
    %618 = vmax.xlane.f32.xlu0 %v617
    %v619 = vpop.xlane.xlu0 %618
    %v620 = vsub.f32 %v612, %v616
    %v621 = vsub.f32 %v613, %v619
    %v622 = vmul.f32 %v620, 1.442695
    %v623 = vpow.pop %v622
    %v624 = vmul.f32 %v621, 1.442695
    %v625 = vpow.pop %v624
    %v626 = vsel %vm309, %v623, 0.0
    %627 = vadd.xlane.f32.xlu0 %v626
    %v628 = vpop.xlane.xlu0 %627
    %v629 = vsel %vm309, %v625, 0.0
    %630 = vadd.xlane.f32.xlu0 %v629
    %v631 = vpop.xlane.xlu0 %630
    %v632 = vrcp.pop %v628
    %v633 = vrcp.pop %v631
    %v634 = vmul.f32 %v623, %v632
    %v635 = vmul.f32 %v625, %v633
    %v636 = vpack.c.bf16 %v634, %v634
    %v637 = vpack.c.bf16 %v635, %v635
    %638 = vrot.lane.b32.xlu0 %v307, 88
    %v639 = vpop.permute.xlu0 %638
    %v641 = vsel %vm309, %v636, 0
    %v644 = vsel %vm428, %v639, 0
    %646 = vmatprep.subr.bf16.mxu0 0
    %647 = vmatpush1.bf16.msra.mxu0 0
    %648 = vmatprep.subr.bf16.mxu0 0
    %649 = vmatpush1.bf16.msra.mxu0 0
    %650 = vmatprep.subr.bf16.mxu0 0
    %651 = vmatpush1.bf16.msra.mxu0 0
    %652 = vmatprep.subr.bf16.mxu0 0
    %653 = vmatpush1.bf16.msra.mxu0 0
    %654 = vmatprep.subr.bf16.mxu0 0
    %655 = vmatpush1.bf16.msra.mxu0 0
    %656 = vmatprep.subr.bf16.mxu0 0
    %657 = vmatpush1.bf16.msra.mxu0 0
    %658 = vmatprep.subr.bf16.mxu0 0
    %659 = vmatpush1.bf16.msra.mxu0 0
    %660 = vmatprep.subr.bf16.mxu0 0
    %661 = vmatpush1.bf16.msra.mxu0 %v644
    %662 = vmatprep.subr.bf16.mxu0 0
    %663 = vmatpush2.bf16.msra.mxu0 0
    %664 = vmatprep.subr.bf16.mxu0 0
    %665 = vmatpush2.bf16.msra.mxu0 0
    %666 = vmatprep.subr.bf16.mxu0 0
    %667 = vmatpush2.bf16.msra.mxu0 0
    %668 = vmatprep.subr.bf16.mxu0 0
    %669 = vmatpush2.bf16.msra.mxu0 0
    %670 = vmatprep.subr.bf16.mxu0 0
    %671 = vmatpush2.bf16.msra.mxu0 0
    %672 = vmatprep.subr.bf16.mxu0 0
    %673 = vmatpush2.bf16.msra.mxu0 0
    %674 = vmatprep.subr.bf16.mxu0 0
    %675 = vmatpush2.bf16.msra.mxu0 0
    %676 = vmatprep.subr.bf16.mxu0 0
    %677 = vmatpush2.bf16.msra.mxu0 0
    %678 = vmatprep.mubr.bf16.mxu0 0
    %679 = vmatmul.mubr.bf16.gmra.mxu0 %v641
    %v680 = vpop.f32.mrf.mxu0
    %v681 = vadd.f32 0.0, %v680
    %v682 = vpop.f32.mrf.mxu0
    %v683 = vpop.f32.mrf.mxu0
    %v684 = vpop.f32.mrf.mxu0
    %685 = vdwg.mxu0
    %686 = vrot.lane.b32.xlu0 %v308, 88
    %v687 = vpop.permute.xlu0 %686
    %v689 = vsel %vm309, %v637, 0
    %v692 = vsel %vm428, %v687, 0
    %694 = vmatprep.subr.bf16.mxu0 0
    %695 = vmatpush1.bf16.msra.mxu0 0
    %696 = vmatprep.subr.bf16.mxu0 0
    %697 = vmatpush1.bf16.msra.mxu0 0
    %698 = vmatprep.subr.bf16.mxu0 0
    %699 = vmatpush1.bf16.msra.mxu0 0
    %700 = vmatprep.subr.bf16.mxu0 0
    %701 = vmatpush1.bf16.msra.mxu0 0
    %702 = vmatprep.subr.bf16.mxu0 0
    %703 = vmatpush1.bf16.msra.mxu0 0
    %704 = vmatprep.subr.bf16.mxu0 0
    %705 = vmatpush1.bf16.msra.mxu0 0
    %706 = vmatprep.subr.bf16.mxu0 0
    %707 = vmatpush1.bf16.msra.mxu0 0
    %708 = vmatprep.subr.bf16.mxu0 0
    %709 = vmatpush1.bf16.msra.mxu0 %v692
    %710 = vmatprep.subr.bf16.mxu0 0
    %711 = vmatpush2.bf16.msra.mxu0 0
    %712 = vmatprep.subr.bf16.mxu0 0
    %713 = vmatpush2.bf16.msra.mxu0 0
    %714 = vmatprep.subr.bf16.mxu0 0
    %715 = vmatpush2.bf16.msra.mxu0 0
    %716 = vmatprep.subr.bf16.mxu0 0
    %717 = vmatpush2.bf16.msra.mxu0 0
    %718 = vmatprep.subr.bf16.mxu0 0
    %719 = vmatpush2.bf16.msra.mxu0 0
    %720 = vmatprep.subr.bf16.mxu0 0
    %721 = vmatpush2.bf16.msra.mxu0 0
    %722 = vmatprep.subr.bf16.mxu0 0
    %723 = vmatpush2.bf16.msra.mxu0 0
    %724 = vmatprep.subr.bf16.mxu0 0
    %725 = vmatpush2.bf16.msra.mxu0 0
    %726 = vmatprep.mubr.bf16.mxu0 0
    %727 = vmatmul.mubr.bf16.gmra.mxu0 %v689
    %v728 = vpop.f32.mrf.mxu0
    %v729 = vadd.f32 0.0, %v728
    %v730 = vpop.f32.mrf.mxu0
    %v731 = vpop.f32.mrf.mxu0
    %v732 = vpop.f32.mrf.mxu0
    %733 = vdwg.mxu0
    %v734 = vpack.c.bf16 %v729, %v681
    %v735 = vpack.c.b16 %v256, %v256
    %736 = vrot.lane.b32.xlu0 %v735, 64
    %v737 = vpop.permute.xlu0 %736
    %v739 = vsel %vm309, %v734, 0
    %v742 = vsel %vm428, %v737, 0
    %744 = vmatprep.subr.bf16.mxu0 0
    %745 = vmatpush1.bf16.msra.mxu0 0
    %746 = vmatprep.subr.bf16.mxu0 0
    %747 = vmatpush1.bf16.msra.mxu0 0
    %748 = vmatprep.subr.bf16.mxu0 0
    %749 = vmatpush1.bf16.msra.mxu0 0
    %750 = vmatprep.subr.bf16.mxu0 0
    %751 = vmatpush1.bf16.msra.mxu0 0
    %752 = vmatprep.subr.bf16.mxu0 0
    %753 = vmatpush1.bf16.msra.mxu0 0
    %754 = vmatprep.subr.bf16.mxu0 0
    %755 = vmatpush1.bf16.msra.mxu0 0
    %756 = vmatprep.subr.bf16.mxu0 0
    %757 = vmatpush1.bf16.msra.mxu0 0
    %758 = vmatprep.subr.bf16.mxu0 0
    %759 = vmatpush1.bf16.msra.mxu0 %v742
    %760 = vmatprep.subr.bf16.mxu0 0
    %761 = vmatpush2.bf16.msra.mxu0 0
    %762 = vmatprep.subr.bf16.mxu0 0
    %763 = vmatpush2.bf16.msra.mxu0 0
    %764 = vmatprep.subr.bf16.mxu0 0
    %765 = vmatpush2.bf16.msra.mxu0 0
    %766 = vmatprep.subr.bf16.mxu0 0
    %767 = vmatpush2.bf16.msra.mxu0 0
    %768 = vmatprep.subr.bf16.mxu0 0
    %769 = vmatpush2.bf16.msra.mxu0 0
    %770 = vmatprep.subr.bf16.mxu0 0
    %771 = vmatpush2.bf16.msra.mxu0 0
    %772 = vmatprep.subr.bf16.mxu0 0
    %773 = vmatpush2.bf16.msra.mxu0 0
    %774 = vmatprep.subr.bf16.mxu0 0
    %775 = vmatpush2.bf16.msra.mxu0 0
    %776 = vmatprep.mubr.bf16.mxu0 0
    %777 = vmatmul.mubr.bf16.gmra.mxu0 %v739
    %v778 = vpop.f32.mrf.mxu0
    %v779 = vadd.f32 0.0, %v778
    %v780 = vpop.f32.mrf.mxu0
    %v781 = vpop.f32.mrf.mxu0
    %v782 = vadd.f32 0.0, %v781
    %v783 = vpop.f32.mrf.mxu0
    %784 = vdwg.mxu0
    %v785 = vpack.c.b16 %v255, %v255
    %786 = vrot.lane.b32.xlu0 %v785, 64
    %v787 = vpop.permute.xlu0 %786
    %v789 = vsel %vm309, %v521, 0
    %v792 = vsel %vm428, %v787, 0
    %794 = vmatprep.subr.bf16.mxu0 0
    %795 = vmatpush1.bf16.msra.mxu0 0
    %796 = vmatprep.subr.bf16.mxu0 0
    %797 = vmatpush1.bf16.msra.mxu0 0
    %798 = vmatprep.subr.bf16.mxu0 0
    %799 = vmatpush1.bf16.msra.mxu0 0
    %800 = vmatprep.subr.bf16.mxu0 0
    %801 = vmatpush1.bf16.msra.mxu0 0
    %802 = vmatprep.subr.bf16.mxu0 0
    %803 = vmatpush1.bf16.msra.mxu0 0
    %804 = vmatprep.subr.bf16.mxu0 0
    %805 = vmatpush1.bf16.msra.mxu0 0
    %806 = vmatprep.subr.bf16.mxu0 0
    %807 = vmatpush1.bf16.msra.mxu0 0
    %808 = vmatprep.subr.bf16.mxu0 0
    %809 = vmatpush1.bf16.msra.mxu0 %v792
    %810 = vmatprep.subr.bf16.mxu0 0
    %811 = vmatpush2.bf16.msra.mxu0 0
    %812 = vmatprep.subr.bf16.mxu0 0
    %813 = vmatpush2.bf16.msra.mxu0 0
    %814 = vmatprep.subr.bf16.mxu0 0
    %815 = vmatpush2.bf16.msra.mxu0 0
    %816 = vmatprep.subr.bf16.mxu0 0
    %817 = vmatpush2.bf16.msra.mxu0 0
    %818 = vmatprep.subr.bf16.mxu0 0
    %819 = vmatpush2.bf16.msra.mxu0 0
    %820 = vmatprep.subr.bf16.mxu0 0
    %821 = vmatpush2.bf16.msra.mxu0 0
    %822 = vmatprep.subr.bf16.mxu0 0
    %823 = vmatpush2.bf16.msra.mxu0 0
    %824 = vmatprep.subr.bf16.mxu0 0
    %825 = vmatpush2.bf16.msra.mxu0 0
    %826 = vmatprep.mubr.bf16.mxu0 0
    %827 = vmatmul.mubr.bf16.gmra.mxu0 %v789
    %v828 = vpop.f32.mrf.mxu0
    %v829 = vadd.f32 %v779, %v828
    %v830 = vpop.f32.mrf.mxu0
    %v831 = vpop.f32.mrf.mxu0
    %v832 = vadd.f32 %v782, %v831
    %v833 = vpop.f32.mrf.mxu0
    %834 = vdwg.mxu0
    %835 = vrot.lane.b32.xlu0 %v307, 112
    %v836 = vpop.permute.xlu0 %835
    %v838 = vsel %vm309, %v836, 0
    %840 = vmatprep.subr.bf16.mxu0 0
    %841 = vmatpush1.bf16.xpose.msra.mxu0 0
    %842 = vmatprep.subr.bf16.mxu0 0
    %843 = vmatpush1.bf16.xpose.msra.mxu0 0
    %844 = vmatprep.subr.bf16.mxu0 0
    %845 = vmatpush1.bf16.xpose.msra.mxu0 0
    %846 = vmatprep.subr.bf16.mxu0 0
    %847 = vmatpush1.bf16.xpose.msra.mxu0 0
    %848 = vmatprep.subr.bf16.mxu0 0
    %849 = vmatpush1.bf16.xpose.msra.mxu0 0
    %850 = vmatprep.subr.bf16.mxu0 0
    %851 = vmatpush1.bf16.xpose.msra.mxu0 0
    %852 = vmatprep.subr.bf16.mxu0 0
    %853 = vmatpush1.bf16.xpose.msra.mxu0 0
    %854 = vmatprep.subr.bf16.mxu0 0
    %855 = vmatpush1.bf16.xpose.msra.mxu0 %v838
    %856 = vmatprep.subr.bf16.mxu0 0
    %857 = vmatpush2.bf16.xpose.msra.mxu0 0
    %858 = vmatprep.subr.bf16.mxu0 0
    %859 = vmatpush2.bf16.xpose.msra.mxu0 0
    %860 = vmatprep.subr.bf16.mxu0 0
    %861 = vmatpush2.bf16.xpose.msra.mxu0 0
    %862 = vmatprep.subr.bf16.mxu0 0
    %863 = vmatpush2.bf16.xpose.msra.mxu0 0
    %864 = vmatprep.subr.bf16.mxu0 0
    %865 = vmatpush2.bf16.xpose.msra.mxu0 0
    %866 = vmatprep.subr.bf16.mxu0 0
    %867 = vmatpush2.bf16.xpose.msra.mxu0 0
    %868 = vmatprep.subr.bf16.mxu0 0
    %869 = vmatpush2.bf16.xpose.msra.mxu0 0
    %870 = vmatprep.subr.bf16.mxu0 0
    %871 = vmatpush2.bf16.xpose.msra.mxu0 0
    %872 = vmatprep.mubr.bf16.mxu0 0
    %873 = vmatmul.mubr.bf16.gmra.mxu0 %v838
    %v874 = vpop.f32.mrf.mxu0
    %v875 = vadd.f32 0.0, %v874
    %v876 = vpop.f32.mrf.mxu0
    %v877 = vpop.f32.mrf.mxu0
    %v878 = vpop.f32.mrf.mxu0
    %879 = vdwg.mxu0
    %880 = vrot.lane.b32.xlu0 %v308, 112
    %v881 = vpop.permute.xlu0 %880
    %v883 = vsel %vm309, %v881, 0
    %885 = vmatprep.subr.bf16.mxu0 0
    %886 = vmatpush1.bf16.xpose.msra.mxu0 0
    %887 = vmatprep.subr.bf16.mxu0 0
    %888 = vmatpush1.bf16.xpose.msra.mxu0 0
    %889 = vmatprep.subr.bf16.mxu0 0
    %890 = vmatpush1.bf16.xpose.msra.mxu0 0
    %891 = vmatprep.subr.bf16.mxu0 0
    %892 = vmatpush1.bf16.xpose.msra.mxu0 0
    %893 = vmatprep.subr.bf16.mxu0 0
    %894 = vmatpush1.bf16.xpose.msra.mxu0 0
    %895 = vmatprep.subr.bf16.mxu0 0
    %896 = vmatpush1.bf16.xpose.msra.mxu0 0
    %897 = vmatprep.subr.bf16.mxu0 0
    %898 = vmatpush1.bf16.xpose.msra.mxu0 0
    %899 = vmatprep.subr.bf16.mxu0 0
    %900 = vmatpush1.bf16.xpose.msra.mxu0 %v883
    %901 = vmatprep.subr.bf16.mxu0 0
    %902 = vmatpush2.bf16.xpose.msra.mxu0 0
    %903 = vmatprep.subr.bf16.mxu0 0
    %904 = vmatpush2.bf16.xpose.msra.mxu0 0
    %905 = vmatprep.subr.bf16.mxu0 0
    %906 = vmatpush2.bf16.xpose.msra.mxu0 0
    %907 = vmatprep.subr.bf16.mxu0 0
    %908 = vmatpush2.bf16.xpose.msra.mxu0 0
    %909 = vmatprep.subr.bf16.mxu0 0
    %910 = vmatpush2.bf16.xpose.msra.mxu0 0
    %911 = vmatprep.subr.bf16.mxu0 0
    %912 = vmatpush2.bf16.xpose.msra.mxu0 0
    %913 = vmatprep.subr.bf16.mxu0 0
    %914 = vmatpush2.bf16.xpose.msra.mxu0 0
    %915 = vmatprep.subr.bf16.mxu0 0
    %916 = vmatpush2.bf16.xpose.msra.mxu0 0
    %917 = vmatprep.mubr.bf16.mxu0 0
    %918 = vmatmul.mubr.bf16.gmra.mxu0 %v883
    %v919 = vpop.f32.mrf.mxu0
    %v920 = vadd.f32 0.0, %v919
    %v921 = vpop.f32.mrf.mxu0
    %v922 = vpop.f32.mrf.mxu0
    %v923 = vpop.f32.mrf.mxu0
    %924 = vdwg.mxu0
    %v925 = vmul.f32 %v875, 0.35355338
    %v926 = vmul.f32 %v920, 0.35355338
    %v927 = vsel %vm309, %v925, -inf
    %928 = vmax.xlane.f32.xlu0 %v927
    %v929 = vpop.xlane.xlu0 %928
    %v930 = vsel %vm309, %v926, -inf
    %931 = vmax.xlane.f32.xlu0 %v930
    %v932 = vpop.xlane.xlu0 %931
    %v933 = vsub.f32 %v925, %v929
    %v934 = vsub.f32 %v926, %v932
    %v935 = vmul.f32 %v933, 1.442695
    %v936 = vpow.pop %v935
    %v937 = vmul.f32 %v934, 1.442695
    %v938 = vpow.pop %v937
    %v939 = vsel %vm309, %v936, 0.0
    %940 = vadd.xlane.f32.xlu0 %v939
    %v941 = vpop.xlane.xlu0 %940
    %v942 = vsel %vm309, %v938, 0.0
    %943 = vadd.xlane.f32.xlu0 %v942
    %v944 = vpop.xlane.xlu0 %943
    %v945 = vrcp.pop %v941
    %v946 = vrcp.pop %v944
    %v947 = vmul.f32 %v936, %v945
    %v948 = vmul.f32 %v938, %v946
    %v949 = vpack.c.bf16 %v947, %v947
    %v950 = vpack.c.bf16 %v948, %v948
    %951 = vrot.lane.b32.xlu0 %v307, 80
    %v952 = vpop.permute.xlu0 %951
    %v954 = vsel %vm309, %v949, 0
    %v957 = vsel %vm428, %v952, 0
    %959 = vmatprep.subr.bf16.mxu0 0
    %960 = vmatpush1.bf16.msra.mxu0 0
    %961 = vmatprep.subr.bf16.mxu0 0
    %962 = vmatpush1.bf16.msra.mxu0 0
    %963 = vmatprep.subr.bf16.mxu0 0
    %964 = vmatpush1.bf16.msra.mxu0 0
    %965 = vmatprep.subr.bf16.mxu0 0
    %966 = vmatpush1.bf16.msra.mxu0 0
    %967 = vmatprep.subr.bf16.mxu0 0
    %968 = vmatpush1.bf16.msra.mxu0 0
    %969 = vmatprep.subr.bf16.mxu0 0
    %970 = vmatpush1.bf16.msra.mxu0 0
    %971 = vmatprep.subr.bf16.mxu0 0
    %972 = vmatpush1.bf16.msra.mxu0 0
    %973 = vmatprep.subr.bf16.mxu0 0
    %974 = vmatpush1.bf16.msra.mxu0 %v957
    %975 = vmatprep.subr.bf16.mxu0 0
    %976 = vmatpush2.bf16.msra.mxu0 0
    %977 = vmatprep.subr.bf16.mxu0 0
    %978 = vmatpush2.bf16.msra.mxu0 0
    %979 = vmatprep.subr.bf16.mxu0 0
    %980 = vmatpush2.bf16.msra.mxu0 0
    %981 = vmatprep.subr.bf16.mxu0 0
    %982 = vmatpush2.bf16.msra.mxu0 0
    %983 = vmatprep.subr.bf16.mxu0 0
    %984 = vmatpush2.bf16.msra.mxu0 0
    %985 = vmatprep.subr.bf16.mxu0 0
    %986 = vmatpush2.bf16.msra.mxu0 0
    %987 = vmatprep.subr.bf16.mxu0 0
    %988 = vmatpush2.bf16.msra.mxu0 0
    %989 = vmatprep.subr.bf16.mxu0 0
    %990 = vmatpush2.bf16.msra.mxu0 0
    %991 = vmatprep.mubr.bf16.mxu0 0
    %992 = vmatmul.mubr.bf16.gmra.mxu0 %v954
    %v993 = vpop.f32.mrf.mxu0
    %v994 = vadd.f32 0.0, %v993
    %v995 = vpop.f32.mrf.mxu0
    %v996 = vpop.f32.mrf.mxu0
    %v997 = vpop.f32.mrf.mxu0
    %998 = vdwg.mxu0
    %999 = vrot.lane.b32.xlu0 %v308, 80
    %v1000 = vpop.permute.xlu0 %999
    %v1002 = vsel %vm309, %v950, 0
    %v1005 = vsel %vm428, %v1000, 0
    %1007 = vmatprep.subr.bf16.mxu0 0
    %1008 = vmatpush1.bf16.msra.mxu0 0
    %1009 = vmatprep.subr.bf16.mxu0 0
    %1010 = vmatpush1.bf16.msra.mxu0 0
    %1011 = vmatprep.subr.bf16.mxu0 0
    %1012 = vmatpush1.bf16.msra.mxu0 0
    %1013 = vmatprep.subr.bf16.mxu0 0
    %1014 = vmatpush1.bf16.msra.mxu0 0
    %1015 = vmatprep.subr.bf16.mxu0 0
    %1016 = vmatpush1.bf16.msra.mxu0 0
    %1017 = vmatprep.subr.bf16.mxu0 0
    %1018 = vmatpush1.bf16.msra.mxu0 0
    %1019 = vmatprep.subr.bf16.mxu0 0
    %1020 = vmatpush1.bf16.msra.mxu0 0
    %1021 = vmatprep.subr.bf16.mxu0 0
    %1022 = vmatpush1.bf16.msra.mxu0 %v1005
    %1023 = vmatprep.subr.bf16.mxu0 0
    %1024 = vmatpush2.bf16.msra.mxu0 0
    %1025 = vmatprep.subr.bf16.mxu0 0
    %1026 = vmatpush2.bf16.msra.mxu0 0
    %1027 = vmatprep.subr.bf16.mxu0 0
    %1028 = vmatpush2.bf16.msra.mxu0 0
    %1029 = vmatprep.subr.bf16.mxu0 0
    %1030 = vmatpush2.bf16.msra.mxu0 0
    %1031 = vmatprep.subr.bf16.mxu0 0
    %1032 = vmatpush2.bf16.msra.mxu0 0
    %1033 = vmatprep.subr.bf16.mxu0 0
    %1034 = vmatpush2.bf16.msra.mxu0 0
    %1035 = vmatprep.subr.bf16.mxu0 0
    %1036 = vmatpush2.bf16.msra.mxu0 0
    %1037 = vmatprep.subr.bf16.mxu0 0
    %1038 = vmatpush2.bf16.msra.mxu0 0
    %1039 = vmatprep.mubr.bf16.mxu0 0
    %1040 = vmatmul.mubr.bf16.gmra.mxu0 %v1002
    %v1041 = vpop.f32.mrf.mxu0
    %v1042 = vadd.f32 0.0, %v1041
    %v1043 = vpop.f32.mrf.mxu0
    %v1044 = vpop.f32.mrf.mxu0
    %v1045 = vpop.f32.mrf.mxu0
    %1046 = vdwg.mxu0
    %v1047 = vpack.c.bf16 %v1042, %v994
    %v1048 = vpack.c.b16 %v257, %v257
    %1049 = vrot.lane.b32.xlu0 %v1048, 64
    %v1050 = vpop.permute.xlu0 %1049
    %v1052 = vsel %vm309, %v1047, 0
    %v1055 = vsel %vm428, %v1050, 0
    %1057 = vmatprep.subr.bf16.mxu0 0
    %1058 = vmatpush1.bf16.msra.mxu0 0
    %1059 = vmatprep.subr.bf16.mxu0 0
    %1060 = vmatpush1.bf16.msra.mxu0 0
    %1061 = vmatprep.subr.bf16.mxu0 0
    %1062 = vmatpush1.bf16.msra.mxu0 0
    %1063 = vmatprep.subr.bf16.mxu0 0
    %1064 = vmatpush1.bf16.msra.mxu0 0
    %1065 = vmatprep.subr.bf16.mxu0 0
    %1066 = vmatpush1.bf16.msra.mxu0 0
    %1067 = vmatprep.subr.bf16.mxu0 0
    %1068 = vmatpush1.bf16.msra.mxu0 0
    %1069 = vmatprep.subr.bf16.mxu0 0
    %1070 = vmatpush1.bf16.msra.mxu0 0
    %1071 = vmatprep.subr.bf16.mxu0 0
    %1072 = vmatpush1.bf16.msra.mxu0 %v1055
    %1073 = vmatprep.subr.bf16.mxu0 0
    %1074 = vmatpush2.bf16.msra.mxu0 0
    %1075 = vmatprep.subr.bf16.mxu0 0
    %1076 = vmatpush2.bf16.msra.mxu0 0
    %1077 = vmatprep.subr.bf16.mxu0 0
    %1078 = vmatpush2.bf16.msra.mxu0 0
    %1079 = vmatprep.subr.bf16.mxu0 0
    %1080 = vmatpush2.bf16.msra.mxu0 0
    %1081 = vmatprep.subr.bf16.mxu0 0
    %1082 = vmatpush2.bf16.msra.mxu0 0
    %1083 = vmatprep.subr.bf16.mxu0 0
    %1084 = vmatpush2.bf16.msra.mxu0 0
    %1085 = vmatprep.subr.bf16.mxu0 0
    %1086 = vmatpush2.bf16.msra.mxu0 0
    %1087 = vmatprep.subr.bf16.mxu0 0
    %1088 = vmatpush2.bf16.msra.mxu0 0
    %1089 = vmatprep.mubr.bf16.mxu0 0
    %1090 = vmatmul.mubr.bf16.gmra.mxu0 %v1052
    %v1091 = vpop.f32.mrf.mxu0
    %v1092 = vadd.f32 0.0, %v1091
    %v1093 = vpop.f32.mrf.mxu0
    %v1094 = vpop.f32.mrf.mxu0
    %v1095 = vadd.f32 0.0, %v1094
    %v1096 = vpop.f32.mrf.mxu0
    %1097 = vdwg.mxu0
    %v1098 = vadd.f32 %v829, %v1092
    %v1099 = vadd.f32 %v832, %v1095
    %1100 = vrot.lane.b32.xlu0 %v307, 104
    %v1101 = vpop.permute.xlu0 %1100
    %v1103 = vsel %vm309, %v1101, 0
    %1105 = vmatprep.subr.bf16.mxu0 0
    %1106 = vmatpush1.bf16.xpose.msra.mxu0 0
    %1107 = vmatprep.subr.bf16.mxu0 0
    %1108 = vmatpush1.bf16.xpose.msra.mxu0 0
    %1109 = vmatprep.subr.bf16.mxu0 0
    %1110 = vmatpush1.bf16.xpose.msra.mxu0 0
    %1111 = vmatprep.subr.bf16.mxu0 0
    %1112 = vmatpush1.bf16.xpose.msra.mxu0 0
    %1113 = vmatprep.subr.bf16.mxu0 0
    %1114 = vmatpush1.bf16.xpose.msra.mxu0 0
    %1115 = vmatprep.subr.bf16.mxu0 0
    %1116 = vmatpush1.bf16.xpose.msra.mxu0 0
    %1117 = vmatprep.subr.bf16.mxu0 0
    %1118 = vmatpush1.bf16.xpose.msra.mxu0 0
    %1119 = vmatprep.subr.bf16.mxu0 0
    %1120 = vmatpush1.bf16.xpose.msra.mxu0 %v1103
    %1121 = vmatprep.subr.bf16.mxu0 0
    %1122 = vmatpush2.bf16.xpose.msra.mxu0 0
    %1123 = vmatprep.subr.bf16.mxu0 0
    %1124 = vmatpush2.bf16.xpose.msra.mxu0 0
    %1125 = vmatprep.subr.bf16.mxu0 0
    %1126 = vmatpush2.bf16.xpose.msra.mxu0 0
    %1127 = vmatprep.subr.bf16.mxu0 0
    %1128 = vmatpush2.bf16.xpose.msra.mxu0 0
    %1129 = vmatprep.subr.bf16.mxu0 0
    %1130 = vmatpush2.bf16.xpose.msra.mxu0 0
    %1131 = vmatprep.subr.bf16.mxu0 0
    %1132 = vmatpush2.bf16.xpose.msra.mxu0 0
    %1133 = vmatprep.subr.bf16.mxu0 0
    %1134 = vmatpush2.bf16.xpose.msra.mxu0 0
    %1135 = vmatprep.subr.bf16.mxu0 0
    %1136 = vmatpush2.bf16.xpose.msra.mxu0 0
    %1137 = vmatprep.mubr.bf16.mxu0 0
    %1138 = vmatmul.mubr.bf16.gmra.mxu0 %v1103
    %v1139 = vpop.f32.mrf.mxu0
    %v1140 = vadd.f32 0.0, %v1139
    %v1141 = vpop.f32.mrf.mxu0
    %v1142 = vpop.f32.mrf.mxu0
    %v1143 = vpop.f32.mrf.mxu0
    %1144 = vdwg.mxu0
    %1145 = vrot.lane.b32.xlu0 %v308, 104
    %v1146 = vpop.permute.xlu0 %1145
    %v1148 = vsel %vm309, %v1146, 0
    %1150 = vmatprep.subr.bf16.mxu0 0
    %1151 = vmatpush1.bf16.xpose.msra.mxu0 0
    %1152 = vmatprep.subr.bf16.mxu0 0
    %1153 = vmatpush1.bf16.xpose.msra.mxu0 0
    %1154 = vmatprep.subr.bf16.mxu0 0
    %1155 = vmatpush1.bf16.xpose.msra.mxu0 0
    %1156 = vmatprep.subr.bf16.mxu0 0
    %1157 = vmatpush1.bf16.xpose.msra.mxu0 0
    %1158 = vmatprep.subr.bf16.mxu0 0
    %1159 = vmatpush1.bf16.xpose.msra.mxu0 0
    %1160 = vmatprep.subr.bf16.mxu0 0
    %1161 = vmatpush1.bf16.xpose.msra.mxu0 0
    %1162 = vmatprep.subr.bf16.mxu0 0
    %1163 = vmatpush1.bf16.xpose.msra.mxu0 0
    %1164 = vmatprep.subr.bf16.mxu0 0
    %1165 = vmatpush1.bf16.xpose.msra.mxu0 %v1148
    %1166 = vmatprep.subr.bf16.mxu0 0
    %1167 = vmatpush2.bf16.xpose.msra.mxu0 0
    %1168 = vmatprep.subr.bf16.mxu0 0
    %1169 = vmatpush2.bf16.xpose.msra.mxu0 0
    %1170 = vmatprep.subr.bf16.mxu0 0
    %1171 = vmatpush2.bf16.xpose.msra.mxu0 0
    %1172 = vmatprep.subr.bf16.mxu0 0
    %1173 = vmatpush2.bf16.xpose.msra.mxu0 0
    %1174 = vmatprep.subr.bf16.mxu0 0
    %1175 = vmatpush2.bf16.xpose.msra.mxu0 0
    %1176 = vmatprep.subr.bf16.mxu0 0
    %1177 = vmatpush2.bf16.xpose.msra.mxu0 0
    %1178 = vmatprep.subr.bf16.mxu0 0
    %1179 = vmatpush2.bf16.xpose.msra.mxu0 0
    %1180 = vmatprep.subr.bf16.mxu0 0
    %1181 = vmatpush2.bf16.xpose.msra.mxu0 0
    %1182 = vmatprep.mubr.bf16.mxu0 0
    %1183 = vmatmul.mubr.bf16.gmra.mxu0 %v1148
    %v1184 = vpop.f32.mrf.mxu0
    %v1185 = vadd.f32 0.0, %v1184
    %v1186 = vpop.f32.mrf.mxu0
    %v1187 = vpop.f32.mrf.mxu0
    %v1188 = vpop.f32.mrf.mxu0
    %1189 = vdwg.mxu0
    %v1190 = vmul.f32 %v1140, 0.35355338
    %v1191 = vmul.f32 %v1185, 0.35355338
    %v1192 = vsel %vm309, %v1190, -inf
    %1193 = vmax.xlane.f32.xlu0 %v1192
    %v1194 = vpop.xlane.xlu0 %1193
    %v1195 = vsel %vm309, %v1191, -inf
    %1196 = vmax.xlane.f32.xlu0 %v1195
    %v1197 = vpop.xlane.xlu0 %1196
    %v1198 = vsub.f32 %v1190, %v1194
    %v1199 = vsub.f32 %v1191, %v1197
    %v1200 = vmul.f32 %v1198, 1.442695
    %v1201 = vpow.pop %v1200
    %v1202 = vmul.f32 %v1199, 1.442695
    %v1203 = vpow.pop %v1202
    %v1204 = vsel %vm309, %v1201, 0.0
    %1205 = vadd.xlane.f32.xlu0 %v1204
    %v1206 = vpop.xlane.xlu0 %1205
    %v1207 = vsel %vm309, %v1203, 0.0
    %1208 = vadd.xlane.f32.xlu0 %v1207
    %v1209 = vpop.xlane.xlu0 %1208
    %v1210 = vrcp.pop %v1206
    %v1211 = vrcp.pop %v1209
    %v1212 = vmul.f32 %v1201, %v1210
    %v1213 = vmul.f32 %v1203, %v1211
    %v1214 = vpack.c.bf16 %v1212, %v1212
    %v1215 = vpack.c.bf16 %v1213, %v1213
    %1216 = vrot.lane.b32.xlu0 %v307, 72
    %v1217 = vpop.permute.xlu0 %1216
    %v1219 = vsel %vm309, %v1214, 0
    %v1222 = vsel %vm428, %v1217, 0
    %1224 = vmatprep.subr.bf16.mxu0 0
    %1225 = vmatpush1.bf16.msra.mxu0 0
    %1226 = vmatprep.subr.bf16.mxu0 0
    %1227 = vmatpush1.bf16.msra.mxu0 0
    %1228 = vmatprep.subr.bf16.mxu0 0
    %1229 = vmatpush1.bf16.msra.mxu0 0
    %1230 = vmatprep.subr.bf16.mxu0 0
    %1231 = vmatpush1.bf16.msra.mxu0 0
    %1232 = vmatprep.subr.bf16.mxu0 0
    %1233 = vmatpush1.bf16.msra.mxu0 0
    %1234 = vmatprep.subr.bf16.mxu0 0
    %1235 = vmatpush1.bf16.msra.mxu0 0
    %1236 = vmatprep.subr.bf16.mxu0 0
    %1237 = vmatpush1.bf16.msra.mxu0 0
    %1238 = vmatprep.subr.bf16.mxu0 0
    %1239 = vmatpush1.bf16.msra.mxu0 %v1222
    %1240 = vmatprep.subr.bf16.mxu0 0
    %1241 = vmatpush2.bf16.msra.mxu0 0
    %1242 = vmatprep.subr.bf16.mxu0 0
    %1243 = vmatpush2.bf16.msra.mxu0 0
    %1244 = vmatprep.subr.bf16.mxu0 0
    %1245 = vmatpush2.bf16.msra.mxu0 0
    %1246 = vmatprep.subr.bf16.mxu0 0
    %1247 = vmatpush2.bf16.msra.mxu0 0
    %1248 = vmatprep.subr.bf16.mxu0 0
    %1249 = vmatpush2.bf16.msra.mxu0 0
    %1250 = vmatprep.subr.bf16.mxu0 0
    %1251 = vmatpush2.bf16.msra.mxu0 0
    %1252 = vmatprep.subr.bf16.mxu0 0
    %1253 = vmatpush2.bf16.msra.mxu0 0
    %1254 = vmatprep.subr.bf16.mxu0 0
    %1255 = vmatpush2.bf16.msra.mxu0 0
    %1256 = vmatprep.mubr.bf16.mxu0 0
    %1257 = vmatmul.mubr.bf16.gmra.mxu0 %v1219
    %v1258 = vpop.f32.mrf.mxu0
    %v1259 = vadd.f32 0.0, %v1258
    %v1260 = vpop.f32.mrf.mxu0
    %v1261 = vpop.f32.mrf.mxu0
    %v1262 = vpop.f32.mrf.mxu0
    %1263 = vdwg.mxu0
    %1264 = vrot.lane.b32.xlu0 %v308, 72
    %v1265 = vpop.permute.xlu0 %1264
    %v1267 = vsel %vm309, %v1215, 0
    %v1270 = vsel %vm428, %v1265, 0
    %1272 = vmatprep.subr.bf16.mxu0 0
    %1273 = vmatpush1.bf16.msra.mxu0 0
    %1274 = vmatprep.subr.bf16.mxu0 0
    %1275 = vmatpush1.bf16.msra.mxu0 0
    %1276 = vmatprep.subr.bf16.mxu0 0
    %1277 = vmatpush1.bf16.msra.mxu0 0
    %1278 = vmatprep.subr.bf16.mxu0 0
    %1279 = vmatpush1.bf16.msra.mxu0 0
    %1280 = vmatprep.subr.bf16.mxu0 0
    %1281 = vmatpush1.bf16.msra.mxu0 0
    %1282 = vmatprep.subr.bf16.mxu0 0
    %1283 = vmatpush1.bf16.msra.mxu0 0
    %1284 = vmatprep.subr.bf16.mxu0 0
    %1285 = vmatpush1.bf16.msra.mxu0 0
    %1286 = vmatprep.subr.bf16.mxu0 0
    %1287 = vmatpush1.bf16.msra.mxu0 %v1270
    %1288 = vmatprep.subr.bf16.mxu0 0
    %1289 = vmatpush2.bf16.msra.mxu0 0
    %1290 = vmatprep.subr.bf16.mxu0 0
    %1291 = vmatpush2.bf16.msra.mxu0 0
    %1292 = vmatprep.subr.bf16.mxu0 0
    %1293 = vmatpush2.bf16.msra.mxu0 0
    %1294 = vmatprep.subr.bf16.mxu0 0
    %1295 = vmatpush2.bf16.msra.mxu0 0
    %1296 = vmatprep.subr.bf16.mxu0 0
    %1297 = vmatpush2.bf16.msra.mxu0 0
    %1298 = vmatprep.subr.bf16.mxu0 0
    %1299 = vmatpush2.bf16.msra.mxu0 0
    %1300 = vmatprep.subr.bf16.mxu0 0
    %1301 = vmatpush2.bf16.msra.mxu0 0
    %1302 = vmatprep.subr.bf16.mxu0 0
    %1303 = vmatpush2.bf16.msra.mxu0 0
    %1304 = vmatprep.mubr.bf16.mxu0 0
    %1305 = vmatmul.mubr.bf16.gmra.mxu0 %v1267
    %v1306 = vpop.f32.mrf.mxu0
    %v1307 = vadd.f32 0.0, %v1306
    %v1308 = vpop.f32.mrf.mxu0
    %v1309 = vpop.f32.mrf.mxu0
    %v1310 = vpop.f32.mrf.mxu0
    %1311 = vdwg.mxu0
    %v1312 = vpack.c.bf16 %v1307, %v1259
    %v1313 = vpack.c.b16 %v258, %v258
    %1314 = vrot.lane.b32.xlu0 %v1313, 64
    %v1315 = vpop.permute.xlu0 %1314
    %v1317 = vsel %vm309, %v1312, 0
    %v1320 = vsel %vm428, %v1315, 0
    %1322 = vmatprep.subr.bf16.mxu0 0
    %1323 = vmatpush1.bf16.msra.mxu0 0
    %1324 = vmatprep.subr.bf16.mxu0 0
    %1325 = vmatpush1.bf16.msra.mxu0 0
    %1326 = vmatprep.subr.bf16.mxu0 0
    %1327 = vmatpush1.bf16.msra.mxu0 0
    %1328 = vmatprep.subr.bf16.mxu0 0
    %1329 = vmatpush1.bf16.msra.mxu0 0
    %1330 = vmatprep.subr.bf16.mxu0 0
    %1331 = vmatpush1.bf16.msra.mxu0 0
    %1332 = vmatprep.subr.bf16.mxu0 0
    %1333 = vmatpush1.bf16.msra.mxu0 0
    %1334 = vmatprep.subr.bf16.mxu0 0
    %1335 = vmatpush1.bf16.msra.mxu0 0
    %1336 = vmatprep.subr.bf16.mxu0 0
    %1337 = vmatpush1.bf16.msra.mxu0 %v1320
    %1338 = vmatprep.subr.bf16.mxu0 0
    %1339 = vmatpush2.bf16.msra.mxu0 0
    %1340 = vmatprep.subr.bf16.mxu0 0
    %1341 = vmatpush2.bf16.msra.mxu0 0
    %1342 = vmatprep.subr.bf16.mxu0 0
    %1343 = vmatpush2.bf16.msra.mxu0 0
    %1344 = vmatprep.subr.bf16.mxu0 0
    %1345 = vmatpush2.bf16.msra.mxu0 0
    %1346 = vmatprep.subr.bf16.mxu0 0
    %1347 = vmatpush2.bf16.msra.mxu0 0
    %1348 = vmatprep.subr.bf16.mxu0 0
    %1349 = vmatpush2.bf16.msra.mxu0 0
    %1350 = vmatprep.subr.bf16.mxu0 0
    %1351 = vmatpush2.bf16.msra.mxu0 0
    %1352 = vmatprep.subr.bf16.mxu0 0
    %1353 = vmatpush2.bf16.msra.mxu0 0
    %1354 = vmatprep.mubr.bf16.mxu0 0
    %1355 = vmatmul.mubr.bf16.gmra.mxu0 %v1317
    %v1356 = vpop.f32.mrf.mxu0
    %v1357 = vadd.f32 0.0, %v1356
    %v1358 = vpop.f32.mrf.mxu0
    %v1359 = vpop.f32.mrf.mxu0
    %v1360 = vadd.f32 0.0, %v1359
    %v1361 = vpop.f32.mrf.mxu0
    %1362 = vdwg.mxu0
    %v1363 = vadd.f32 %v1098, %v1357
    %v1364 = vadd.f32 %v1099, %v1360
    %1365 = vrot.lane.b32.xlu0 %v249, 64
    %v1366 = vpop.permute.xlu0 %1365
    %v1368 = vadd.f32 %v1363, %v1366
    %v1369 = vadd.f32 %v1364, %v1366
    %v1370 = vadd.f32 %v117, %v1368
    %v1371 = vadd.f32 %v118, %v1369
    %s1372 = sld [smem:[#allocation2 + $0x1]]
    %s1373 = sld [smem:[#allocation7 + $0x1]]
    %v1374 = vsel %vm150, %v1370, 0.0
    %1375 = vadd.xlane.f32.xlu0 %v1374
    %v1376 = vpop.xlane.xlu0 %1375
    %v1377 = vsel %vm150, %v1371, 0.0
    %1378 = vadd.xlane.f32.xlu0 %v1377
    %v1379 = vpop.xlane.xlu0 %1378
    %v1380 = vmul.f32 %v1376, %v203
    %v1381 = vmul.f32 %v1379, %v203
    %v1382 = vsub.f32 %v1370, %v1380
    %v1383 = vsub.f32 %v1371, %v1381
    %v1384 = vmul.f32 %v1382, %v1382
    %v1385 = vmul.f32 %v1383, %v1383
    %v1386 = vsel %vm150, %v1384, 0.0
    %1387 = vadd.xlane.f32.xlu0 %v1386
    %v1388 = vpop.xlane.xlu0 %1387
    %v1389 = vsel %vm150, %v1385, 0.0
    %1390 = vadd.xlane.f32.xlu0 %v1389
    %v1391 = vpop.xlane.xlu0 %1390
    %v1392 = vmul.f32 %v1388, 0.032258064
    %v1393 = vmul.f32 %v1391, 0.032258064
    %v1394 = vstv %s1372
    %v1395 = vmul.f32 %v1394, %v1382
    %v1396 = vmul.f32 %v1394, %v1383
    %v1397 = vrsqrt.pop %v1392
    %v1398 = vmul.f32 %v1392, %v1397
    %vm1399 = vcmp.eq.f32.partialorder %v1392, inf
    %v1400 = vsel %vm1399, %v1392, %v1398
    %vm1401 = vcmp.eq.f32.partialorder %v1392, 0.0
    %v1402 = vand.u32 %v1392, 2147483648
    %v1403 = vsel %vm1401, %v1402, %v1400
    %v1404 = vrsqrt.pop %v1393
    %v1405 = vmul.f32 %v1393, %v1404
    %vm1406 = vcmp.eq.f32.partialorder %v1393, inf
    %v1407 = vsel %vm1406, %v1393, %v1405
    %vm1408 = vcmp.eq.f32.partialorder %v1393, 0.0
    %v1409 = vand.u32 %v1393, 2147483648
    %v1410 = vsel %vm1408, %v1409, %v1407
    %v1411 = vadd.f32 %v1403, 1e-06
    %v1412 = vadd.f32 %v1410, 1e-06
    %v1413 = vrcp.pop %v1411
    %v1414 = vrcp.pop %v1412
    %v1415 = vmul.f32 %v1395, %v1413
    %v1416 = vmul.f32 %v1396, %v1414
    %v1417 = vstv %s1373
    %v1418 = vadd.f32 %v1415, %v1417
    %v1419 = vadd.f32 %v1416, %v1417
    %v1420 = vpack.c.bf16 %v1419, %v1418
    %v1422 = vsel %vm150, %v1420, 0
    %1424 = vmatprep.subr.bf16.mxu0 0
    %1425 = vmatpush1.bf16.msra.mxu0 0
    %1426 = vmatprep.subr.bf16.mxu0 0
    %1427 = vmatpush1.bf16.msra.mxu0 0
    %1428 = vmatprep.subr.bf16.mxu0 0
    %1429 = vmatpush1.bf16.msra.mxu0 0
    %1430 = vmatprep.subr.bf16.mxu0 0
    %1431 = vmatpush1.bf16.msra.mxu0 0
    %1432 = vmatprep.subr.bf16.mxu0 0
    %1433 = vmatpush1.bf16.msra.mxu0 0
    %1434 = vmatprep.subr.bf16.mxu0 0
    %1435 = vmatpush1.bf16.msra.mxu0 0
    %1436 = vmatprep.subr.bf16.mxu0 0
    %1437 = vmatpush1.bf16.msra.mxu0 %v147
    %1438 = vmatprep.subr.bf16.mxu0 0
    %1439 = vmatpush1.bf16.msra.mxu0 %v146
    %1440 = vmatprep.subr.bf16.mxu0 0
    %1441 = vmatpush2.bf16.msra.mxu0 0
    %1442 = vmatprep.subr.bf16.mxu0 0
    %1443 = vmatpush2.bf16.msra.mxu0 0
    %1444 = vmatprep.subr.bf16.mxu0 0
    %1445 = vmatpush2.bf16.msra.mxu0 0
    %1446 = vmatprep.subr.bf16.mxu0 0
    %1447 = vmatpush2.bf16.msra.mxu0 0
    %1448 = vmatprep.subr.bf16.mxu0 0
    %1449 = vmatpush2.bf16.msra.mxu0 0
    %1450 = vmatprep.subr.bf16.mxu0 0
    %1451 = vmatpush2.bf16.msra.mxu0 0
    %1452 = vmatprep.subr.bf16.mxu0 0
    %1453 = vmatpush2.bf16.msra.mxu0 0
    %1454 = vmatprep.subr.bf16.mxu0 0
    %1455 = vmatpush2.bf16.msra.mxu0 0
    %1456 = vmatprep.mubr.bf16.mxu0 0
    %1457 = vmatmul.mubr.bf16.gmra.mxu0 %v1422
    %v1458 = vpop.f32.mrf.mxu0
    %v1459 = vadd.f32 %v136, %v1458
    %v1460 = vpop.f32.mrf.mxu0
    %v1461 = vpop.f32.mrf.mxu0
    %v1462 = vadd.f32 %v136, %v1461
    %v1463 = vpop.f32.mrf.mxu0
    %1464 = vdwg.mxu0
    %v1465 = vpack.c.bf16 %v1459, %v1459
    %v1466 = vpack.c.bf16 %v1462, %v1462
    %v1467 = vpack.c.bf16 %v189, %v189
    %v1468 = vpack.c.bf16 %v192, %v192
    %v1470 = vsel %vm309, %v1465, 0
    %v1473 = vsel %vm309, %v1467, 0
    %1475 = vmatprep.subr.bf16.mxu0 0
    %1476 = vmatpush1.bf16.xpose.msra.mxu0 0
    %1477 = vmatprep.subr.bf16.mxu0 0
    %1478 = vmatpush1.bf16.xpose.msra.mxu0 0
    %1479 = vmatprep.subr.bf16.mxu0 0
    %1480 = vmatpush1.bf16.xpose.msra.mxu0 0
    %1481 = vmatprep.subr.bf16.mxu0 0
    %1482 = vmatpush1.bf16.xpose.msra.mxu0 0
    %1483 = vmatprep.subr.bf16.mxu0 0
    %1484 = vmatpush1.bf16.xpose.msra.mxu0 0
    %1485 = vmatprep.subr.bf16.mxu0 0
    %1486 = vmatpush1.bf16.xpose.msra.mxu0 0
    %1487 = vmatprep.subr.bf16.mxu0 0
    %1488 = vmatpush1.bf16.xpose.msra.mxu0 0
    %1489 = vmatprep.subr.bf16.mxu0 0
    %1490 = vmatpush1.bf16.xpose.msra.mxu0 %v1473
    %1491 = vmatprep.subr.bf16.mxu0 0
    %1492 = vmatpush2.bf16.xpose.msra.mxu0 0
    %1493 = vmatprep.subr.bf16.mxu0 0
    %1494 = vmatpush2.bf16.xpose.msra.mxu0 0
    %1495 = vmatprep.subr.bf16.mxu0 0
    %1496 = vmatpush2.bf16.xpose.msra.mxu0 0
    %1497 = vmatprep.subr.bf16.mxu0 0
    %1498 = vmatpush2.bf16.xpose.msra.mxu0 0
    %1499 = vmatprep.subr.bf16.mxu0 0
    %1500 = vmatpush2.bf16.xpose.msra.mxu0 0
    %1501 = vmatprep.subr.bf16.mxu0 0
    %1502 = vmatpush2.bf16.xpose.msra.mxu0 0
    %1503 = vmatprep.subr.bf16.mxu0 0
    %1504 = vmatpush2.bf16.xpose.msra.mxu0 0
    %1505 = vmatprep.subr.bf16.mxu0 0
    %1506 = vmatpush2.bf16.xpose.msra.mxu0 0
    %1507 = vmatprep.mubr.bf16.mxu0 0
    %1508 = vmatmul.mubr.bf16.gmra.mxu0 %v1470
    %v1509 = vpop.f32.mrf.mxu0
    %v1510 = vadd.f32 0.0, %v1509
    %v1511 = vpop.f32.mrf.mxu0
    %v1512 = vpop.f32.mrf.mxu0
    %v1513 = vpop.f32.mrf.mxu0
    %1514 = vdwg.mxu0
    %v1516 = vsel %vm309, %v1466, 0
    %v1519 = vsel %vm309, %v1468, 0
    %1521 = vmatprep.subr.bf16.mxu0 0
    %1522 = vmatpush1.bf16.xpose.msra.mxu0 0
    %1523 = vmatprep.subr.bf16.mxu0 0
    %1524 = vmatpush1.bf16.xpose.msra.mxu0 0
    %1525 = vmatprep.subr.bf16.mxu0 0
    %1526 = vmatpush1.bf16.xpose.msra.mxu0 0
    %1527 = vmatprep.subr.bf16.mxu0 0
    %1528 = vmatpush1.bf16.xpose.msra.mxu0 0
    %1529 = vmatprep.subr.bf16.mxu0 0
    %1530 = vmatpush1.bf16.xpose.msra.mxu0 0
    %1531 = vmatprep.subr.bf16.mxu0 0
    %1532 = vmatpush1.bf16.xpose.msra.mxu0 0
    %1533 = vmatprep.subr.bf16.mxu0 0
    %1534 = vmatpush1.bf16.xpose.msra.mxu0 0
    %1535 = vmatprep.subr.bf16.mxu0 0
    %1536 = vmatpush1.bf16.xpose.msra.mxu0 %v1519
    %1537 = vmatprep.subr.bf16.mxu0 0
    %1538 = vmatpush2.bf16.xpose.msra.mxu0 0
    %1539 = vmatprep.subr.bf16.mxu0 0
    %1540 = vmatpush2.bf16.xpose.msra.mxu0 0
    %1541 = vmatprep.subr.bf16.mxu0 0
    %1542 = vmatpush2.bf16.xpose.msra.mxu0 0
    %1543 = vmatprep.subr.bf16.mxu0 0
    %1544 = vmatpush2.bf16.xpose.msra.mxu0 0
    %1545 = vmatprep.subr.bf16.mxu0 0
    %1546 = vmatpush2.bf16.xpose.msra.mxu0 0
    %1547 = vmatprep.subr.bf16.mxu0 0
    %1548 = vmatpush2.bf16.xpose.msra.mxu0 0
    %1549 = vmatprep.subr.bf16.mxu0 0
    %1550 = vmatpush2.bf16.xpose.msra.mxu0 0
    %1551 = vmatprep.subr.bf16.mxu0 0
    %1552 = vmatpush2.bf16.xpose.msra.mxu0 0
    %1553 = vmatprep.mubr.bf16.mxu0 0
    %1554 = vmatmul.mubr.bf16.gmra.mxu0 %v1516
    %v1555 = vpop.f32.mrf.mxu0
    %v1556 = vadd.f32 0.0, %v1555
    %v1557 = vpop.f32.mrf.mxu0
    %v1558 = vpop.f32.mrf.mxu0
    %v1559 = vpop.f32.mrf.mxu0
    %1560 = vdwg.mxu0
    %v1561 = vmul.f32 %v1510, 0.35355338
    %v1562 = vmul.f32 %v1556, 0.35355338
    %v1563 = vsel %vm309, %v1561, -inf
    %1564 = vmax.xlane.f32.xlu0 %v1563
    %v1565 = vpop.xlane.xlu0 %1564
    %v1566 = vsel %vm309, %v1562, -inf
    %1567 = vmax.xlane.f32.xlu0 %v1566
    %v1568 = vpop.xlane.xlu0 %1567
    %v1569 = vsub.f32 %v1561, %v1565
    %v1570 = vsub.f32 %v1562, %v1568
    %v1571 = vmul.f32 %v1569, 1.442695
    %v1572 = vpow.pop %v1571
    %v1573 = vmul.f32 %v1570, 1.442695
    %v1574 = vpow.pop %v1573
    %v1575 = vsel %vm309, %v1572, 0.0
    %1576 = vadd.xlane.f32.xlu0 %v1575
    %v1577 = vpop.xlane.xlu0 %1576
    %v1578 = vsel %vm309, %v1574, 0.0
    %1579 = vadd.xlane.f32.xlu0 %v1578
    %v1580 = vpop.xlane.xlu0 %1579
    %v1581 = vrcp.pop %v1577
    %v1582 = vrcp.pop %v1580
    %v1583 = vmul.f32 %v1572, %v1581
    %v1584 = vmul.f32 %v1574, %v1582
    %v1585 = vpack.c.bf16 %v1583, %v1583
    %v1586 = vpack.c.bf16 %v1584, %v1584
    %1588 = vrot.lane.b32.xlu0 %v1467, 96
    %v1589 = vpop.permute.xlu0 %1588
    %v1591 = vsel %vm309, %v1585, 0
    %v1594 = vsel %vm428, %v1589, 0
    %1596 = vmatprep.subr.bf16.mxu0 0
    %1597 = vmatpush1.bf16.msra.mxu0 0
    %1598 = vmatprep.subr.bf16.mxu0 0
    %1599 = vmatpush1.bf16.msra.mxu0 0
    %1600 = vmatprep.subr.bf16.mxu0 0
    %1601 = vmatpush1.bf16.msra.mxu0 0
    %1602 = vmatprep.subr.bf16.mxu0 0
    %1603 = vmatpush1.bf16.msra.mxu0 0
    %1604 = vmatprep.subr.bf16.mxu0 0
    %1605 = vmatpush1.bf16.msra.mxu0 0
    %1606 = vmatprep.subr.bf16.mxu0 0
    %1607 = vmatpush1.bf16.msra.mxu0 0
    %1608 = vmatprep.subr.bf16.mxu0 0
    %1609 = vmatpush1.bf16.msra.mxu0 0
    %1610 = vmatprep.subr.bf16.mxu0 0
    %1611 = vmatpush1.bf16.msra.mxu0 %v1594
    %1612 = vmatprep.subr.bf16.mxu0 0
    %1613 = vmatpush2.bf16.msra.mxu0 0
    %1614 = vmatprep.subr.bf16.mxu0 0
    %1615 = vmatpush2.bf16.msra.mxu0 0
    %1616 = vmatprep.subr.bf16.mxu0 0
    %1617 = vmatpush2.bf16.msra.mxu0 0
    %1618 = vmatprep.subr.bf16.mxu0 0
    %1619 = vmatpush2.bf16.msra.mxu0 0
    %1620 = vmatprep.subr.bf16.mxu0 0
    %1621 = vmatpush2.bf16.msra.mxu0 0
    %1622 = vmatprep.subr.bf16.mxu0 0
    %1623 = vmatpush2.bf16.msra.mxu0 0
    %1624 = vmatprep.subr.bf16.mxu0 0
    %1625 = vmatpush2.bf16.msra.mxu0 0
    %1626 = vmatprep.subr.bf16.mxu0 0
    %1627 = vmatpush2.bf16.msra.mxu0 0
    %1628 = vmatprep.mubr.bf16.mxu0 0
    %1629 = vmatmul.mubr.bf16.gmra.mxu0 %v1591
    %v1630 = vpop.f32.mrf.mxu0
    %v1631 = vadd.f32 0.0, %v1630
    %v1632 = vpop.f32.mrf.mxu0
    %v1633 = vpop.f32.mrf.mxu0
    %v1634 = vpop.f32.mrf.mxu0
    %1635 = vdwg.mxu0
    %1637 = vrot.lane.b32.xlu0 %v1468, 96
    %v1638 = vpop.permute.xlu0 %1637
    %v1640 = vsel %vm309, %v1586, 0
    %v1643 = vsel %vm428, %v1638, 0
    %1645 = vmatprep.subr.bf16.mxu0 0
    %1646 = vmatpush1.bf16.msra.mxu0 0
    %1647 = vmatprep.subr.bf16.mxu0 0
    %1648 = vmatpush1.bf16.msra.mxu0 0
    %1649 = vmatprep.subr.bf16.mxu0 0
    %1650 = vmatpush1.bf16.msra.mxu0 0
    %1651 = vmatprep.subr.bf16.mxu0 0
    %1652 = vmatpush1.bf16.msra.mxu0 0
    %1653 = vmatprep.subr.bf16.mxu0 0
    %1654 = vmatpush1.bf16.msra.mxu0 0
    %1655 = vmatprep.subr.bf16.mxu0 0
    %1656 = vmatpush1.bf16.msra.mxu0 0
    %1657 = vmatprep.subr.bf16.mxu0 0
    %1658 = vmatpush1.bf16.msra.mxu0 0
    %1659 = vmatprep.subr.bf16.mxu0 0
    %1660 = vmatpush1.bf16.msra.mxu0 %v1643
    %1661 = vmatprep.subr.bf16.mxu0 0
    %1662 = vmatpush2.bf16.msra.mxu0 0
    %1663 = vmatprep.subr.bf16.mxu0 0
    %1664 = vmatpush2.bf16.msra.mxu0 0
    %1665 = vmatprep.subr.bf16.mxu0 0
    %1666 = vmatpush2.bf16.msra.mxu0 0
    %1667 = vmatprep.subr.bf16.mxu0 0
    %1668 = vmatpush2.bf16.msra.mxu0 0
    %1669 = vmatprep.subr.bf16.mxu0 0
    %1670 = vmatpush2.bf16.msra.mxu0 0
    %1671 = vmatprep.subr.bf16.mxu0 0
    %1672 = vmatpush2.bf16.msra.mxu0 0
    %1673 = vmatprep.subr.bf16.mxu0 0
    %1674 = vmatpush2.bf16.msra.mxu0 0
    %1675 = vmatprep.subr.bf16.mxu0 0
    %1676 = vmatpush2.bf16.msra.mxu0 0
    %1677 = vmatprep.mubr.bf16.mxu0 0
    %1678 = vmatmul.mubr.bf16.gmra.mxu0 %v1640
    %v1679 = vpop.f32.mrf.mxu0
    %v1680 = vadd.f32 0.0, %v1679
    %v1681 = vpop.f32.mrf.mxu0
    %v1682 = vpop.f32.mrf.mxu0
    %v1683 = vpop.f32.mrf.mxu0
    %1684 = vdwg.mxu0
    %v1685 = vpack.c.bf16 %v1680, %v1631
    %1687 = vrot.lane.b32.xlu0 %v1465, 120
    %v1688 = vpop.permute.xlu0 %1687
    %1689 = vrot.lane.b32.xlu0 %v1467, 120
    %v1690 = vpop.permute.xlu0 %1689
    %v1692 = vsel %vm309, %v1688, 0
    %v1695 = vsel %vm309, %v1690, 0
    %1697 = vmatprep.subr.bf16.mxu0 0
    %1698 = vmatpush1.bf16.xpose.msra.mxu0 0
    %1699 = vmatprep.subr.bf16.mxu0 0
    %1700 = vmatpush1.bf16.xpose.msra.mxu0 0
    %1701 = vmatprep.subr.bf16.mxu0 0
    %1702 = vmatpush1.bf16.xpose.msra.mxu0 0
    %1703 = vmatprep.subr.bf16.mxu0 0
    %1704 = vmatpush1.bf16.xpose.msra.mxu0 0
    %1705 = vmatprep.subr.bf16.mxu0 0
    %1706 = vmatpush1.bf16.xpose.msra.mxu0 0
    %1707 = vmatprep.subr.bf16.mxu0 0
    %1708 = vmatpush1.bf16.xpose.msra.mxu0 0
    %1709 = vmatprep.subr.bf16.mxu0 0
    %1710 = vmatpush1.bf16.xpose.msra.mxu0 0
    %1711 = vmatprep.subr.bf16.mxu0 0
    %1712 = vmatpush1.bf16.xpose.msra.mxu0 %v1695
    %1713 = vmatprep.subr.bf16.mxu0 0
    %1714 = vmatpush2.bf16.xpose.msra.mxu0 0
    %1715 = vmatprep.subr.bf16.mxu0 0
    %1716 = vmatpush2.bf16.xpose.msra.mxu0 0
    %1717 = vmatprep.subr.bf16.mxu0 0
    %1718 = vmatpush2.bf16.xpose.msra.mxu0 0
    %1719 = vmatprep.subr.bf16.mxu0 0
    %1720 = vmatpush2.bf16.xpose.msra.mxu0 0
    %1721 = vmatprep.subr.bf16.mxu0 0
    %1722 = vmatpush2.bf16.xpose.msra.mxu0 0
    %1723 = vmatprep.subr.bf16.mxu0 0
    %1724 = vmatpush2.bf16.xpose.msra.mxu0 0
    %1725 = vmatprep.subr.bf16.mxu0 0
    %1726 = vmatpush2.bf16.xpose.msra.mxu0 0
    %1727 = vmatprep.subr.bf16.mxu0 0
    %1728 = vmatpush2.bf16.xpose.msra.mxu0 0
    %1729 = vmatprep.mubr.bf16.mxu0 0
    %1730 = vmatmul.mubr.bf16.gmra.mxu0 %v1692
    %v1731 = vpop.f32.mrf.mxu0
    %v1732 = vadd.f32 0.0, %v1731
    %v1733 = vpop.f32.mrf.mxu0
    %v1734 = vpop.f32.mrf.mxu0
    %v1735 = vpop.f32.mrf.mxu0
    %1736 = vdwg.mxu0
    %1738 = vrot.lane.b32.xlu0 %v1466, 120
    %v1739 = vpop.permute.xlu0 %1738
    %1740 = vrot.lane.b32.xlu0 %v1468, 120
    %v1741 = vpop.permute.xlu0 %1740
    %v1743 = vsel %vm309, %v1739, 0
    %v1746 = vsel %vm309, %v1741, 0
    %1748 = vmatprep.subr.bf16.mxu0 0
    %1749 = vmatpush1.bf16.xpose.msra.mxu0 0
    %1750 = vmatprep.subr.bf16.mxu0 0
    %1751 = vmatpush1.bf16.xpose.msra.mxu0 0
    %1752 = vmatprep.subr.bf16.mxu0 0
    %1753 = vmatpush1.bf16.xpose.msra.mxu0 0
    %1754 = vmatprep.subr.bf16.mxu0 0
    %1755 = vmatpush1.bf16.xpose.msra.mxu0 0
    %1756 = vmatprep.subr.bf16.mxu0 0
    %1757 = vmatpush1.bf16.xpose.msra.mxu0 0
    %1758 = vmatprep.subr.bf16.mxu0 0
    %1759 = vmatpush1.bf16.xpose.msra.mxu0 0
    %1760 = vmatprep.subr.bf16.mxu0 0
    %1761 = vmatpush1.bf16.xpose.msra.mxu0 0
    %1762 = vmatprep.subr.bf16.mxu0 0
    %1763 = vmatpush1.bf16.xpose.msra.mxu0 %v1746
    %1764 = vmatprep.subr.bf16.mxu0 0
    %1765 = vmatpush2.bf16.xpose.msra.mxu0 0
    %1766 = vmatprep.subr.bf16.mxu0 0
    %1767 = vmatpush2.bf16.xpose.msra.mxu0 0
    %1768 = vmatprep.subr.bf16.mxu0 0
    %1769 = vmatpush2.bf16.xpose.msra.mxu0 0
    %1770 = vmatprep.subr.bf16.mxu0 0
    %1771 = vmatpush2.bf16.xpose.msra.mxu0 0
    %1772 = vmatprep.subr.bf16.mxu0 0
    %1773 = vmatpush2.bf16.xpose.msra.mxu0 0
    %1774 = vmatprep.subr.bf16.mxu0 0
    %1775 = vmatpush2.bf16.xpose.msra.mxu0 0
    %1776 = vmatprep.subr.bf16.mxu0 0
    %1777 = vmatpush2.bf16.xpose.msra.mxu0 0
    %1778 = vmatprep.subr.bf16.mxu0 0
    %1779 = vmatpush2.bf16.xpose.msra.mxu0 0
    %1780 = vmatprep.mubr.bf16.mxu0 0
    %1781 = vmatmul.mubr.bf16.gmra.mxu0 %v1743
    %v1782 = vpop.f32.mrf.mxu0
    %v1783 = vadd.f32 0.0, %v1782
    %v1784 = vpop.f32.mrf.mxu0
    %v1785 = vpop.f32.mrf.mxu0
    %v1786 = vpop.f32.mrf.mxu0
    %1787 = vdwg.mxu0
    %v1788 = vmul.f32 %v1732, 0.35355338
    %v1789 = vmul.f32 %v1783, 0.35355338
    %v1790 = vsel %vm309, %v1788, -inf
    %1791 = vmax.xlane.f32.xlu0 %v1790
    %v1792 = vpop.xlane.xlu0 %1791
    %v1793 = vsel %vm309, %v1789, -inf
    %1794 = vmax.xlane.f32.xlu0 %v1793
    %v1795 = vpop.xlane.xlu0 %1794
    %v1796 = vsub.f32 %v1788, %v1792
    %v1797 = vsub.f32 %v1789, %v1795
    %v1798 = vmul.f32 %v1796, 1.442695
    %v1799 = vpow.pop %v1798
    %v1800 = vmul.f32 %v1797, 1.442695
    %v1801 = vpow.pop %v1800
    %v1802 = vsel %vm309, %v1799, 0.0
    %1803 = vadd.xlane.f32.xlu0 %v1802
    %v1804 = vpop.xlane.xlu0 %1803
    %v1805 = vsel %vm309, %v1801, 0.0
    %1806 = vadd.xlane.f32.xlu0 %v1805
    %v1807 = vpop.xlane.xlu0 %1806
    %v1808 = vrcp.pop %v1804
    %v1809 = vrcp.pop %v1807
    %v1810 = vmul.f32 %v1799, %v1808
    %v1811 = vmul.f32 %v1801, %v1809
    %v1812 = vpack.c.bf16 %v1810, %v1810
    %v1813 = vpack.c.bf16 %v1811, %v1811
    %1814 = vrot.lane.b32.xlu0 %v1467, 88
    %v1815 = vpop.permute.xlu0 %1814
    %v1817 = vsel %vm309, %v1812, 0
    %v1820 = vsel %vm428, %v1815, 0
    %1822 = vmatprep.subr.bf16.mxu0 0
    %1823 = vmatpush1.bf16.msra.mxu0 0
    %1824 = vmatprep.subr.bf16.mxu0 0
    %1825 = vmatpush1.bf16.msra.mxu0 0
    %1826 = vmatprep.subr.bf16.mxu0 0
    %1827 = vmatpush1.bf16.msra.mxu0 0
    %1828 = vmatprep.subr.bf16.mxu0 0
    %1829 = vmatpush1.bf16.msra.mxu0 0
    %1830 = vmatprep.subr.bf16.mxu0 0
    %1831 = vmatpush1.bf16.msra.mxu0 0
    %1832 = vmatprep.subr.bf16.mxu0 0
    %1833 = vmatpush1.bf16.msra.mxu0 0
    %1834 = vmatprep.subr.bf16.mxu0 0
    %1835 = vmatpush1.bf16.msra.mxu0 0
    %1836 = vmatprep.subr.bf16.mxu0 0
    %1837 = vmatpush1.bf16.msra.mxu0 %v1820
    %1838 = vmatprep.subr.bf16.mxu0 0
    %1839 = vmatpush2.bf16.msra.mxu0 0
    %1840 = vmatprep.subr.bf16.mxu0 0
    %1841 = vmatpush2.bf16.msra.mxu0 0
    %1842 = vmatprep.subr.bf16.mxu0 0
    %1843 = vmatpush2.bf16.msra.mxu0 0
    %1844 = vmatprep.subr.bf16.mxu0 0
    %1845 = vmatpush2.bf16.msra.mxu0 0
    %1846 = vmatprep.subr.bf16.mxu0 0
    %1847 = vmatpush2.bf16.msra.mxu0 0
    %1848 = vmatprep.subr.bf16.mxu0 0
    %1849 = vmatpush2.bf16.msra.mxu0 0
    %1850 = vmatprep.subr.bf16.mxu0 0
    %1851 = vmatpush2.bf16.msra.mxu0 0
    %1852 = vmatprep.subr.bf16.mxu0 0
    %1853 = vmatpush2.bf16.msra.mxu0 0
    %1854 = vmatprep.mubr.bf16.mxu0 0
    %1855 = vmatmul.mubr.bf16.gmra.mxu0 %v1817
    %v1856 = vpop.f32.mrf.mxu0
    %v1857 = vadd.f32 0.0, %v1856
    %v1858 = vpop.f32.mrf.mxu0
    %v1859 = vpop.f32.mrf.mxu0
    %v1860 = vpop.f32.mrf.mxu0
    %1861 = vdwg.mxu0
    %1862 = vrot.lane.b32.xlu0 %v1468, 88
    %v1863 = vpop.permute.xlu0 %1862
    %v1865 = vsel %vm309, %v1813, 0
    %v1868 = vsel %vm428, %v1863, 0
    %1870 = vmatprep.subr.bf16.mxu0 0
    %1871 = vmatpush1.bf16.msra.mxu0 0
    %1872 = vmatprep.subr.bf16.mxu0 0
    %1873 = vmatpush1.bf16.msra.mxu0 0
    %1874 = vmatprep.subr.bf16.mxu0 0
    %1875 = vmatpush1.bf16.msra.mxu0 0
    %1876 = vmatprep.subr.bf16.mxu0 0
    %1877 = vmatpush1.bf16.msra.mxu0 0
    %1878 = vmatprep.subr.bf16.mxu0 0
    %1879 = vmatpush1.bf16.msra.mxu0 0
    %1880 = vmatprep.subr.bf16.mxu0 0
    %1881 = vmatpush1.bf16.msra.mxu0 0
    %1882 = vmatprep.subr.bf16.mxu0 0
    %1883 = vmatpush1.bf16.msra.mxu0 0
    %1884 = vmatprep.subr.bf16.mxu0 0
    %1885 = vmatpush1.bf16.msra.mxu0 %v1868
    %1886 = vmatprep.subr.bf16.mxu0 0
    %1887 = vmatpush2.bf16.msra.mxu0 0
    %1888 = vmatprep.subr.bf16.mxu0 0
    %1889 = vmatpush2.bf16.msra.mxu0 0
    %1890 = vmatprep.subr.bf16.mxu0 0
    %1891 = vmatpush2.bf16.msra.mxu0 0
    %1892 = vmatprep.subr.bf16.mxu0 0
    %1893 = vmatpush2.bf16.msra.mxu0 0
    %1894 = vmatprep.subr.bf16.mxu0 0
    %1895 = vmatpush2.bf16.msra.mxu0 0
    %1896 = vmatprep.subr.bf16.mxu0 0
    %1897 = vmatpush2.bf16.msra.mxu0 0
    %1898 = vmatprep.subr.bf16.mxu0 0
    %1899 = vmatpush2.bf16.msra.mxu0 0
    %1900 = vmatprep.subr.bf16.mxu0 0
    %1901 = vmatpush2.bf16.msra.mxu0 0
    %1902 = vmatprep.mubr.bf16.mxu0 0
    %1903 = vmatmul.mubr.bf16.gmra.mxu0 %v1865
    %v1904 = vpop.f32.mrf.mxu0
    %v1905 = vadd.f32 0.0, %v1904
    %v1906 = vpop.f32.mrf.mxu0
    %v1907 = vpop.f32.mrf.mxu0
    %v1908 = vpop.f32.mrf.mxu0
    %1909 = vdwg.mxu0
    %v1910 = vpack.c.bf16 %v1905, %v1857
    %v1911 = vpack.c.b16 %v143, %v143
    %1912 = vrot.lane.b32.xlu0 %v1911, 64
    %v1913 = vpop.permute.xlu0 %1912
    %v1915 = vsel %vm309, %v1910, 0
    %v1918 = vsel %vm428, %v1913, 0
    %1920 = vmatprep.subr.bf16.mxu0 0
    %1921 = vmatpush1.bf16.msra.mxu0 0
    %1922 = vmatprep.subr.bf16.mxu0 0
    %1923 = vmatpush1.bf16.msra.mxu0 0
    %1924 = vmatprep.subr.bf16.mxu0 0
    %1925 = vmatpush1.bf16.msra.mxu0 0
    %1926 = vmatprep.subr.bf16.mxu0 0
    %1927 = vmatpush1.bf16.msra.mxu0 0
    %1928 = vmatprep.subr.bf16.mxu0 0
    %1929 = vmatpush1.bf16.msra.mxu0 0
    %1930 = vmatprep.subr.bf16.mxu0 0
    %1931 = vmatpush1.bf16.msra.mxu0 0
    %1932 = vmatprep.subr.bf16.mxu0 0
    %1933 = vmatpush1.bf16.msra.mxu0 0
    %1934 = vmatprep.subr.bf16.mxu0 0
    %1935 = vmatpush1.bf16.msra.mxu0 %v1918
    %1936 = vmatprep.subr.bf16.mxu0 0
    %1937 = vmatpush2.bf16.msra.mxu0 0
    %1938 = vmatprep.subr.bf16.mxu0 0
    %1939 = vmatpush2.bf16.msra.mxu0 0
    %1940 = vmatprep.subr.bf16.mxu0 0
    %1941 = vmatpush2.bf16.msra.mxu0 0
    %1942 = vmatprep.subr.bf16.mxu0 0
    %1943 = vmatpush2.bf16.msra.mxu0 0
    %1944 = vmatprep.subr.bf16.mxu0 0
    %1945 = vmatpush2.bf16.msra.mxu0 0
    %1946 = vmatprep.subr.bf16.mxu0 0
    %1947 = vmatpush2.bf16.msra.mxu0 0
    %1948 = vmatprep.subr.bf16.mxu0 0
    %1949 = vmatpush2.bf16.msra.mxu0 0
    %1950 = vmatprep.subr.bf16.mxu0 0
    %1951 = vmatpush2.bf16.msra.mxu0 0
    %1952 = vmatprep.mubr.bf16.mxu0 0
    %1953 = vmatmul.mubr.bf16.gmra.mxu0 %v1915
    %v1954 = vpop.f32.mrf.mxu0
    %v1955 = vadd.f32 0.0, %v1954
    %v1956 = vpop.f32.mrf.mxu0
    %v1957 = vpop.f32.mrf.mxu0
    %v1958 = vadd.f32 0.0, %v1957
    %v1959 = vpop.f32.mrf.mxu0
    %1960 = vdwg.mxu0
    %v1961 = vpack.c.b16 %v142, %v142
    %1962 = vrot.lane.b32.xlu0 %v1961, 64
    %v1963 = vpop.permute.xlu0 %1962
    %v1965 = vsel %vm309, %v1685, 0
    %v1968 = vsel %vm428, %v1963, 0
    %1970 = vmatprep.subr.bf16.mxu0 0
    %1971 = vmatpush1.bf16.msra.mxu0 0
    %1972 = vmatprep.subr.bf16.mxu0 0
    %1973 = vmatpush1.bf16.msra.mxu0 0
    %1974 = vmatprep.subr.bf16.mxu0 0
    %1975 = vmatpush1.bf16.msra.mxu0 0
    %1976 = vmatprep.subr.bf16.mxu0 0
    %1977 = vmatpush1.bf16.msra.mxu0 0
    %1978 = vmatprep.subr.bf16.mxu0 0
    %1979 = vmatpush1.bf16.msra.mxu0 0
    %1980 = vmatprep.subr.bf16.mxu0 0
    %1981 = vmatpush1.bf16.msra.mxu0 0
    %1982 = vmatprep.subr.bf16.mxu0 0
    %1983 = vmatpush1.bf16.msra.mxu0 0
    %1984 = vmatprep.subr.bf16.mxu0 0
    %1985 = vmatpush1.bf16.msra.mxu0 %v1968
    %1986 = vmatprep.subr.bf16.mxu0 0
    %1987 = vmatpush2.bf16.msra.mxu0 0
    %1988 = vmatprep.subr.bf16.mxu0 0
    %1989 = vmatpush2.bf16.msra.mxu0 0
    %1990 = vmatprep.subr.bf16.mxu0 0
    %1991 = vmatpush2.bf16.msra.mxu0 0
    %1992 = vmatprep.subr.bf16.mxu0 0
    %1993 = vmatpush2.bf16.msra.mxu0 0
    %1994 = vmatprep.subr.bf16.mxu0 0
    %1995 = vmatpush2.bf16.msra.mxu0 0
    %1996 = vmatprep.subr.bf16.mxu0 0
    %1997 = vmatpush2.bf16.msra.mxu0 0
    %1998 = vmatprep.subr.bf16.mxu0 0
    %1999 = vmatpush2.bf16.msra.mxu0 0
    %2000 = vmatprep.subr.bf16.mxu0 0
    %2001 = vmatpush2.bf16.msra.mxu0 0
    %2002 = vmatprep.mubr.bf16.mxu0 0
    %2003 = vmatmul.mubr.bf16.gmra.mxu0 %v1965
    %v2004 = vpop.f32.mrf.mxu0
    %v2005 = vadd.f32 %v1955, %v2004
    %v2006 = vpop.f32.mrf.mxu0
    %v2007 = vpop.f32.mrf.mxu0
    %v2008 = vadd.f32 %v1958, %v2007
    %v2009 = vpop.f32.mrf.mxu0
    %2010 = vdwg.mxu0
    %2011 = vrot.lane.b32.xlu0 %v1465, 112
    %v2012 = vpop.permute.xlu0 %2011
    %2013 = vrot.lane.b32.xlu0 %v1467, 112
    %v2014 = vpop.permute.xlu0 %2013
    %v2016 = vsel %vm309, %v2012, 0
    %v2019 = vsel %vm309, %v2014, 0
    %2021 = vmatprep.subr.bf16.mxu0 0
    %2022 = vmatpush1.bf16.xpose.msra.mxu0 0
    %2023 = vmatprep.subr.bf16.mxu0 0
    %2024 = vmatpush1.bf16.xpose.msra.mxu0 0
    %2025 = vmatprep.subr.bf16.mxu0 0
    %2026 = vmatpush1.bf16.xpose.msra.mxu0 0
    %2027 = vmatprep.subr.bf16.mxu0 0
    %2028 = vmatpush1.bf16.xpose.msra.mxu0 0
    %2029 = vmatprep.subr.bf16.mxu0 0
    %2030 = vmatpush1.bf16.xpose.msra.mxu0 0
    %2031 = vmatprep.subr.bf16.mxu0 0
    %2032 = vmatpush1.bf16.xpose.msra.mxu0 0
    %2033 = vmatprep.subr.bf16.mxu0 0
    %2034 = vmatpush1.bf16.xpose.msra.mxu0 0
    %2035 = vmatprep.subr.bf16.mxu0 0
    %2036 = vmatpush1.bf16.xpose.msra.mxu0 %v2019
    %2037 = vmatprep.subr.bf16.mxu0 0
    %2038 = vmatpush2.bf16.xpose.msra.mxu0 0
    %2039 = vmatprep.subr.bf16.mxu0 0
    %2040 = vmatpush2.bf16.xpose.msra.mxu0 0
    %2041 = vmatprep.subr.bf16.mxu0 0
    %2042 = vmatpush2.bf16.xpose.msra.mxu0 0
    %2043 = vmatprep.subr.bf16.mxu0 0
    %2044 = vmatpush2.bf16.xpose.msra.mxu0 0
    %2045 = vmatprep.subr.bf16.mxu0 0
    %2046 = vmatpush2.bf16.xpose.msra.mxu0 0
    %2047 = vmatprep.subr.bf16.mxu0 0
    %2048 = vmatpush2.bf16.xpose.msra.mxu0 0
    %2049 = vmatprep.subr.bf16.mxu0 0
    %2050 = vmatpush2.bf16.xpose.msra.mxu0 0
    %2051 = vmatprep.subr.bf16.mxu0 0
    %2052 = vmatpush2.bf16.xpose.msra.mxu0 0
    %2053 = vmatprep.mubr.bf16.mxu0 0
    %2054 = vmatmul.mubr.bf16.gmra.mxu0 %v2016
    %v2055 = vpop.f32.mrf.mxu0
    %v2056 = vadd.f32 0.0, %v2055
    %v2057 = vpop.f32.mrf.mxu0
    %v2058 = vpop.f32.mrf.mxu0
    %v2059 = vpop.f32.mrf.mxu0
    %2060 = vdwg.mxu0
    %2061 = vrot.lane.b32.xlu0 %v1466, 112
    %v2062 = vpop.permute.xlu0 %2061
    %2063 = vrot.lane.b32.xlu0 %v1468, 112
    %v2064 = vpop.permute.xlu0 %2063
    %v2066 = vsel %vm309, %v2062, 0
    %v2069 = vsel %vm309, %v2064, 0
    %2071 = vmatprep.subr.bf16.mxu0 0
    %2072 = vmatpush1.bf16.xpose.msra.mxu0 0
    %2073 = vmatprep.subr.bf16.mxu0 0
    %2074 = vmatpush1.bf16.xpose.msra.mxu0 0
    %2075 = vmatprep.subr.bf16.mxu0 0
    %2076 = vmatpush1.bf16.xpose.msra.mxu0 0
    %2077 = vmatprep.subr.bf16.mxu0 0
    %2078 = vmatpush1.bf16.xpose.msra.mxu0 0
    %2079 = vmatprep.subr.bf16.mxu0 0
    %2080 = vmatpush1.bf16.xpose.msra.mxu0 0
    %2081 = vmatprep.subr.bf16.mxu0 0
    %2082 = vmatpush1.bf16.xpose.msra.mxu0 0
    %2083 = vmatprep.subr.bf16.mxu0 0
    %2084 = vmatpush1.bf16.xpose.msra.mxu0 0
    %2085 = vmatprep.subr.bf16.mxu0 0
    %2086 = vmatpush1.bf16.xpose.msra.mxu0 %v2069
    %2087 = vmatprep.subr.bf16.mxu0 0
    %2088 = vmatpush2.bf16.xpose.msra.mxu0 0
    %2089 = vmatprep.subr.bf16.mxu0 0
    %2090 = vmatpush2.bf16.xpose.msra.mxu0 0
    %2091 = vmatprep.subr.bf16.mxu0 0
    %2092 = vmatpush2.bf16.xpose.msra.mxu0 0
    %2093 = vmatprep.subr.bf16.mxu0 0
    %2094 = vmatpush2.bf16.xpose.msra.mxu0 0
    %2095 = vmatprep.subr.bf16.mxu0 0
    %2096 = vmatpush2.bf16.xpose.msra.mxu0 0
    %2097 = vmatprep.subr.bf16.mxu0 0
    %2098 = vmatpush2.bf16.xpose.msra.mxu0 0
    %2099 = vmatprep.subr.bf16.mxu0 0
    %2100 = vmatpush2.bf16.xpose.msra.mxu0 0
    %2101 = vmatprep.subr.bf16.mxu0 0
    %2102 = vmatpush2.bf16.xpose.msra.mxu0 0
    %2103 = vmatprep.mubr.bf16.mxu0 0
    %2104 = vmatmul.mubr.bf16.gmra.mxu0 %v2066
    %v2105 = vpop.f32.mrf.mxu0
    %v2106 = vadd.f32 0.0, %v2105
    %v2107 = vpop.f32.mrf.mxu0
    %v2108 = vpop.f32.mrf.mxu0
    %v2109 = vpop.f32.mrf.mxu0
    %2110 = vdwg.mxu0
    %v2111 = vmul.f32 %v2056, 0.35355338
    %v2112 = vmul.f32 %v2106, 0.35355338
    %v2113 = vsel %vm309, %v2111, -inf
    %2114 = vmax.xlane.f32.xlu0 %v2113
    %v2115 = vpop.xlane.xlu0 %2114
    %v2116 = vsel %vm309, %v2112, -inf
    %2117 = vmax.xlane.f32.xlu0 %v2116
    %v2118 = vpop.xlane.xlu0 %2117
    %v2119 = vsub.f32 %v2111, %v2115
    %v2120 = vsub.f32 %v2112, %v2118
    %v2121 = vmul.f32 %v2119, 1.442695
    %v2122 = vpow.pop %v2121
    %v2123 = vmul.f32 %v2120, 1.442695
    %v2124 = vpow.pop %v2123
    %v2125 = vsel %vm309, %v2122, 0.0
    %2126 = vadd.xlane.f32.xlu0 %v2125
    %v2127 = vpop.xlane.xlu0 %2126
    %v2128 = vsel %vm309, %v2124, 0.0
    %2129 = vadd.xlane.f32.xlu0 %v2128
    %v2130 = vpop.xlane.xlu0 %2129
    %v2131 = vrcp.pop %v2127
    %v2132 = vrcp.pop %v2130
    %v2133 = vmul.f32 %v2122, %v2131
    %v2134 = vmul.f32 %v2124, %v2132
    %v2135 = vpack.c.bf16 %v2133, %v2133
    %v2136 = vpack.c.bf16 %v2134, %v2134
    %2137 = vrot.lane.b32.xlu0 %v1467, 80
    %v2138 = vpop.permute.xlu0 %2137
    %v2140 = vsel %vm309, %v2135, 0
    %v2143 = vsel %vm428, %v2138, 0
    %2145 = vmatprep.subr.bf16.mxu0 0
    %2146 = vmatpush1.bf16.msra.mxu0 0
    %2147 = vmatprep.subr.bf16.mxu0 0
    %2148 = vmatpush1.bf16.msra.mxu0 0
    %2149 = vmatprep.subr.bf16.mxu0 0
    %2150 = vmatpush1.bf16.msra.mxu0 0
    %2151 = vmatprep.subr.bf16.mxu0 0
    %2152 = vmatpush1.bf16.msra.mxu0 0
    %2153 = vmatprep.subr.bf16.mxu0 0
    %2154 = vmatpush1.bf16.msra.mxu0 0
    %2155 = vmatprep.subr.bf16.mxu0 0
    %2156 = vmatpush1.bf16.msra.mxu0 0
    %2157 = vmatprep.subr.bf16.mxu0 0
    %2158 = vmatpush1.bf16.msra.mxu0 0
    %2159 = vmatprep.subr.bf16.mxu0 0
    %2160 = vmatpush1.bf16.msra.mxu0 %v2143
    %2161 = vmatprep.subr.bf16.mxu0 0
    %2162 = vmatpush2.bf16.msra.mxu0 0
    %2163 = vmatprep.subr.bf16.mxu0 0
    %2164 = vmatpush2.bf16.msra.mxu0 0
    %2165 = vmatprep.subr.bf16.mxu0 0
    %2166 = vmatpush2.bf16.msra.mxu0 0
    %2167 = vmatprep.subr.bf16.mxu0 0
    %2168 = vmatpush2.bf16.msra.mxu0 0
    %2169 = vmatprep.subr.bf16.mxu0 0
    %2170 = vmatpush2.bf16.msra.mxu0 0
    %2171 = vmatprep.subr.bf16.mxu0 0
    %2172 = vmatpush2.bf16.msra.mxu0 0
    %2173 = vmatprep.subr.bf16.mxu0 0
    %2174 = vmatpush2.bf16.msra.mxu0 0
    %2175 = vmatprep.subr.bf16.mxu0 0
    %2176 = vmatpush2.bf16.msra.mxu0 0
    %2177 = vmatprep.mubr.bf16.mxu0 0
    %2178 = vmatmul.mubr.bf16.gmra.mxu0 %v2140
    %v2179 = vpop.f32.mrf.mxu0
    %v2180 = vadd.f32 0.0, %v2179
    %v2181 = vpop.f32.mrf.mxu0
    %v2182 = vpop.f32.mrf.mxu0
    %v2183 = vpop.f32.mrf.mxu0
    %2184 = vdwg.mxu0
    %2185 = vrot.lane.b32.xlu0 %v1468, 80
    %v2186 = vpop.permute.xlu0 %2185
    %v2188 = vsel %vm309, %v2136, 0
    %v2191 = vsel %vm428, %v2186, 0
    %2193 = vmatprep.subr.bf16.mxu0 0
    %2194 = vmatpush1.bf16.msra.mxu0 0
    %2195 = vmatprep.subr.bf16.mxu0 0
    %2196 = vmatpush1.bf16.msra.mxu0 0
    %2197 = vmatprep.subr.bf16.mxu0 0
    %2198 = vmatpush1.bf16.msra.mxu0 0
    %2199 = vmatprep.subr.bf16.mxu0 0
    %2200 = vmatpush1.bf16.msra.mxu0 0
    %2201 = vmatprep.subr.bf16.mxu0 0
    %2202 = vmatpush1.bf16.msra.mxu0 0
    %2203 = vmatprep.subr.bf16.mxu0 0
    %2204 = vmatpush1.bf16.msra.mxu0 0
    %2205 = vmatprep.subr.bf16.mxu0 0
    %2206 = vmatpush1.bf16.msra.mxu0 0
    %2207 = vmatprep.subr.bf16.mxu0 0
    %2208 = vmatpush1.bf16.msra.mxu0 %v2191
    %2209 = vmatprep.subr.bf16.mxu0 0
    %2210 = vmatpush2.bf16.msra.mxu0 0
    %2211 = vmatprep.subr.bf16.mxu0 0
    %2212 = vmatpush2.bf16.msra.mxu0 0
    %2213 = vmatprep.subr.bf16.mxu0 0
    %2214 = vmatpush2.bf16.msra.mxu0 0
    %2215 = vmatprep.subr.bf16.mxu0 0
    %2216 = vmatpush2.bf16.msra.mxu0 0
    %2217 = vmatprep.subr.bf16.mxu0 0
    %2218 = vmatpush2.bf16.msra.mxu0 0
    %2219 = vmatprep.subr.bf16.mxu0 0
    %2220 = vmatpush2.bf16.msra.mxu0 0
    %2221 = vmatprep.subr.bf16.mxu0 0
    %2222 = vmatpush2.bf16.msra.mxu0 0
    %2223 = vmatprep.subr.bf16.mxu0 0
    %2224 = vmatpush2.bf16.msra.mxu0 0
    %2225 = vmatprep.mubr.bf16.mxu0 0
    %2226 = vmatmul.mubr.bf16.gmra.mxu0 %v2188
    %v2227 = vpop.f32.mrf.mxu0
    %v2228 = vadd.f32 0.0, %v2227
    %v2229 = vpop.f32.mrf.mxu0
    %v2230 = vpop.f32.mrf.mxu0
    %v2231 = vpop.f32.mrf.mxu0
    %2232 = vdwg.mxu0
    %v2233 = vpack.c.bf16 %v2228, %v2180
    %v2234 = vpack.c.b16 %v144, %v144
    %2235 = vrot.lane.b32.xlu0 %v2234, 64
    %v2236 = vpop.permute.xlu0 %2235
    %v2238 = vsel %vm309, %v2233, 0
    %v2241 = vsel %vm428, %v2236, 0
    %2243 = vmatprep.subr.bf16.mxu0 0
    %2244 = vmatpush1.bf16.msra.mxu0 0
    %2245 = vmatprep.subr.bf16.mxu0 0
    %2246 = vmatpush1.bf16.msra.mxu0 0
    %2247 = vmatprep.subr.bf16.mxu0 0
    %2248 = vmatpush1.bf16.msra.mxu0 0
    %2249 = vmatprep.subr.bf16.mxu0 0
    %2250 = vmatpush1.bf16.msra.mxu0 0
    %2251 = vmatprep.subr.bf16.mxu0 0
    %2252 = vmatpush1.bf16.msra.mxu0 0
    %2253 = vmatprep.subr.bf16.mxu0 0
    %2254 = vmatpush1.bf16.msra.mxu0 0
    %2255 = vmatprep.subr.bf16.mxu0 0
    %2256 = vmatpush1.bf16.msra.mxu0 0
    %2257 = vmatprep.subr.bf16.mxu0 0
    %2258 = vmatpush1.bf16.msra.mxu0 %v2241
    %2259 = vmatprep.subr.bf16.mxu0 0
    %2260 = vmatpush2.bf16.msra.mxu0 0
    %2261 = vmatprep.subr.bf16.mxu0 0
    %2262 = vmatpush2.bf16.msra.mxu0 0
    %2263 = vmatprep.subr.bf16.mxu0 0
    %2264 = vmatpush2.bf16.msra.mxu0 0
    %2265 = vmatprep.subr.bf16.mxu0 0
    %2266 = vmatpush2.bf16.msra.mxu0 0
    %2267 = vmatprep.subr.bf16.mxu0 0
    %2268 = vmatpush2.bf16.msra.mxu0 0
    %2269 = vmatprep.subr.bf16.mxu0 0
    %2270 = vmatpush2.bf16.msra.mxu0 0
    %2271 = vmatprep.subr.bf16.mxu0 0
    %2272 = vmatpush2.bf16.msra.mxu0 0
    %2273 = vmatprep.subr.bf16.mxu0 0
    %2274 = vmatpush2.bf16.msra.mxu0 0
    %2275 = vmatprep.mubr.bf16.mxu0 0
    %2276 = vmatmul.mubr.bf16.gmra.mxu0 %v2238
    %v2277 = vpop.f32.mrf.mxu0
    %v2278 = vadd.f32 0.0, %v2277
    %v2279 = vpop.f32.mrf.mxu0
    %v2280 = vpop.f32.mrf.mxu0
    %v2281 = vadd.f32 0.0, %v2280
    %v2282 = vpop.f32.mrf.mxu0
    %2283 = vdwg.mxu0
    %v2284 = vadd.f32 %v2005, %v2278
    %v2285 = vadd.f32 %v2008, %v2281
    %2286 = vrot.lane.b32.xlu0 %v1465, 104
    %v2287 = vpop.permute.xlu0 %2286
    %2288 = vrot.lane.b32.xlu0 %v1467, 104
    %v2289 = vpop.permute.xlu0 %2288
    %v2291 = vsel %vm309, %v2287, 0
    %v2294 = vsel %vm309, %v2289, 0
    %2296 = vmatprep.subr.bf16.mxu0 0
    %2297 = vmatpush1.bf16.xpose.msra.mxu0 0
    %2298 = vmatprep.subr.bf16.mxu0 0
    %2299 = vmatpush1.bf16.xpose.msra.mxu0 0
    %2300 = vmatprep.subr.bf16.mxu0 0
    %2301 = vmatpush1.bf16.xpose.msra.mxu0 0
    %2302 = vmatprep.subr.bf16.mxu0 0
    %2303 = vmatpush1.bf16.xpose.msra.mxu0 0
    %2304 = vmatprep.subr.bf16.mxu0 0
    %2305 = vmatpush1.bf16.xpose.msra.mxu0 0
    %2306 = vmatprep.subr.bf16.mxu0 0
    %2307 = vmatpush1.bf16.xpose.msra.mxu0 0
    %2308 = vmatprep.subr.bf16.mxu0 0
    %2309 = vmatpush1.bf16.xpose.msra.mxu0 0
    %2310 = vmatprep.subr.bf16.mxu0 0
    %2311 = vmatpush1.bf16.xpose.msra.mxu0 %v2294
    %2312 = vmatprep.subr.bf16.mxu0 0
    %2313 = vmatpush2.bf16.xpose.msra.mxu0 0
    %2314 = vmatprep.subr.bf16.mxu0 0
    %2315 = vmatpush2.bf16.xpose.msra.mxu0 0
    %2316 = vmatprep.subr.bf16.mxu0 0
    %2317 = vmatpush2.bf16.xpose.msra.mxu0 0
    %2318 = vmatprep.subr.bf16.mxu0 0
    %2319 = vmatpush2.bf16.xpose.msra.mxu0 0
    %2320 = vmatprep.subr.bf16.mxu0 0
    %2321 = vmatpush2.bf16.xpose.msra.mxu0 0
    %2322 = vmatprep.subr.bf16.mxu0 0
    %2323 = vmatpush2.bf16.xpose.msra.mxu0 0
    %2324 = vmatprep.subr.bf16.mxu0 0
    %2325 = vmatpush2.bf16.xpose.msra.mxu0 0
    %2326 = vmatprep.subr.bf16.mxu0 0
    %2327 = vmatpush2.bf16.xpose.msra.mxu0 0
    %2328 = vmatprep.mubr.bf16.mxu0 0
    %2329 = vmatmul.mubr.bf16.gmra.mxu0 %v2291
    %v2330 = vpop.f32.mrf.mxu0
    %v2331 = vadd.f32 0.0, %v2330
    %v2332 = vpop.f32.mrf.mxu0
    %v2333 = vpop.f32.mrf.mxu0
    %v2334 = vpop.f32.mrf.mxu0
    %2335 = vdwg.mxu0
    %2336 = vrot.lane.b32.xlu0 %v1466, 104
    %v2337 = vpop.permute.xlu0 %2336
    %2338 = vrot.lane.b32.xlu0 %v1468, 104
    %v2339 = vpop.permute.xlu0 %2338
    %v2341 = vsel %vm309, %v2337, 0
    %v2344 = vsel %vm309, %v2339, 0
    %2346 = vmatprep.subr.bf16.mxu0 0
    %2347 = vmatpush1.bf16.xpose.msra.mxu0 0
    %2348 = vmatprep.subr.bf16.mxu0 0
    %2349 = vmatpush1.bf16.xpose.msra.mxu0 0
    %2350 = vmatprep.subr.bf16.mxu0 0
    %2351 = vmatpush1.bf16.xpose.msra.mxu0 0
    %2352 = vmatprep.subr.bf16.mxu0 0
    %2353 = vmatpush1.bf16.xpose.msra.mxu0 0
    %2354 = vmatprep.subr.bf16.mxu0 0
    %2355 = vmatpush1.bf16.xpose.msra.mxu0 0
    %2356 = vmatprep.subr.bf16.mxu0 0
    %2357 = vmatpush1.bf16.xpose.msra.mxu0 0
    %2358 = vmatprep.subr.bf16.mxu0 0
    %2359 = vmatpush1.bf16.xpose.msra.mxu0 0
    %2360 = vmatprep.subr.bf16.mxu0 0
    %2361 = vmatpush1.bf16.xpose.msra.mxu0 %v2344
    %2362 = vmatprep.subr.bf16.mxu0 0
    %2363 = vmatpush2.bf16.xpose.msra.mxu0 0
    %2364 = vmatprep.subr.bf16.mxu0 0
    %2365 = vmatpush2.bf16.xpose.msra.mxu0 0
    %2366 = vmatprep.subr.bf16.mxu0 0
    %2367 = vmatpush2.bf16.xpose.msra.mxu0 0
    %2368 = vmatprep.subr.bf16.mxu0 0
    %2369 = vmatpush2.bf16.xpose.msra.mxu0 0
    %2370 = vmatprep.subr.bf16.mxu0 0
    %2371 = vmatpush2.bf16.xpose.msra.mxu0 0
    %2372 = vmatprep.subr.bf16.mxu0 0
    %2373 = vmatpush2.bf16.xpose.msra.mxu0 0
    %2374 = vmatprep.subr.bf16.mxu0 0
    %2375 = vmatpush2.bf16.xpose.msra.mxu0 0
    %2376 = vmatprep.subr.bf16.mxu0 0
    %2377 = vmatpush2.bf16.xpose.msra.mxu0 0
    %2378 = vmatprep.mubr.bf16.mxu0 0
    %2379 = vmatmul.mubr.bf16.gmra.mxu0 %v2341
    %v2380 = vpop.f32.mrf.mxu0
    %v2381 = vadd.f32 0.0, %v2380
    %v2382 = vpop.f32.mrf.mxu0
    %v2383 = vpop.f32.mrf.mxu0
    %v2384 = vpop.f32.mrf.mxu0
    %2385 = vdwg.mxu0
    %v2386 = vmul.f32 %v2331, 0.35355338
    %v2387 = vmul.f32 %v2381, 0.35355338
    %v2388 = vsel %vm309, %v2386, -inf
    %2389 = vmax.xlane.f32.xlu0 %v2388
    %v2390 = vpop.xlane.xlu0 %2389
    %v2391 = vsel %vm309, %v2387, -inf
    %2392 = vmax.xlane.f32.xlu0 %v2391
    %v2393 = vpop.xlane.xlu0 %2392
    %v2394 = vsub.f32 %v2386, %v2390
    %v2395 = vsub.f32 %v2387, %v2393
    %v2396 = vmul.f32 %v2394, 1.442695
    %v2397 = vpow.pop %v2396
    %v2398 = vmul.f32 %v2395, 1.442695
    %v2399 = vpow.pop %v2398
    %v2400 = vsel %vm309, %v2397, 0.0
    %2401 = vadd.xlane.f32.xlu0 %v2400
    %v2402 = vpop.xlane.xlu0 %2401
    %v2403 = vsel %vm309, %v2399, 0.0
    %2404 = vadd.xlane.f32.xlu0 %v2403
    %v2405 = vpop.xlane.xlu0 %2404
    %v2406 = vrcp.pop %v2402
    %v2407 = vrcp.pop %v2405
    %v2408 = vmul.f32 %v2397, %v2406
    %v2409 = vmul.f32 %v2399, %v2407
    %v2410 = vpack.c.bf16 %v2408, %v2408
    %v2411 = vpack.c.bf16 %v2409, %v2409
    %2412 = vrot.lane.b32.xlu0 %v1467, 72
    %v2413 = vpop.permute.xlu0 %2412
    %v2415 = vsel %vm309, %v2410, 0
    %v2418 = vsel %vm428, %v2413, 0
    %2420 = vmatprep.subr.bf16.mxu0 0
    %2421 = vmatpush1.bf16.msra.mxu0 0
    %2422 = vmatprep.subr.bf16.mxu0 0
    %2423 = vmatpush1.bf16.msra.mxu0 0
    %2424 = vmatprep.subr.bf16.mxu0 0
    %2425 = vmatpush1.bf16.msra.mxu0 0
    %2426 = vmatprep.subr.bf16.mxu0 0
    %2427 = vmatpush1.bf16.msra.mxu0 0
    %2428 = vmatprep.subr.bf16.mxu0 0
    %2429 = vmatpush1.bf16.msra.mxu0 0
    %2430 = vmatprep.subr.bf16.mxu0 0
    %2431 = vmatpush1.bf16.msra.mxu0 0
    %2432 = vmatprep.subr.bf16.mxu0 0
    %2433 = vmatpush1.bf16.msra.mxu0 0
    %2434 = vmatprep.subr.bf16.mxu0 0
    %2435 = vmatpush1.bf16.msra.mxu0 %v2418
    %2436 = vmatprep.subr.bf16.mxu0 0
    %2437 = vmatpush2.bf16.msra.mxu0 0
    %2438 = vmatprep.subr.bf16.mxu0 0
    %2439 = vmatpush2.bf16.msra.mxu0 0
    %2440 = vmatprep.subr.bf16.mxu0 0
    %2441 = vmatpush2.bf16.msra.mxu0 0
    %2442 = vmatprep.subr.bf16.mxu0 0
    %2443 = vmatpush2.bf16.msra.mxu0 0
    %2444 = vmatprep.subr.bf16.mxu0 0
    %2445 = vmatpush2.bf16.msra.mxu0 0
    %2446 = vmatprep.subr.bf16.mxu0 0
    %2447 = vmatpush2.bf16.msra.mxu0 0
    %2448 = vmatprep.subr.bf16.mxu0 0
    %2449 = vmatpush2.bf16.msra.mxu0 0
    %2450 = vmatprep.subr.bf16.mxu0 0
    %2451 = vmatpush2.bf16.msra.mxu0 0
    %2452 = vmatprep.mubr.bf16.mxu0 0
    %2453 = vmatmul.mubr.bf16.gmra.mxu0 %v2415
    %v2454 = vpop.f32.mrf.mxu0
    %v2455 = vadd.f32 0.0, %v2454
    %v2456 = vpop.f32.mrf.mxu0
    %v2457 = vpop.f32.mrf.mxu0
    %v2458 = vpop.f32.mrf.mxu0
    %2459 = vdwg.mxu0
    %2460 = vrot.lane.b32.xlu0 %v1468, 72
    %v2461 = vpop.permute.xlu0 %2460
    %v2463 = vsel %vm309, %v2411, 0
    %v2466 = vsel %vm428, %v2461, 0
    %2468 = vmatprep.subr.bf16.mxu0 0
    %2469 = vmatpush1.bf16.msra.mxu0 0
    %2470 = vmatprep.subr.bf16.mxu0 0
    %2471 = vmatpush1.bf16.msra.mxu0 0
    %2472 = vmatprep.subr.bf16.mxu0 0
    %2473 = vmatpush1.bf16.msra.mxu0 0
    %2474 = vmatprep.subr.bf16.mxu0 0
    %2475 = vmatpush1.bf16.msra.mxu0 0
    %2476 = vmatprep.subr.bf16.mxu0 0
    %2477 = vmatpush1.bf16.msra.mxu0 0
    %2478 = vmatprep.subr.bf16.mxu0 0
    %2479 = vmatpush1.bf16.msra.mxu0 0
    %2480 = vmatprep.subr.bf16.mxu0 0
    %2481 = vmatpush1.bf16.msra.mxu0 0
    %2482 = vmatprep.subr.bf16.mxu0 0
    %2483 = vmatpush1.bf16.msra.mxu0 %v2466
    %2484 = vmatprep.subr.bf16.mxu0 0
    %2485 = vmatpush2.bf16.msra.mxu0 0
    %2486 = vmatprep.subr.bf16.mxu0 0
    %2487 = vmatpush2.bf16.msra.mxu0 0
    %2488 = vmatprep.subr.bf16.mxu0 0
    %2489 = vmatpush2.bf16.msra.mxu0 0
    %2490 = vmatprep.subr.bf16.mxu0 0
    %2491 = vmatpush2.bf16.msra.mxu0 0
    %2492 = vmatprep.subr.bf16.mxu0 0
    %2493 = vmatpush2.bf16.msra.mxu0 0
    %2494 = vmatprep.subr.bf16.mxu0 0
    %2495 = vmatpush2.bf16.msra.mxu0 0
    %2496 = vmatprep.subr.bf16.mxu0 0
    %2497 = vmatpush2.bf16.msra.mxu0 0
    %2498 = vmatprep.subr.bf16.mxu0 0
    %2499 = vmatpush2.bf16.msra.mxu0 0
    %2500 = vmatprep.mubr.bf16.mxu0 0
    %2501 = vmatmul.mubr.bf16.gmra.mxu0 %v2463
    %v2502 = vpop.f32.mrf.mxu0
    %v2503 = vadd.f32 0.0, %v2502
    %v2504 = vpop.f32.mrf.mxu0
    %v2505 = vpop.f32.mrf.mxu0
    %v2506 = vpop.f32.mrf.mxu0
    %2507 = vdwg.mxu0
    %v2508 = vpack.c.bf16 %v2503, %v2455
    %v2509 = vpack.c.b16 %v145, %v145
    %2510 = vrot.lane.b32.xlu0 %v2509, 64
    %v2511 = vpop.permute.xlu0 %2510
    %v2513 = vsel %vm309, %v2508, 0
    %v2516 = vsel %vm428, %v2511, 0
    %2518 = vmatprep.subr.bf16.mxu0 0
    %2519 = vmatpush1.bf16.msra.mxu0 0
    %2520 = vmatprep.subr.bf16.mxu0 0
    %2521 = vmatpush1.bf16.msra.mxu0 0
    %2522 = vmatprep.subr.bf16.mxu0 0
    %2523 = vmatpush1.bf16.msra.mxu0 0
    %2524 = vmatprep.subr.bf16.mxu0 0
    %2525 = vmatpush1.bf16.msra.mxu0 0
    %2526 = vmatprep.subr.bf16.mxu0 0
    %2527 = vmatpush1.bf16.msra.mxu0 0
    %2528 = vmatprep.subr.bf16.mxu0 0
    %2529 = vmatpush1.bf16.msra.mxu0 0
    %2530 = vmatprep.subr.bf16.mxu0 0
    %2531 = vmatpush1.bf16.msra.mxu0 0
    %2532 = vmatprep.subr.bf16.mxu0 0
    %2533 = vmatpush1.bf16.msra.mxu0 %v2516
    %2534 = vmatprep.subr.bf16.mxu0 0
    %2535 = vmatpush2.bf16.msra.mxu0 0
    %2536 = vmatprep.subr.bf16.mxu0 0
    %2537 = vmatpush2.bf16.msra.mxu0 0
    %2538 = vmatprep.subr.bf16.mxu0 0
    %2539 = vmatpush2.bf16.msra.mxu0 0
    %2540 = vmatprep.subr.bf16.mxu0 0
    %2541 = vmatpush2.bf16.msra.mxu0 0
    %2542 = vmatprep.subr.bf16.mxu0 0
    %2543 = vmatpush2.bf16.msra.mxu0 0
    %2544 = vmatprep.subr.bf16.mxu0 0
    %2545 = vmatpush2.bf16.msra.mxu0 0
    %2546 = vmatprep.subr.bf16.mxu0 0
    %2547 = vmatpush2.bf16.msra.mxu0 0
    %2548 = vmatprep.subr.bf16.mxu0 0
    %2549 = vmatpush2.bf16.msra.mxu0 0
    %2550 = vmatprep.mubr.bf16.mxu0 0
    %2551 = vmatmul.mubr.bf16.gmra.mxu0 %v2513
    %v2552 = vpop.f32.mrf.mxu0
    %v2553 = vadd.f32 0.0, %v2552
    %v2554 = vpop.f32.mrf.mxu0
    %v2555 = vpop.f32.mrf.mxu0
    %v2556 = vadd.f32 0.0, %v2555
    %v2557 = vpop.f32.mrf.mxu0
    %2558 = vdwg.mxu0
    %v2559 = vadd.f32 %v2284, %v2553
    %v2560 = vadd.f32 %v2285, %v2556
    %2561 = vrot.lane.b32.xlu0 %v136, 64
    %v2562 = vpop.permute.xlu0 %2561
    %v2564 = vadd.f32 %v2559, %v2562
    %v2565 = vadd.f32 %v2560, %v2562
    %v2566 = vadd.f32 %v1370, %v2564
    %v2567 = vadd.f32 %v1371, %v2565
    %s2568 = sld [smem:[#allocation2 + $0x2]]
    %s2569 = sld [smem:[#allocation7 + $0x2]]
    %v2570 = vsel %vm150, %v2566, 0.0
    %2571 = vadd.xlane.f32.xlu0 %v2570
    %v2572 = vpop.xlane.xlu0 %2571
    %v2573 = vsel %vm150, %v2567, 0.0
    %2574 = vadd.xlane.f32.xlu0 %v2573
    %v2575 = vpop.xlane.xlu0 %2574
    %v2576 = vmul.f32 %v2572, %v203
    %v2577 = vmul.f32 %v2575, %v203
    %v2578 = vsub.f32 %v2566, %v2576
    %v2579 = vsub.f32 %v2567, %v2577
    %v2580 = vmul.f32 %v2578, %v2578
    %v2581 = vmul.f32 %v2579, %v2579
    %v2582 = vsel %vm150, %v2580, 0.0
    %2583 = vadd.xlane.f32.xlu0 %v2582
    %v2584 = vpop.xlane.xlu0 %2583
    %v2585 = vsel %vm150, %v2581, 0.0
    %2586 = vadd.xlane.f32.xlu0 %v2585
    %v2587 = vpop.xlane.xlu0 %2586
    %v2588 = vmul.f32 %v2584, 0.032258064
    %v2589 = vmul.f32 %v2587, 0.032258064
    %v2590 = vstv %s2568
    %v2591 = vmul.f32 %v2590, %v2578
    %v2592 = vmul.f32 %v2590, %v2579
    %v2593 = vrsqrt.pop %v2588
    %v2594 = vmul.f32 %v2588, %v2593
    %vm2595 = vcmp.eq.f32.partialorder %v2588, inf
    %v2596 = vsel %vm2595, %v2588, %v2594
    %vm2597 = vcmp.eq.f32.partialorder %v2588, 0.0
    %v2598 = vand.u32 %v2588, 2147483648
    %v2599 = vsel %vm2597, %v2598, %v2596
    %v2600 = vrsqrt.pop %v2589
    %v2601 = vmul.f32 %v2589, %v2600
    %vm2602 = vcmp.eq.f32.partialorder %v2589, inf
    %v2603 = vsel %vm2602, %v2589, %v2601
    %vm2604 = vcmp.eq.f32.partialorder %v2589, 0.0
    %v2605 = vand.u32 %v2589, 2147483648
    %v2606 = vsel %vm2604, %v2605, %v2603
    %v2607 = vadd.f32 %v2599, 1e-06
    %v2608 = vadd.f32 %v2606, 1e-06
    %v2609 = vrcp.pop %v2607
    %v2610 = vrcp.pop %v2608
    %v2611 = vmul.f32 %v2591, %v2609
    %v2612 = vmul.f32 %v2592, %v2610
    %v2613 = vstv %s2569
    %v2614 = vadd.f32 %v2611, %v2613
    %v2615 = vadd.f32 %v2612, %v2613
    %v2616 = vpack.c.bf16 %v2615, %v2614
    %v2617 = vld [vmem:[#allocation11] sm:$0xf]
    %v2618 = vld [vmem:[#allocation11 + $0x4] sm:$0xf]
    %v2619 = vld [vmem:[#allocation11 + $0x8] sm:$0xf]
    %v2620 = vld [vmem:[#allocation11 + $0xc] sm:$0xf]
    %v2621 = vld [vmem:[#allocation12] sm:$0x1]
    %v2623 = vlaneseq
    %v2624 = vshrl.u32 %v2623, 7
    %v2625 = vsub.s32 0, %v2624
    %v2626 = vrot.slane %v2621, %v2625
    %v2632 = vunpack.c.l.b16 %v2617
    %v2633 = vunpack.c.l.b16 %v2618
    %v2634 = vunpack.c.l.b16 %v2619
    %v2635 = vunpack.c.l.b16 %v2620
    %v2636 = vpack.c.b16 %v2633, %v2632
    %v2637 = vpack.c.b16 %v2635, %v2634
    %v2641 = vsel %vm150, %v2616, 0
    %2643 = vmatprep.subr.bf16.mxu0 0
    %2644 = vmatpush1.bf16.msra.mxu0 0
    %2645 = vmatprep.subr.bf16.mxu0 0
    %2646 = vmatpush1.bf16.msra.mxu0 0
    %2647 = vmatprep.subr.bf16.mxu0 0
    %2648 = vmatpush1.bf16.msra.mxu0 0
    %2649 = vmatprep.subr.bf16.mxu0 0
    %2650 = vmatpush1.bf16.msra.mxu0 0
    %2651 = vmatprep.subr.bf16.mxu0 0
    %2652 = vmatpush1.bf16.msra.mxu0 0
    %2653 = vmatprep.subr.bf16.mxu0 0
    %2654 = vmatpush1.bf16.msra.mxu0 0
    %2655 = vmatprep.subr.bf16.mxu0 0
    %2656 = vmatpush1.bf16.msra.mxu0 %v2637
    %2657 = vmatprep.subr.bf16.mxu0 0
    %2658 = vmatpush1.bf16.msra.mxu0 %v2636
    %2659 = vmatprep.subr.bf16.mxu0 0
    %2660 = vmatpush2.bf16.msra.mxu0 0
    %2661 = vmatprep.subr.bf16.mxu0 0
    %2662 = vmatpush2.bf16.msra.mxu0 0
    %2663 = vmatprep.subr.bf16.mxu0 0
    %2664 = vmatpush2.bf16.msra.mxu0 0
    %2665 = vmatprep.subr.bf16.mxu0 0
    %2666 = vmatpush2.bf16.msra.mxu0 0
    %2667 = vmatprep.subr.bf16.mxu0 0
    %2668 = vmatpush2.bf16.msra.mxu0 0
    %2669 = vmatprep.subr.bf16.mxu0 0
    %2670 = vmatpush2.bf16.msra.mxu0 0
    %2671 = vmatprep.subr.bf16.mxu0 0
    %2672 = vmatpush2.bf16.msra.mxu0 0
    %2673 = vmatprep.subr.bf16.mxu0 0
    %2674 = vmatpush2.bf16.msra.mxu0 0
    %2675 = vmatprep.mubr.bf16.mxu0 0
    %2676 = vmatmul.mubr.bf16.gmra.mxu0 %v2641
    %v2677 = vpop.f32.mrf.mxu0
    %v2678 = vadd.f32 %v2626, %v2677
    %v2679 = vpop.f32.mrf.mxu0
    %v2680 = vpop.f32.mrf.mxu0
    %v2681 = vadd.f32 %v2626, %v2680
    %v2682 = vpop.f32.mrf.mxu0
    %2683 = vdwg.mxu0
    %v2684 = vmax.f32 %v2678, 0.0
    %v2685 = vmax.f32 %v2681, 0.0
    %v2686 = vpack.c.bf16 %v2685, %v2684
    %v2687 = vld [vmem:[%s10] sm:$0xf]
    %v2688 = vld [vmem:[%s10 + $0x4] sm:$0xf]
    %v2689 = vld [vmem:[%s10 + $0x8] sm:$0xf]
    %v2690 = vld [vmem:[%s10 + $0xc] sm:$0xf]
    %v2691 = vld [vmem:[%s10 + $0x10] sm:$0xf]
    %v2692 = vld [vmem:[%s10 + $0x14] sm:$0xf]
    %v2693 = vld [vmem:[%s10 + $0x18] sm:$0xf]
    %v2694 = vld [vmem:[%s10 + $0x1c] sm:$0xf]
    %v2695 = vld [vmem:[%s11] sm:$0x1]
    %v2697 = vlaneseq
    %v2698 = vshrl.u32 %v2697, 7
    %v2699 = vsub.s32 0, %v2698
    %v2700 = vrot.slane %v2695, %v2699
    %v2710 = vunpack.c.l.b16 %v2687
    %v2711 = vunpack.c.l.b16 %v2688
    %v2712 = vunpack.c.l.b16 %v2689
    %v2713 = vunpack.c.l.b16 %v2690
    %v2714 = vunpack.c.l.b16 %v2691
    %v2715 = vunpack.c.l.b16 %v2692
    %v2716 = vunpack.c.l.b16 %v2693
    %v2717 = vunpack.c.l.b16 %v2694
    %v2718 = vpack.c.b16 %v2711, %v2710
    %v2719 = vpack.c.b16 %v2713, %v2712
    %v2720 = vpack.c.b16 %v2715, %v2714
    %v2721 = vpack.c.b16 %v2717, %v2716
    %vm2726 = vcmask 523264
    %v2728 = vsel %vm2726, %v2686, 0
    %2730 = vmatprep.subr.bf16.mxu0 0
    %2731 = vmatpush1.bf16.msra.mxu0 0
    %2732 = vmatprep.subr.bf16.mxu0 0
    %2733 = vmatpush1.bf16.msra.mxu0 0
    %2734 = vmatprep.subr.bf16.mxu0 0
    %2735 = vmatpush1.bf16.msra.mxu0 0
    %2736 = vmatprep.subr.bf16.mxu0 0
    %2737 = vmatpush1.bf16.msra.mxu0 0
    %2738 = vmatprep.subr.bf16.mxu0 0
    %2739 = vmatpush1.bf16.msra.mxu0 %v2721
    %2740 = vmatprep.subr.bf16.mxu0 0
    %2741 = vmatpush1.bf16.msra.mxu0 %v2720
    %2742 = vmatprep.subr.bf16.mxu0 0
    %2743 = vmatpush1.bf16.msra.mxu0 %v2719
    %2744 = vmatprep.subr.bf16.mxu0 0
    %2745 = vmatpush1.bf16.msra.mxu0 %v2718
    %2746 = vmatprep.subr.bf16.mxu0 0
    %2747 = vmatpush2.bf16.msra.mxu0 0
    %2748 = vmatprep.subr.bf16.mxu0 0
    %2749 = vmatpush2.bf16.msra.mxu0 0
    %2750 = vmatprep.subr.bf16.mxu0 0
    %2751 = vmatpush2.bf16.msra.mxu0 0
    %2752 = vmatprep.subr.bf16.mxu0 0
    %2753 = vmatpush2.bf16.msra.mxu0 0
    %2754 = vmatprep.subr.bf16.mxu0 0
    %2755 = vmatpush2.bf16.msra.mxu0 0
    %2756 = vmatprep.subr.bf16.mxu0 0
    %2757 = vmatpush2.bf16.msra.mxu0 0
    %2758 = vmatprep.subr.bf16.mxu0 0
    %2759 = vmatpush2.bf16.msra.mxu0 0
    %2760 = vmatprep.subr.bf16.mxu0 0
    %2761 = vmatpush2.bf16.msra.mxu0 0
    %2762 = vmatprep.mubr.bf16.mxu0 0
    %2763 = vmatmul.mubr.bf16.gmra.mxu0 %v2728
    %v2764 = vpop.f32.mrf.mxu0
    %v2765 = vadd.f32 %v2700, %v2764
    %v2766 = vpop.f32.mrf.mxu0
    %v2767 = vpop.f32.mrf.mxu0
    %v2768 = vadd.f32 %v2700, %v2767
    %v2769 = vpop.f32.mrf.mxu0
    %2770 = vdwg.mxu0
    %v2771 = vadd.f32 %v2566, %v2765
    %v2772 = vadd.f32 %v2567, %v2768
    %2773 = vst.msk [vmem:[#allocation14] sm:$0xff] %vm150, %v2771
    %2774 = vst.msk [vmem:[#allocation14 + $0x8] sm:$0xff] %vm150, %v2772
    // Predicated region
    $region74: #{tpu_custom_call.1} parent=1 // pred_check
      _
    $region75: #{tpu_custom_call.1} parent=1 // pred_check_branch
      %2776 = sbr.rel (0) target = $region77
    $region76: #{tpu_custom_call.1} parent=1 // pred_region
      %s2778 = ssub.s32 256, 256
      %2779 = vsyncadd [#allocation4], %s2778
      %s2780 = sshll.u32 [#allocation14], 4
      %s2781 = int_to_ptr.vmem [resolvable:$true] %s2780
      %2786 = dma.vmem_to_hbm [thread:$0]  %s2781, 256, %s12, [#allocation4], 128, 128, 8
    $region77: #{tpu_custom_call.1} parent=1 // pred_fallthru
      _
    // Predicated region
    $region78: #{tpu_custom_call.1} parent=1 // pred_check
      _
    $region79: #{tpu_custom_call.1} parent=1 // pred_check_branch
      %2788 = sbr.rel (0) target = $region81
    $region80: #{tpu_custom_call.1} parent=1 // pred_region
      %2789 = dma.done [#allocation4], 256
    $region81: #{tpu_custom_call.1} parent=1 // pred_fallthru
      _
    %2790 = vsyncpa [#allocation3], 1
    %2791 = vsyncpa [#allocation10], 1
    %2792 = vsyncpa [#allocation13], 1
    %2793 = vsyncpa [#allocation4], 1
    %2794 = vsyncpa [#allocation5], 1
    %2795 = vsyncpa [#allocation6], 1

</llo_original>
